<compile_context>
chip_gen: v7x
topology: tpu7x:2x2x1
jax: 0.10.0
libtpu: 0.0.40
codegen_flags: <defaults>
</compile_context>

<pallas_src>
import functools

import jax
import jax.numpy as jnp
from jax import lax
from jax.experimental import pallas as pl
from jax.experimental.pallas import tpu as pltpu

EPS = 1e-5  # BatchNorm2d default eps


# ----------------------------- in-kernel helpers -----------------------------
def _load_taps(x_ref, tap_list, mout):
    """9 shifted views of the flattened phase planes, shared by all branches."""
    return [x_ref[p, :, off:off + mout] for (p, off) in tap_list]


def _depthwise(taps, wdw_ref, bdw_ref, r):
    """Depthwise 3x3 for branch r: [Cin, MOUT]."""
    acc = taps[0] * wdw_ref[r, 0]
    for t in range(1, len(taps)):
        acc = acc + taps[t] * wdw_ref[r, t]
    return acc + bdw_ref[r]


def _store_stats(ps_ref, row0, v, maskf, inv_cnt):
    """Per-image (sum, centered sum-of-squares) over valid lanes -> ps rows."""
    c = v.shape[0]
    s = jnp.sum(v * maskf, axis=1, keepdims=True)          # [c, 1]
    d = (v - s * inv_cnt) * maskf
    q = jnp.sum(d * d, axis=1, keepdims=True)              # [c, 1]
    # Stats volume is ~0 (2*C f32 per image); keep the natural [c,1] column
    # layout to avoid an in-kernel transpose.
    ps_ref[0, row0:row0 + c, :] = jnp.concatenate([s, q], axis=1)


def _col_mask(mout, wr, wo):
    """1.0 on real output columns of the row-padded working layout."""
    col = lax.broadcasted_iota(jnp.int32, (1, mout), 1) % wr
    return (col < wo).astype(jnp.float32)


# --------------------------------- kernels -----------------------------------
def _stats1_kernel(x_ref, wdw_ref, bdw_ref, ps_ref,
                   *, tap_list, mout, wo, wr, nb, cin, inv_cnt):
    """Stage 1: depthwise 3x3 (+bias) -> BN1 partial statistics (stats only)."""
    maskf = _col_mask(mout, wr, wo)
    taps = _load_taps(x_ref, tap_list, mout)
    for r in range(nb):
        dw = _depthwise(taps, wdw_ref, bdw_ref, r)
        _store_stats(ps_ref, r * cin, dw, maskf, inv_cnt)


def _stats2_kernel(x_ref, wdw_ref, bdw_ref, sc1_ref, sh1_ref, wpw_ref, bpw_ref,
                   ps_ref, *, tap_list, mout, wo, wr, nb, cin, couts, inv_cnt):
    """Stage 2: recompute dw, BN1+ReLU, per-branch 1x1 (+bias) -> BN2 stats."""
    maskf = _col_mask(mout, wr, wo)
    taps = _load_taps(x_ref, tap_list, mout)
    ro = 0
    for r in range(nb):
        dw = _depthwise(taps, wdw_ref, bdw_ref, r)
        h = jnp.maximum(dw * sc1_ref[r * cin:(r + 1) * cin]
                        + sh1_ref[r * cin:(r + 1) * cin], 0.0)
        cr = couts[r]
        y = jnp.dot(wpw_ref[ro:ro + cr, :], h,
                    preferred_element_type=jnp.float32) + bpw_ref[ro:ro + cr]
        _store_stats(ps_ref, ro, y, maskf, inv_cnt)
        ro += cr


def _out_kernel(x_ref, wdw_ref, bdw_ref, sc1_ref, sh1_ref, wpw_ref, bpw_ref,
                sc2_ref, sh2_ref, o_ref,
                *, tap_list, mout, wo, wr, ho, nb, cin, couts):
    """Stage 3: recompute everything, apply BN2+ReLU, write NCHW output."""
    taps = _load_taps(x_ref, tap_list, mout)
    ro = 0
    for r in range(nb):
        dw = _depthwise(taps, wdw_ref, bdw_ref, r)
        h = jnp.maximum(dw * sc1_ref[r * cin:(r + 1) * cin]
                        + sh1_ref[r * cin:(r + 1) * cin], 0.0)
        cr = couts[r]
        y = jnp.dot(wpw_ref[ro:ro + cr, :], h,
                    preferred_element_type=jnp.float32) + bpw_ref[ro:ro + cr]
        z = jnp.maximum(y * sc2_ref[ro:ro + cr] + sh2_ref[ro:ro + cr], 0.0)
        # Row-compacting stores: drop the per-row halo columns and write the
        # channel-concatenated NCHW block directly (no XLA transpose/concat).
        for hh in range(ho):
            o_ref[0, ro:ro + cr, hh, :] = z[:, hh * wr:hh * wr + wo]
        ro += cr


# ----------------------------- wrapper / XLA glue -----------------------------
def _const(shape):
    nd = len(shape)
    return pl.BlockSpec(shape, lambda i, _nd=nd: (0,) * _nd)


def _prep_input(x, stride, hr, wr):
    """Zero-pad + stride-phase split, flattened to [N*NPH, Cin, HR*WR]."""
    n, cin, _, _ = x.shape
    xp = jnp.pad(x, ((0, 0), (0, 0), (1, 1), (1, 1)))
    phases = []
    for ph in range(stride):
        for pw in range(stride):
            pp = xp[:, :, ph::stride, pw::stride]
            hh, ww = pp.shape[2], pp.shape[3]
            pp = jnp.pad(pp, ((0, 0), (0, 0), (0, hr - hh), (0, wr - ww)))
            phases.append(pp)
    xph = jnp.stack(phases, axis=1)                    # [N, NPH, Cin, HR, WR]
    return xph.reshape(n * stride * stride, cin, hr * wr)


def _bn_fold(ps, cnt, gamma, beta):
    """Pooled (Chan) combine of per-image centered stats -> folded scale/shift."""
    n = ps.shape[0]
    mu_i = ps[:, :, 0] / cnt                           # [N, C] per-image means
    q_i = ps[:, :, 1]                                  # [N, C] centered sumsq
    mean = jnp.mean(mu_i, axis=0)                      # [C]
    var = (jnp.sum(q_i, axis=0)
           + cnt * jnp.sum(jnp.square(mu_i - mean[None, :]), axis=0)) / (n * cnt)
    var = jnp.maximum(var, 0.0)
    scale = lax.rsqrt(var + EPS) * gamma
    shift = beta - mean * scale
    return (scale.reshape(-1, 1).astype(jnp.float32),
            shift.reshape(-1, 1).astype(jnp.float32))


def block_forward(x_nchw, params, stride):
    """Pallas implementation of block.forward.  x: NCHW -> out: NCHW."""
    n, cin, h, w = x_nchw.shape
    nb = len(params)
    couts = tuple(int(p[4].shape[0]) for p in params)
    ctot = sum(couts)
    cdw = nb * cin
    ho = (h + 2 - 3) // stride + 1
    wo = (w + 2 - 3) // stride + 1
    dmax = 2 // stride               # max tap offset within a phase plane
    wr = wo + dmax                   # working row stride (real cols + halo)
    hr = ho + dmax + 1               # phase rows incl. halo + 1 spill row
    lin = hr * wr
    mout = ho * wr                   # per-image working length (row-padded)
    nph = stride * stride
    cnt = ho * wo                    # valid positions per image
    inv_cnt = 1.0 / cnt
    f32 = jnp.float32

    # tap t=(kh,kw): phase index + flat offset inside the phase plane.
    tap_list = tuple(((kh % stride) * stride + (kw % stride),
                      (kh // stride) * wr + (kw // stride))
                     for kh in range(3) for kw in range(3))

    xph = _prep_input(x_nchw.astype(f32), stride, hr, wr)   # [N*NPH, Cin, LIN]

    # ---- parameter packing (branch-concatenated; no block-diag zeros) ----
    wdw_all = jnp.stack(
        [jnp.transpose(p[0].reshape(cin, 9), (1, 0)) for p in params],
        0)[..., None].astype(f32)                            # [NB, 9, Cin, 1]
    bdw_all = jnp.stack([p[1] for p in params], 0)[..., None].astype(f32)
    g1 = jnp.concatenate([p[2] for p in params]).astype(f32)  # [CDW]
    b1 = jnp.concatenate([p[3] for p in params]).astype(f32)
    wpw_all = jnp.concatenate(
        [p[4].reshape(c, cin) for p, c in zip(params, couts)], 0).astype(f32)
    bpw_all = jnp.concatenate([p[5] for p in params]).reshape(ctot, 1).astype(f32)
    g2 = jnp.concatenate([p[6] for p in params]).astype(f32)  # [Ctot]
    b2 = jnp.concatenate([p[7] for p in params]).astype(f32)

    x_spec = pl.BlockSpec((nph, cin, lin), lambda i: (i, 0, 0))
    cparams = pltpu.CompilerParams(
        dimension_semantics=("parallel",),
        vmem_limit_bytes=32 * 1024 * 1024)

    # ---- stage 1: depthwise conv -> BN1 partial statistics (stats only) ----
    ps1 = pl.pallas_call(
        functools.partial(_stats1_kernel, tap_list=tap_list, mout=mout, wo=wo,
                          wr=wr, nb=nb, cin=cin, inv_cnt=inv_cnt),
        out_shape=jax.ShapeDtypeStruct((n, cdw, 2), f32),
        grid=(n,),
        in_specs=[x_spec, _const(wdw_all.shape), _const(bdw_all.shape)],
        out_specs=pl.BlockSpec((1, cdw, 2), lambda i: (i, 0, 0)),
        compiler_params=cparams,
    )(xph, wdw_all, bdw_all)
    sc1, sh1 = _bn_fold(ps1, cnt, g1, b1)

    # ---- stage 2: recompute + BN1+ReLU + 1x1 -> BN2 partial statistics ----
    ps2 = pl.pallas_call(
        functools.partial(_stats2_kernel, tap_list=tap_list, mout=mout, wo=wo,
                          wr=wr, nb=nb, cin=cin, couts=couts, inv_cnt=inv_cnt),
        out_shape=jax.ShapeDtypeStruct((n, ctot, 2), f32),
        grid=(n,),
        in_specs=[x_spec, _const(wdw_all.shape), _const(bdw_all.shape),
                  _const(sc1.shape), _const(sh1.shape),
                  _const(wpw_all.shape), _const(bpw_all.shape)],
        out_specs=pl.BlockSpec((1, ctot, 2), lambda i: (i, 0, 0)),
        compiler_params=cparams,
    )(xph, wdw_all, bdw_all, sc1, sh1, wpw_all, bpw_all)
    sc2, sh2 = _bn_fold(ps2, cnt, g2, b2)

    # ---- stage 3: recompute + BN1+ReLU + 1x1 + BN2+ReLU -> NCHW output ----
    out = pl.pallas_call(
        functools.partial(_out_kernel, tap_list=tap_list, mout=mout, wo=wo,
                          wr=wr, ho=ho, nb=nb, cin=cin, couts=couts),
        out_shape=jax.ShapeDtypeStruct((n, ctot, ho, wo), f32),
        grid=(n,),
        in_specs=[x_spec, _const(wdw_all.shape), _const(bdw_all.shape),
                  _const(sc1.shape), _const(sh1.shape),
                  _const(wpw_all.shape), _const(bpw_all.shape),
                  _const(sc2.shape), _const(sh2.shape)],
        out_specs=pl.BlockSpec((1, ctot, ho, wo), lambda i: (i, 0, 0, 0)),
        compiler_params=cparams,
    )(xph, wdw_all, bdw_all, sc1, sh1, wpw_all, bpw_all, sc2, sh2)
    return out


# ---------------- pure-JAX reference (for correctness check) ----------------
def _bn_train_ref(x, gamma, beta):
    mu = jnp.mean(x, axis=(0, 2, 3), keepdims=True)
    var = jnp.mean(jnp.square(x - mu), axis=(0, 2, 3), keepdims=True)
    return ((x - mu) * lax.rsqrt(var + EPS) * gamma[None, :, None, None]
            + beta[None, :, None, None])


def block_ref(x_nchw, params, stride):
    cin = x_nchw.shape[1]
    outs = []
    for (wdw_t, bdw, g1, b1, wpw_t, bpw, g2, b2) in params:
        dw = lax.conv_general_dilated(
            x_nchw, wdw_t, window_strides=(stride, stride),
            padding=((1, 1), (1, 1)), feature_group_count=cin,
            dimension_numbers=('NCHW', 'OIHW', 'NCHW')) + bdw[None, :, None, None]
        dw = jnp.maximum(_bn_train_ref(dw, g1, b1), 0.0)
        pw = lax.conv_general_dilated(
            dw, wpw_t, window_strides=(1, 1), padding='VALID',
            dimension_numbers=('NCHW', 'OIHW', 'NCHW')) + bpw[None, :, None, None]
        pw = jnp.maximum(_bn_train_ref(pw, g2, b2), 0.0)
        outs.append(pw)
    return jnp.concatenate(outs, axis=1)


if __name__ == "__main__":
    def make_params(key, cin, out_channels):
        keys = jax.random.split(key, 8 * len(out_channels))
        params = []
        ki = 0
        for cout in out_channels:
            wdw = 0.2 * jax.random.normal(keys[ki + 0], (cin, 1, 3, 3), jnp.float32)
            bdw = 0.1 * jax.random.normal(keys[ki + 1], (cin,), jnp.float32)
            g1 = 1.0 + 0.1 * jax.random.normal(keys[ki + 2], (cin,), jnp.float32)
            b1 = 0.1 * jax.random.normal(keys[ki + 3], (cin,), jnp.float32)
            wpw = 0.2 * jax.random.normal(keys[ki + 4], (cout, cin, 1, 1), jnp.float32)
            bpw = 0.1 * jax.random.normal(keys[ki + 5], (cout,), jnp.float32)
            g2 = 1.0 + 0.1 * jax.random.normal(keys[ki + 6], (cout,), jnp.float32)
            b2 = 0.1 * jax.random.normal(keys[ki + 7], (cout,), jnp.float32)
            params.append((wdw, bdw, g1, b1, wpw, bpw, g2, b2))
            ki += 8
        return params

    fwd = jax.jit(block_forward, static_argnums=(2,))

    root = jax.random.PRNGKey(0)
    configs = [
        # (N, Cin, H,  W,  stride, out_channels)
        (2, 8, 16, 16, 2, (8, 16, 8)),    # stride-2 (4 phase planes)
        (2, 8, 12, 12, 1, (8, 8, 16)),    # stride-1, small spatial
        (3, 8, 30, 30, 1, (16, 8, 8)),    # stride-1, larger spatial, N=3
    ]
    for ci, (n, cin, h, w, stride, out_ch) in enumerate(configs):
        kx, kp = jax.random.split(jax.random.fold_in(root, ci))
        x = jax.random.normal(kx, (n, cin, h, w), jnp.float32)
        params = make_params(kp, cin, out_ch)

        y = jax.block_until_ready(fwd(x, params, stride))
        y_ref = jax.block_until_ready(block_ref(x, params, stride))

        ho = (h + 2 - 3) // stride + 1
        wo = (w + 2 - 3) // stride + 1
        assert y.shape == (n, sum(out_ch), ho, wo), (ci, y.shape)
        err = float(jnp.max(jnp.abs(y - y_ref)))
        assert err < 2e-3, f"config {ci}: max abs err {err}"
    print("KERNEL_OK")
</pallas_src>

<mosaic_0001>
module attributes {stable_mosaic.version = 11 : i64} {
  func.func @_stats1_kernel(%arg0: i32, %arg1: memref<4x8x90xf32, #tpu.memory_space<vmem>>, %arg2: memref<3x9x8x1xf32, #tpu.memory_space<vmem>>, %arg3: memref<3x8x1xf32, #tpu.memory_space<vmem>>, %arg4: memref<1x24x2xf32, #tpu.memory_space<vmem>>) attributes {dimension_semantics = [#tpu.dimension_semantics<parallel>], iteration_bounds = array<i64: 2>, scalar_prefetch = 0 : i64, scratch_operands = 0 : i64, tpu.core_type = #tpu.core_type<tc>, window_params = [{transform_indices = @transform_0, window_bounds = array<i64: 4, 8, 90>}, {pipeline_mode = #tpu.pipeline_mode<synchronous>, transform_indices = @transform_1, window_bounds = array<i64: 3, 9, 8, 1>}, {pipeline_mode = #tpu.pipeline_mode<synchronous>, transform_indices = @transform_2, window_bounds = array<i64: 3, 8, 1>}, {transform_indices = @transform_3, window_bounds = array<i64: 1, 24, 2>}]} {
    %0 = tpu.iota {dimensions = array<i32: 1>} : vector<1x72xi32>
    %c9_i32 = arith.constant 9 : i32
    %c0_i32 = arith.constant 0 : i32
    %1 = arith.cmpi eq, %c9_i32, %c0_i32 : i32
    %c1_i32 = arith.constant 1 : i32
    %2 = arith.select %1, %c1_i32, %c9_i32 : i32
    %3 = vector.broadcast %2 : i32 to vector<1x72xi32>
    %4 = arith.remsi %0, %3 : vector<1x72xi32>
    %c0_i32_0 = arith.constant 0 : i32
    %5 = vector.broadcast %c0_i32_0 : i32 to vector<1x72xi32>
    %6 = arith.cmpi ne, %4, %5 : vector<1x72xi32>
    %c0_i32_1 = arith.constant 0 : i32
    %7 = vector.broadcast %c0_i32_1 : i32 to vector<1x72xi32>
    %8 = arith.cmpi slt, %4, %7 : vector<1x72xi32>
    %c0_i32_2 = arith.constant 0 : i32
    %9 = arith.cmpi slt, %2, %c0_i32_2 : i32
    %10 = vector.broadcast %9 : i1 to vector<1x72xi1>
    %11 = vector.broadcast %10 : vector<1x72xi1> to vector<1x72xi1>
    %12 = arith.xori %8, %11 : vector<1x72xi1>
    %13 = arith.andi %12, %6 : vector<1x72xi1>
    %14 = vector.broadcast %2 : i32 to vector<1x72xi32>
    %15 = arith.addi %4, %14 : vector<1x72xi32>
    %16 = arith.select %13, %15, %4 : vector<1x72xi1>, vector<1x72xi32>
    %c8_i32 = arith.constant 8 : i32
    %17 = vector.broadcast %c8_i32 : i32 to vector<1x72xi32>
    %18 = arith.cmpi slt, %16, %17 : vector<1x72xi32>
    %19 = arith.extui %18 : vector<1x72xi1> to vector<1x72xi32>
    %20 = arith.sitofp %19 : vector<1x72xi32> to vector<1x72xf32>
    %c0 = arith.constant 0 : index
    %c0_3 = arith.constant 0 : index
    %c0_4 = arith.constant 0 : index
    %21 = vector.load %arg1[%c0, %c0_3, %c0_4] : memref<4x8x90xf32, #tpu.memory_space<vmem>>, vector<1x8x72xf32>
    %22 = vector.shape_cast %21 : vector<1x8x72xf32> to vector<8x72xf32>
    %c1 = arith.constant 1 : index
    %c0_5 = arith.constant 0 : index
    %c0_6 = arith.constant 0 : index
    %23 = vector.load %arg1[%c1, %c0_5, %c0_6] : memref<4x8x90xf32, #tpu.memory_space<vmem>>, vector<1x8x72xf32>
    %24 = vector.shape_cast %23 : vector<1x8x72xf32> to vector<8x72xf32>
    %c0_7 = arith.constant 0 : index
    %c0_8 = arith.constant 0 : index
    %c1_9 = arith.constant 1 : index
    %25 = vector.load %arg1[%c0_7, %c0_8, %c1_9] : memref<4x8x90xf32, #tpu.memory_space<vmem>>, vector<1x8x72xf32>
    %26 = vector.shape_cast %25 : vector<1x8x72xf32> to vector<8x72xf32>
    %c2 = arith.constant 2 : index
    %c0_10 = arith.constant 0 : index
    %c0_11 = arith.constant 0 : index
    %27 = vector.load %arg1[%c2, %c0_10, %c0_11] : memref<4x8x90xf32, #tpu.memory_space<vmem>>, vector<1x8x72xf32>
    %28 = vector.shape_cast %27 : vector<1x8x72xf32> to vector<8x72xf32>
    %c3 = arith.constant 3 : index
    %c0_12 = arith.constant 0 : index
    %c0_13 = arith.constant 0 : index
    %29 = vector.load %arg1[%c3, %c0_12, %c0_13] : memref<4x8x90xf32, #tpu.memory_space<vmem>>, vector<1x8x72xf32>
    %30 = vector.shape_cast %29 : vector<1x8x72xf32> to vector<8x72xf32>
    %c2_14 = arith.constant 2 : index
    %c0_15 = arith.constant 0 : index
    %c1_16 = arith.constant 1 : index
    %31 = vector.load %arg1[%c2_14, %c0_15, %c1_16] : memref<4x8x90xf32, #tpu.memory_space<vmem>>, vector<1x8x72xf32>
    %32 = vector.shape_cast %31 : vector<1x8x72xf32> to vector<8x72xf32>
    %c0_17 = arith.constant 0 : index
    %c0_18 = arith.constant 0 : index
    %c9 = arith.constant 9 : index
    %33 = vector.load %arg1[%c0_17, %c0_18, %c9] : memref<4x8x90xf32, #tpu.memory_space<vmem>>, vector<1x8x72xf32>
    %34 = vector.shape_cast %33 : vector<1x8x72xf32> to vector<8x72xf32>
    %c1_19 = arith.constant 1 : index
    %c0_20 = arith.constant 0 : index
    %c9_21 = arith.constant 9 : index
    %35 = vector.load %arg1[%c1_19, %c0_20, %c9_21] : memref<4x8x90xf32, #tpu.memory_space<vmem>>, vector<1x8x72xf32>
    %36 = vector.shape_cast %35 : vector<1x8x72xf32> to vector<8x72xf32>
    %c0_22 = arith.constant 0 : index
    %c0_23 = arith.constant 0 : index
    %c10 = arith.constant 10 : index
    %37 = vector.load %arg1[%c0_22, %c0_23, %c10] : memref<4x8x90xf32, #tpu.memory_space<vmem>>, vector<1x8x72xf32>
    %38 = vector.shape_cast %37 : vector<1x8x72xf32> to vector<8x72xf32>
    %c0_24 = arith.constant 0 : index
    %c0_25 = arith.constant 0 : index
    %c0_26 = arith.constant 0 : index
    %c0_27 = arith.constant 0 : index
    %39 = vector.load %arg2[%c0_24, %c0_25, %c0_26, %c0_27] : memref<3x9x8x1xf32, #tpu.memory_space<vmem>>, vector<1x1x8x1xf32>
    %40 = vector.shape_cast %39 : vector<1x1x8x1xf32> to vector<8x1xf32>
    %41 = vector.broadcast %40 : vector<8x1xf32> to vector<8x72xf32>
    %42 = arith.mulf %22, %41 : vector<8x72xf32>
    %c0_28 = arith.constant 0 : index
    %c1_29 = arith.constant 1 : index
    %c0_30 = arith.constant 0 : index
    %c0_31 = arith.constant 0 : index
    %43 = vector.load %arg2[%c0_28, %c1_29, %c0_30, %c0_31] : memref<3x9x8x1xf32, #tpu.memory_space<vmem>>, vector<1x1x8x1xf32>
    %44 = vector.shape_cast %43 : vector<1x1x8x1xf32> to vector<8x1xf32>
    %45 = vector.broadcast %44 : vector<8x1xf32> to vector<8x72xf32>
    %46 = arith.mulf %24, %45 : vector<8x72xf32>
    %47 = arith.addf %42, %46 : vector<8x72xf32>
    %c0_32 = arith.constant 0 : index
    %c2_33 = arith.constant 2 : index
    %c0_34 = arith.constant 0 : index
    %c0_35 = arith.constant 0 : index
    %48 = vector.load %arg2[%c0_32, %c2_33, %c0_34, %c0_35] : memref<3x9x8x1xf32, #tpu.memory_space<vmem>>, vector<1x1x8x1xf32>
    %49 = vector.shape_cast %48 : vector<1x1x8x1xf32> to vector<8x1xf32>
    %50 = vector.broadcast %49 : vector<8x1xf32> to vector<8x72xf32>
    %51 = arith.mulf %26, %50 : vector<8x72xf32>
    %52 = arith.addf %47, %51 : vector<8x72xf32>
    %c0_36 = arith.constant 0 : index
    %c3_37 = arith.constant 3 : index
    %c0_38 = arith.constant 0 : index
    %c0_39 = arith.constant 0 : index
    %53 = vector.load %arg2[%c0_36, %c3_37, %c0_38, %c0_39] : memref<3x9x8x1xf32, #tpu.memory_space<vmem>>, vector<1x1x8x1xf32>
    %54 = vector.shape_cast %53 : vector<1x1x8x1xf32> to vector<8x1xf32>
    %55 = vector.broadcast %54 : vector<8x1xf32> to vector<8x72xf32>
    %56 = arith.mulf %28, %55 : vector<8x72xf32>
    %57 = arith.addf %52, %56 : vector<8x72xf32>
    %c0_40 = arith.constant 0 : index
    %c4 = arith.constant 4 : index
    %c0_41 = arith.constant 0 : index
    %c0_42 = arith.constant 0 : index
    %58 = vector.load %arg2[%c0_40, %c4, %c0_41, %c0_42] : memref<3x9x8x1xf32, #tpu.memory_space<vmem>>, vector<1x1x8x1xf32>
    %59 = vector.shape_cast %58 : vector<1x1x8x1xf32> to vector<8x1xf32>
    %60 = vector.broadcast %59 : vector<8x1xf32> to vector<8x72xf32>
    %61 = arith.mulf %30, %60 : vector<8x72xf32>
    %62 = arith.addf %57, %61 : vector<8x72xf32>
    %c0_43 = arith.constant 0 : index
    %c5 = arith.constant 5 : index
    %c0_44 = arith.constant 0 : index
    %c0_45 = arith.constant 0 : index
    %63 = vector.load %arg2[%c0_43, %c5, %c0_44, %c0_45] : memref<3x9x8x1xf32, #tpu.memory_space<vmem>>, vector<1x1x8x1xf32>
    %64 = vector.shape_cast %63 : vector<1x1x8x1xf32> to vector<8x1xf32>
    %65 = vector.broadcast %64 : vector<8x1xf32> to vector<8x72xf32>
    %66 = arith.mulf %32, %65 : vector<8x72xf32>
    %67 = arith.addf %62, %66 : vector<8x72xf32>
    %c0_46 = arith.constant 0 : index
    %c6 = arith.constant 6 : index
    %c0_47 = arith.constant 0 : index
    %c0_48 = arith.constant 0 : index
    %68 = vector.load %arg2[%c0_46, %c6, %c0_47, %c0_48] : memref<3x9x8x1xf32, #tpu.memory_space<vmem>>, vector<1x1x8x1xf32>
    %69 = vector.shape_cast %68 : vector<1x1x8x1xf32> to vector<8x1xf32>
    %70 = vector.broadcast %69 : vector<8x1xf32> to vector<8x72xf32>
    %71 = arith.mulf %34, %70 : vector<8x72xf32>
    %72 = arith.addf %67, %71 : vector<8x72xf32>
    %c0_49 = arith.constant 0 : index
    %c7 = arith.constant 7 : index
    %c0_50 = arith.constant 0 : index
    %c0_51 = arith.constant 0 : index
    %73 = vector.load %arg2[%c0_49, %c7, %c0_50, %c0_51] : memref<3x9x8x1xf32, #tpu.memory_space<vmem>>, vector<1x1x8x1xf32>
    %74 = vector.shape_cast %73 : vector<1x1x8x1xf32> to vector<8x1xf32>
    %75 = vector.broadcast %74 : vector<8x1xf32> to vector<8x72xf32>
    %76 = arith.mulf %36, %75 : vector<8x72xf32>
    %77 = arith.addf %72, %76 : vector<8x72xf32>
    %c0_52 = arith.constant 0 : index
    %c8 = arith.constant 8 : index
    %c0_53 = arith.constant 0 : index
    %c0_54 = arith.constant 0 : index
    %78 = vector.load %arg2[%c0_52, %c8, %c0_53, %c0_54] : memref<3x9x8x1xf32, #tpu.memory_space<vmem>>, vector<1x1x8x1xf32>
    %79 = vector.shape_cast %78 : vector<1x1x8x1xf32> to vector<8x1xf32>
    %80 = vector.broadcast %79 : vector<8x1xf32> to vector<8x72xf32>
    %81 = arith.mulf %38, %80 : vector<8x72xf32>
    %82 = arith.addf %77, %81 : vector<8x72xf32>
    %c0_55 = arith.constant 0 : index
    %c0_56 = arith.constant 0 : index
    %c0_57 = arith.constant 0 : index
    %83 = vector.load %arg3[%c0_55, %c0_56, %c0_57] : memref<3x8x1xf32, #tpu.memory_space<vmem>>, vector<1x8x1xf32>
    %84 = vector.shape_cast %83 : vector<1x8x1xf32> to vector<8x1xf32>
    %85 = vector.broadcast %84 : vector<8x1xf32> to vector<8x72xf32>
    %86 = arith.addf %82, %85 : vector<8x72xf32>
    %87 = vector.broadcast %20 : vector<1x72xf32> to vector<8x72xf32>
    %88 = arith.mulf %86, %87 : vector<8x72xf32>
    %cst = arith.constant dense<0.000000e+00> : vector<8xf32>
    %89 = vector.multi_reduction <add>, %88, %cst [1] : vector<8x72xf32> to vector<8xf32>
    %90 = vector.shape_cast %89 : vector<8xf32> to vector<8x1xf32>
    %cst_58 = arith.constant 1.562500e-02 : f32
    %91 = vector.broadcast %cst_58 : f32 to vector<8x1xf32>
    %92 = arith.mulf %90, %91 : vector<8x1xf32>
    %93 = vector.broadcast %92 : vector<8x1xf32> to vector<8x72xf32>
    %94 = arith.subf %86, %93 : vector<8x72xf32>
    %95 = vector.broadcast %20 : vector<1x72xf32> to vector<8x72xf32>
    %96 = arith.mulf %94, %95 : vector<8x72xf32>
    %97 = arith.mulf %96, %96 : vector<8x72xf32>
    %cst_59 = arith.constant dense<0.000000e+00> : vector<8xf32>
    %98 = vector.multi_reduction <add>, %97, %cst_59 [1] : vector<8x72xf32> to vector<8xf32>
    %99 = vector.shape_cast %98 : vector<8xf32> to vector<8x1xf32>
    %100 = tpu.concatenate %90, %99 in 1 : vector<8x1xf32>, vector<8x1xf32> -> vector<8x2xf32>
    %c0_60 = arith.constant 0 : index
    %c0_61 = arith.constant 0 : index
    %c0_62 = arith.constant 0 : index
    %101 = vector.load %arg4[%c0_60, %c0_61, %c0_62] : memref<1x24x2xf32, #tpu.memory_space<vmem>>, vector<1x8x2xf32>
    %102 = vector.shape_cast %101 : vector<1x8x2xf32> to vector<8x2xf32>
    %103 = vector.shape_cast %100 : vector<8x2xf32> to vector<1x8x2xf32>
    tpu.vector_store %arg4[%c0_60, %c0_61, %c0_62], %103 {strides = array<i32>} : memref<1x24x2xf32, #tpu.memory_space<vmem>>, vector<1x8x2xf32>,
    %c1_63 = arith.constant 1 : index
    %c0_64 = arith.constant 0 : index
    %c0_65 = arith.constant 0 : index
    %c0_66 = arith.constant 0 : index
    %104 = vector.load %arg2[%c1_63, %c0_64, %c0_65, %c0_66] : memref<3x9x8x1xf32, #tpu.memory_space<vmem>>, vector<1x1x8x1xf32>
    %105 = vector.shape_cast %104 : vector<1x1x8x1xf32> to vector<8x1xf32>
    %106 = vector.broadcast %105 : vector<8x1xf32> to vector<8x72xf32>
    %107 = arith.mulf %22, %106 : vector<8x72xf32>
    %c1_67 = arith.constant 1 : index
    %c1_68 = arith.constant 1 : index
    %c0_69 = arith.constant 0 : index
    %c0_70 = arith.constant 0 : index
    %108 = vector.load %arg2[%c1_67, %c1_68, %c0_69, %c0_70] : memref<3x9x8x1xf32, #tpu.memory_space<vmem>>, vector<1x1x8x1xf32>
    %109 = vector.shape_cast %108 : vector<1x1x8x1xf32> to vector<8x1xf32>
    %110 = vector.broadcast %109 : vector<8x1xf32> to vector<8x72xf32>
    %111 = arith.mulf %24, %110 : vector<8x72xf32>
    %112 = arith.addf %107, %111 : vector<8x72xf32>
    %c1_71 = arith.constant 1 : index
    %c2_72 = arith.constant 2 : index
    %c0_73 = arith.constant 0 : index
    %c0_74 = arith.constant 0 : index
    %113 = vector.load %arg2[%c1_71, %c2_72, %c0_73, %c0_74] : memref<3x9x8x1xf32, #tpu.memory_space<vmem>>, vector<1x1x8x1xf32>
    %114 = vector.shape_cast %113 : vector<1x1x8x1xf32> to vector<8x1xf32>
    %115 = vector.broadcast %114 : vector<8x1xf32> to vector<8x72xf32>
    %116 = arith.mulf %26, %115 : vector<8x72xf32>
    %117 = arith.addf %112, %116 : vector<8x72xf32>
    %c1_75 = arith.constant 1 : index
    %c3_76 = arith.constant 3 : index
    %c0_77 = arith.constant 0 : index
    %c0_78 = arith.constant 0 : index
    %118 = vector.load %arg2[%c1_75, %c3_76, %c0_77, %c0_78] : memref<3x9x8x1xf32, #tpu.memory_space<vmem>>, vector<1x1x8x1xf32>
    %119 = vector.shape_cast %118 : vector<1x1x8x1xf32> to vector<8x1xf32>
    %120 = vector.broadcast %119 : vector<8x1xf32> to vector<8x72xf32>
    %121 = arith.mulf %28, %120 : vector<8x72xf32>
    %122 = arith.addf %117, %121 : vector<8x72xf32>
    %c1_79 = arith.constant 1 : index
    %c4_80 = arith.constant 4 : index
    %c0_81 = arith.constant 0 : index
    %c0_82 = arith.constant 0 : index
    %123 = vector.load %arg2[%c1_79, %c4_80, %c0_81, %c0_82] : memref<3x9x8x1xf32, #tpu.memory_space<vmem>>, vector<1x1x8x1xf32>
    %124 = vector.shape_cast %123 : vector<1x1x8x1xf32> to vector<8x1xf32>
    %125 = vector.broadcast %124 : vector<8x1xf32> to vector<8x72xf32>
    %126 = arith.mulf %30, %125 : vector<8x72xf32>
    %127 = arith.addf %122, %126 : vector<8x72xf32>
    %c1_83 = arith.constant 1 : index
    %c5_84 = arith.constant 5 : index
    %c0_85 = arith.constant 0 : index
    %c0_86 = arith.constant 0 : index
    %128 = vector.load %arg2[%c1_83, %c5_84, %c0_85, %c0_86] : memref<3x9x8x1xf32, #tpu.memory_space<vmem>>, vector<1x1x8x1xf32>
    %129 = vector.shape_cast %128 : vector<1x1x8x1xf32> to vector<8x1xf32>
    %130 = vector.broadcast %129 : vector<8x1xf32> to vector<8x72xf32>
    %131 = arith.mulf %32, %130 : vector<8x72xf32>
    %132 = arith.addf %127, %131 : vector<8x72xf32>
    %c1_87 = arith.constant 1 : index
    %c6_88 = arith.constant 6 : index
    %c0_89 = arith.constant 0 : index
    %c0_90 = arith.constant 0 : index
    %133 = vector.load %arg2[%c1_87, %c6_88, %c0_89, %c0_90] : memref<3x9x8x1xf32, #tpu.memory_space<vmem>>, vector<1x1x8x1xf32>
    %134 = vector.shape_cast %133 : vector<1x1x8x1xf32> to vector<8x1xf32>
    %135 = vector.broadcast %134 : vector<8x1xf32> to vector<8x72xf32>
    %136 = arith.mulf %34, %135 : vector<8x72xf32>
    %137 = arith.addf %132, %136 : vector<8x72xf32>
    %c1_91 = arith.constant 1 : index
    %c7_92 = arith.constant 7 : index
    %c0_93 = arith.constant 0 : index
    %c0_94 = arith.constant 0 : index
    %138 = vector.load %arg2[%c1_91, %c7_92, %c0_93, %c0_94] : memref<3x9x8x1xf32, #tpu.memory_space<vmem>>, vector<1x1x8x1xf32>
    %139 = vector.shape_cast %138 : vector<1x1x8x1xf32> to vector<8x1xf32>
    %140 = vector.broadcast %139 : vector<8x1xf32> to vector<8x72xf32>
    %141 = arith.mulf %36, %140 : vector<8x72xf32>
    %142 = arith.addf %137, %141 : vector<8x72xf32>
    %c1_95 = arith.constant 1 : index
    %c8_96 = arith.constant 8 : index
    %c0_97 = arith.constant 0 : index
    %c0_98 = arith.constant 0 : index
    %143 = vector.load %arg2[%c1_95, %c8_96, %c0_97, %c0_98] : memref<3x9x8x1xf32, #tpu.memory_space<vmem>>, vector<1x1x8x1xf32>
    %144 = vector.shape_cast %143 : vector<1x1x8x1xf32> to vector<8x1xf32>
    %145 = vector.broadcast %144 : vector<8x1xf32> to vector<8x72xf32>
    %146 = arith.mulf %38, %145 : vector<8x72xf32>
    %147 = arith.addf %142, %146 : vector<8x72xf32>
    %c1_99 = arith.constant 1 : index
    %c0_100 = arith.constant 0 : index
    %c0_101 = arith.constant 0 : index
    %148 = vector.load %arg3[%c1_99, %c0_100, %c0_101] : memref<3x8x1xf32, #tpu.memory_space<vmem>>, vector<1x8x1xf32>
    %149 = vector.shape_cast %148 : vector<1x8x1xf32> to vector<8x1xf32>
    %150 = vector.broadcast %149 : vector<8x1xf32> to vector<8x72xf32>
    %151 = arith.addf %147, %150 : vector<8x72xf32>
    %152 = vector.broadcast %20 : vector<1x72xf32> to vector<8x72xf32>
    %153 = arith.mulf %151, %152 : vector<8x72xf32>
    %cst_102 = arith.constant dense<0.000000e+00> : vector<8xf32>
    %154 = vector.multi_reduction <add>, %153, %cst_102 [1] : vector<8x72xf32> to vector<8xf32>
    %155 = vector.shape_cast %154 : vector<8xf32> to vector<8x1xf32>
    %cst_103 = arith.constant 1.562500e-02 : f32
    %156 = vector.broadcast %cst_103 : f32 to vector<8x1xf32>
    %157 = arith.mulf %155, %156 : vector<8x1xf32>
    %158 = vector.broadcast %157 : vector<8x1xf32> to vector<8x72xf32>
    %159 = arith.subf %151, %158 : vector<8x72xf32>
    %160 = vector.broadcast %20 : vector<1x72xf32> to vector<8x72xf32>
    %161 = arith.mulf %159, %160 : vector<8x72xf32>
    %162 = arith.mulf %161, %161 : vector<8x72xf32>
    %cst_104 = arith.constant dense<0.000000e+00> : vector<8xf32>
    %163 = vector.multi_reduction <add>, %162, %cst_104 [1] : vector<8x72xf32> to vector<8xf32>
    %164 = vector.shape_cast %163 : vector<8xf32> to vector<8x1xf32>
    %165 = tpu.concatenate %155, %164 in 1 : vector<8x1xf32>, vector<8x1xf32> -> vector<8x2xf32>
    %c0_105 = arith.constant 0 : index
    %c8_106 = arith.constant 8 : index
    %c0_107 = arith.constant 0 : index
    %166 = vector.load %arg4[%c0_105, %c8_106, %c0_107] : memref<1x24x2xf32, #tpu.memory_space<vmem>>, vector<1x8x2xf32>
    %167 = vector.shape_cast %166 : vector<1x8x2xf32> to vector<8x2xf32>
    %168 = vector.shape_cast %165 : vector<8x2xf32> to vector<1x8x2xf32>
    tpu.vector_store %arg4[%c0_105, %c8_106, %c0_107], %168 {strides = array<i32>} : memref<1x24x2xf32, #tpu.memory_space<vmem>>, vector<1x8x2xf32>,
    %c2_108 = arith.constant 2 : index
    %c0_109 = arith.constant 0 : index
    %c0_110 = arith.constant 0 : index
    %c0_111 = arith.constant 0 : index
    %169 = vector.load %arg2[%c2_108, %c0_109, %c0_110, %c0_111] : memref<3x9x8x1xf32, #tpu.memory_space<vmem>>, vector<1x1x8x1xf32>
    %170 = vector.shape_cast %169 : vector<1x1x8x1xf32> to vector<8x1xf32>
    %171 = vector.broadcast %170 : vector<8x1xf32> to vector<8x72xf32>
    %172 = arith.mulf %22, %171 : vector<8x72xf32>
    %c2_112 = arith.constant 2 : index
    %c1_113 = arith.constant 1 : index
    %c0_114 = arith.constant 0 : index
    %c0_115 = arith.constant 0 : index
    %173 = vector.load %arg2[%c2_112, %c1_113, %c0_114, %c0_115] : memref<3x9x8x1xf32, #tpu.memory_space<vmem>>, vector<1x1x8x1xf32>
    %174 = vector.shape_cast %173 : vector<1x1x8x1xf32> to vector<8x1xf32>
    %175 = vector.broadcast %174 : vector<8x1xf32> to vector<8x72xf32>
    %176 = arith.mulf %24, %175 : vector<8x72xf32>
    %177 = arith.addf %172, %176 : vector<8x72xf32>
    %c2_116 = arith.constant 2 : index
    %c2_117 = arith.constant 2 : index
    %c0_118 = arith.constant 0 : index
    %c0_119 = arith.constant 0 : index
    %178 = vector.load %arg2[%c2_116, %c2_117, %c0_118, %c0_119] : memref<3x9x8x1xf32, #tpu.memory_space<vmem>>, vector<1x1x8x1xf32>
    %179 = vector.shape_cast %178 : vector<1x1x8x1xf32> to vector<8x1xf32>
    %180 = vector.broadcast %179 : vector<8x1xf32> to vector<8x72xf32>
    %181 = arith.mulf %26, %180 : vector<8x72xf32>
    %182 = arith.addf %177, %181 : vector<8x72xf32>
    %c2_120 = arith.constant 2 : index
    %c3_121 = arith.constant 3 : index
    %c0_122 = arith.constant 0 : index
    %c0_123 = arith.constant 0 : index
    %183 = vector.load %arg2[%c2_120, %c3_121, %c0_122, %c0_123] : memref<3x9x8x1xf32, #tpu.memory_space<vmem>>, vector<1x1x8x1xf32>
    %184 = vector.shape_cast %183 : vector<1x1x8x1xf32> to vector<8x1xf32>
    %185 = vector.broadcast %184 : vector<8x1xf32> to vector<8x72xf32>
    %186 = arith.mulf %28, %185 : vector<8x72xf32>
    %187 = arith.addf %182, %186 : vector<8x72xf32>
    %c2_124 = arith.constant 2 : index
    %c4_125 = arith.constant 4 : index
    %c0_126 = arith.constant 0 : index
    %c0_127 = arith.constant 0 : index
    %188 = vector.load %arg2[%c2_124, %c4_125, %c0_126, %c0_127] : memref<3x9x8x1xf32, #tpu.memory_space<vmem>>, vector<1x1x8x1xf32>
    %189 = vector.shape_cast %188 : vector<1x1x8x1xf32> to vector<8x1xf32>
    %190 = vector.broadcast %189 : vector<8x1xf32> to vector<8x72xf32>
    %191 = arith.mulf %30, %190 : vector<8x72xf32>
    %192 = arith.addf %187, %191 : vector<8x72xf32>
    %c2_128 = arith.constant 2 : index
    %c5_129 = arith.constant 5 : index
    %c0_130 = arith.constant 0 : index
    %c0_131 = arith.constant 0 : index
    %193 = vector.load %arg2[%c2_128, %c5_129, %c0_130, %c0_131] : memref<3x9x8x1xf32, #tpu.memory_space<vmem>>, vector<1x1x8x1xf32>
    %194 = vector.shape_cast %193 : vector<1x1x8x1xf32> to vector<8x1xf32>
    %195 = vector.broadcast %194 : vector<8x1xf32> to vector<8x72xf32>
    %196 = arith.mulf %32, %195 : vector<8x72xf32>
    %197 = arith.addf %192, %196 : vector<8x72xf32>
    %c2_132 = arith.constant 2 : index
    %c6_133 = arith.constant 6 : index
    %c0_134 = arith.constant 0 : index
    %c0_135 = arith.constant 0 : index
    %198 = vector.load %arg2[%c2_132, %c6_133, %c0_134, %c0_135] : memref<3x9x8x1xf32, #tpu.memory_space<vmem>>, vector<1x1x8x1xf32>
    %199 = vector.shape_cast %198 : vector<1x1x8x1xf32> to vector<8x1xf32>
    %200 = vector.broadcast %199 : vector<8x1xf32> to vector<8x72xf32>
    %201 = arith.mulf %34, %200 : vector<8x72xf32>
    %202 = arith.addf %197, %201 : vector<8x72xf32>
    %c2_136 = arith.constant 2 : index
    %c7_137 = arith.constant 7 : index
    %c0_138 = arith.constant 0 : index
    %c0_139 = arith.constant 0 : index
    %203 = vector.load %arg2[%c2_136, %c7_137, %c0_138, %c0_139] : memref<3x9x8x1xf32, #tpu.memory_space<vmem>>, vector<1x1x8x1xf32>
    %204 = vector.shape_cast %203 : vector<1x1x8x1xf32> to vector<8x1xf32>
    %205 = vector.broadcast %204 : vector<8x1xf32> to vector<8x72xf32>
    %206 = arith.mulf %36, %205 : vector<8x72xf32>
    %207 = arith.addf %202, %206 : vector<8x72xf32>
    %c2_140 = arith.constant 2 : index
    %c8_141 = arith.constant 8 : index
    %c0_142 = arith.constant 0 : index
    %c0_143 = arith.constant 0 : index
    %208 = vector.load %arg2[%c2_140, %c8_141, %c0_142, %c0_143] : memref<3x9x8x1xf32, #tpu.memory_space<vmem>>, vector<1x1x8x1xf32>
    %209 = vector.shape_cast %208 : vector<1x1x8x1xf32> to vector<8x1xf32>
    %210 = vector.broadcast %209 : vector<8x1xf32> to vector<8x72xf32>
    %211 = arith.mulf %38, %210 : vector<8x72xf32>
    %212 = arith.addf %207, %211 : vector<8x72xf32>
    %c2_144 = arith.constant 2 : index
    %c0_145 = arith.constant 0 : index
    %c0_146 = arith.constant 0 : index
    %213 = vector.load %arg3[%c2_144, %c0_145, %c0_146] : memref<3x8x1xf32, #tpu.memory_space<vmem>>, vector<1x8x1xf32>
    %214 = vector.shape_cast %213 : vector<1x8x1xf32> to vector<8x1xf32>
    %215 = vector.broadcast %214 : vector<8x1xf32> to vector<8x72xf32>
    %216 = arith.addf %212, %215 : vector<8x72xf32>
    %217 = vector.broadcast %20 : vector<1x72xf32> to vector<8x72xf32>
    %218 = arith.mulf %216, %217 : vector<8x72xf32>
    %cst_147 = arith.constant dense<0.000000e+00> : vector<8xf32>
    %219 = vector.multi_reduction <add>, %218, %cst_147 [1] : vector<8x72xf32> to vector<8xf32>
    %220 = vector.shape_cast %219 : vector<8xf32> to vector<8x1xf32>
    %cst_148 = arith.constant 1.562500e-02 : f32
    %221 = vector.broadcast %cst_148 : f32 to vector<8x1xf32>
    %222 = arith.mulf %220, %221 : vector<8x1xf32>
    %223 = vector.broadcast %222 : vector<8x1xf32> to vector<8x72xf32>
    %224 = arith.subf %216, %223 : vector<8x72xf32>
    %225 = vector.broadcast %20 : vector<1x72xf32> to vector<8x72xf32>
    %226 = arith.mulf %224, %225 : vector<8x72xf32>
    %227 = arith.mulf %226, %226 : vector<8x72xf32>
    %cst_149 = arith.constant dense<0.000000e+00> : vector<8xf32>
    %228 = vector.multi_reduction <add>, %227, %cst_149 [1] : vector<8x72xf32> to vector<8xf32>
    %229 = vector.shape_cast %228 : vector<8xf32> to vector<8x1xf32>
    %230 = tpu.concatenate %220, %229 in 1 : vector<8x1xf32>, vector<8x1xf32> -> vector<8x2xf32>
    %c0_150 = arith.constant 0 : index
    %c16 = arith.constant 16 : index
    %c0_151 = arith.constant 0 : index
    %231 = vector.load %arg4[%c0_150, %c16, %c0_151] : memref<1x24x2xf32, #tpu.memory_space<vmem>>, vector<1x8x2xf32>
    %232 = vector.shape_cast %231 : vector<1x8x2xf32> to vector<8x2xf32>
    %233 = vector.shape_cast %230 : vector<8x2xf32> to vector<1x8x2xf32>
    tpu.vector_store %arg4[%c0_150, %c16, %c0_151], %233 {strides = array<i32>} : memref<1x24x2xf32, #tpu.memory_space<vmem>>, vector<1x8x2xf32>,
    return
  }
  func.func @transform_0(%arg0: i32) -> (i32, i32, i32) {
    %c0_i32 = arith.constant 0 : i32
    %c0_i32_0 = arith.constant 0 : i32
    %c0_i32_1 = arith.constant 0 : i32
    return %arg0, %c0_i32, %c0_i32_0 : i32, i32, i32
  }
  func.func @transform_1(%arg0: i32) -> (i32, i32, i32, i32) {
    %c0_i32 = arith.constant 0 : i32
    %c0_i32_0 = arith.constant 0 : i32
    %c0_i32_1 = arith.constant 0 : i32
    %c0_i32_2 = arith.constant 0 : i32
    %c0_i32_3 = arith.constant 0 : i32
    return %c0_i32, %c0_i32_0, %c0_i32_1, %c0_i32_2 : i32, i32, i32, i32
  }
  func.func @transform_2(%arg0: i32) -> (i32, i32, i32) {
    %c0_i32 = arith.constant 0 : i32
    %c0_i32_0 = arith.constant 0 : i32
    %c0_i32_1 = arith.constant 0 : i32
    %c0_i32_2 = arith.constant 0 : i32
    return %c0_i32, %c0_i32_0, %c0_i32_1 : i32, i32, i32
  }
  func.func @transform_3(%arg0: i32) -> (i32, i32, i32) {
    %c0_i32 = arith.constant 0 : i32
    %c0_i32_0 = arith.constant 0 : i32
    %c0_i32_1 = arith.constant 0 : i32
    return %arg0, %c0_i32, %c0_i32_0 : i32, i32, i32
  }
}

module attributes {stable_mosaic.version = 11 : i64} {
  func.func @_stats2_kernel(%arg0: i32, %arg1: memref<4x8x90xf32, #tpu.memory_space<vmem>>, %arg2: memref<3x9x8x1xf32, #tpu.memory_space<vmem>>, %arg3: memref<3x8x1xf32, #tpu.memory_space<vmem>>, %arg4: memref<24x1xf32, #tpu.memory_space<vmem>>, %arg5: memref<24x1xf32, #tpu.memory_space<vmem>>, %arg6: memref<32x8xf32, #tpu.memory_space<vmem>>, %arg7: memref<32x1xf32, #tpu.memory_space<vmem>>, %arg8: memref<1x32x2xf32, #tpu.memory_space<vmem>>) attributes {dimension_semantics = [#tpu.dimension_semantics<parallel>], iteration_bounds = array<i64: 2>, scalar_prefetch = 0 : i64, scratch_operands = 0 : i64, tpu.core_type = #tpu.core_type<tc>, window_params = [{transform_indices = @transform_0, window_bounds = array<i64: 4, 8, 90>}, {pipeline_mode = #tpu.pipeline_mode<synchronous>, transform_indices = @transform_1, window_bounds = array<i64: 3, 9, 8, 1>}, {pipeline_mode = #tpu.pipeline_mode<synchronous>, transform_indices = @transform_2, window_bounds = array<i64: 3, 8, 1>}, {pipeline_mode = #tpu.pipeline_mode<synchronous>, transform_indices = @transform_3, window_bounds = array<i64: 24, 1>}, {pipeline_mode = #tpu.pipeline_mode<synchronous>, transform_indices = @transform_4, window_bounds = array<i64: 24, 1>}, {pipeline_mode = #tpu.pipeline_mode<synchronous>, transform_indices = @transform_5, window_bounds = array<i64: 32, 8>}, {pipeline_mode = #tpu.pipeline_mode<synchronous>, transform_indices = @transform_6, window_bounds = array<i64: 32, 1>}, {transform_indices = @transform_7, window_bounds = array<i64: 1, 32, 2>}]} {
    %0 = tpu.iota {dimensions = array<i32: 1>} : vector<1x72xi32>
    %c9_i32 = arith.constant 9 : i32
    %c0_i32 = arith.constant 0 : i32
    %1 = arith.cmpi eq, %c9_i32, %c0_i32 : i32
    %c1_i32 = arith.constant 1 : i32
    %2 = arith.select %1, %c1_i32, %c9_i32 : i32
    %3 = vector.broadcast %2 : i32 to vector<1x72xi32>
    %4 = arith.remsi %0, %3 : vector<1x72xi32>
    %c0_i32_0 = arith.constant 0 : i32
    %5 = vector.broadcast %c0_i32_0 : i32 to vector<1x72xi32>
    %6 = arith.cmpi ne, %4, %5 : vector<1x72xi32>
    %c0_i32_1 = arith.constant 0 : i32
    %7 = vector.broadcast %c0_i32_1 : i32 to vector<1x72xi32>
    %8 = arith.cmpi slt, %4, %7 : vector<1x72xi32>
    %c0_i32_2 = arith.constant 0 : i32
    %9 = arith.cmpi slt, %2, %c0_i32_2 : i32
    %10 = vector.broadcast %9 : i1 to vector<1x72xi1>
    %11 = vector.broadcast %10 : vector<1x72xi1> to vector<1x72xi1>
    %12 = arith.xori %8, %11 : vector<1x72xi1>
    %13 = arith.andi %12, %6 : vector<1x72xi1>
    %14 = vector.broadcast %2 : i32 to vector<1x72xi32>
    %15 = arith.addi %4, %14 : vector<1x72xi32>
    %16 = arith.select %13, %15, %4 : vector<1x72xi1>, vector<1x72xi32>
    %c8_i32 = arith.constant 8 : i32
    %17 = vector.broadcast %c8_i32 : i32 to vector<1x72xi32>
    %18 = arith.cmpi slt, %16, %17 : vector<1x72xi32>
    %19 = arith.extui %18 : vector<1x72xi1> to vector<1x72xi32>
    %20 = arith.sitofp %19 : vector<1x72xi32> to vector<1x72xf32>
    %c0 = arith.constant 0 : index
    %c0_3 = arith.constant 0 : index
    %c0_4 = arith.constant 0 : index
    %21 = vector.load %arg1[%c0, %c0_3, %c0_4] : memref<4x8x90xf32, #tpu.memory_space<vmem>>, vector<1x8x72xf32>
    %22 = vector.shape_cast %21 : vector<1x8x72xf32> to vector<8x72xf32>
    %c1 = arith.constant 1 : index
    %c0_5 = arith.constant 0 : index
    %c0_6 = arith.constant 0 : index
    %23 = vector.load %arg1[%c1, %c0_5, %c0_6] : memref<4x8x90xf32, #tpu.memory_space<vmem>>, vector<1x8x72xf32>
    %24 = vector.shape_cast %23 : vector<1x8x72xf32> to vector<8x72xf32>
    %c0_7 = arith.constant 0 : index
    %c0_8 = arith.constant 0 : index
    %c1_9 = arith.constant 1 : index
    %25 = vector.load %arg1[%c0_7, %c0_8, %c1_9] : memref<4x8x90xf32, #tpu.memory_space<vmem>>, vector<1x8x72xf32>
    %26 = vector.shape_cast %25 : vector<1x8x72xf32> to vector<8x72xf32>
    %c2 = arith.constant 2 : index
    %c0_10 = arith.constant 0 : index
    %c0_11 = arith.constant 0 : index
    %27 = vector.load %arg1[%c2, %c0_10, %c0_11] : memref<4x8x90xf32, #tpu.memory_space<vmem>>, vector<1x8x72xf32>
    %28 = vector.shape_cast %27 : vector<1x8x72xf32> to vector<8x72xf32>
    %c3 = arith.constant 3 : index
    %c0_12 = arith.constant 0 : index
    %c0_13 = arith.constant 0 : index
    %29 = vector.load %arg1[%c3, %c0_12, %c0_13] : memref<4x8x90xf32, #tpu.memory_space<vmem>>, vector<1x8x72xf32>
    %30 = vector.shape_cast %29 : vector<1x8x72xf32> to vector<8x72xf32>
    %c2_14 = arith.constant 2 : index
    %c0_15 = arith.constant 0 : index
    %c1_16 = arith.constant 1 : index
    %31 = vector.load %arg1[%c2_14, %c0_15, %c1_16] : memref<4x8x90xf32, #tpu.memory_space<vmem>>, vector<1x8x72xf32>
    %32 = vector.shape_cast %31 : vector<1x8x72xf32> to vector<8x72xf32>
    %c0_17 = arith.constant 0 : index
    %c0_18 = arith.constant 0 : index
    %c9 = arith.constant 9 : index
    %33 = vector.load %arg1[%c0_17, %c0_18, %c9] : memref<4x8x90xf32, #tpu.memory_space<vmem>>, vector<1x8x72xf32>
    %34 = vector.shape_cast %33 : vector<1x8x72xf32> to vector<8x72xf32>
    %c1_19 = arith.constant 1 : index
    %c0_20 = arith.constant 0 : index
    %c9_21 = arith.constant 9 : index
    %35 = vector.load %arg1[%c1_19, %c0_20, %c9_21] : memref<4x8x90xf32, #tpu.memory_space<vmem>>, vector<1x8x72xf32>
    %36 = vector.shape_cast %35 : vector<1x8x72xf32> to vector<8x72xf32>
    %c0_22 = arith.constant 0 : index
    %c0_23 = arith.constant 0 : index
    %c10 = arith.constant 10 : index
    %37 = vector.load %arg1[%c0_22, %c0_23, %c10] : memref<4x8x90xf32, #tpu.memory_space<vmem>>, vector<1x8x72xf32>
    %38 = vector.shape_cast %37 : vector<1x8x72xf32> to vector<8x72xf32>
    %c0_24 = arith.constant 0 : index
    %c0_25 = arith.constant 0 : index
    %c0_26 = arith.constant 0 : index
    %c0_27 = arith.constant 0 : index
    %39 = vector.load %arg2[%c0_24, %c0_25, %c0_26, %c0_27] : memref<3x9x8x1xf32, #tpu.memory_space<vmem>>, vector<1x1x8x1xf32>
    %40 = vector.shape_cast %39 : vector<1x1x8x1xf32> to vector<8x1xf32>
    %41 = vector.broadcast %40 : vector<8x1xf32> to vector<8x72xf32>
    %42 = arith.mulf %22, %41 : vector<8x72xf32>
    %c0_28 = arith.constant 0 : index
    %c1_29 = arith.constant 1 : index
    %c0_30 = arith.constant 0 : index
    %c0_31 = arith.constant 0 : index
    %43 = vector.load %arg2[%c0_28, %c1_29, %c0_30, %c0_31] : memref<3x9x8x1xf32, #tpu.memory_space<vmem>>, vector<1x1x8x1xf32>
    %44 = vector.shape_cast %43 : vector<1x1x8x1xf32> to vector<8x1xf32>
    %45 = vector.broadcast %44 : vector<8x1xf32> to vector<8x72xf32>
    %46 = arith.mulf %24, %45 : vector<8x72xf32>
    %47 = arith.addf %42, %46 : vector<8x72xf32>
    %c0_32 = arith.constant 0 : index
    %c2_33 = arith.constant 2 : index
    %c0_34 = arith.constant 0 : index
    %c0_35 = arith.constant 0 : index
    %48 = vector.load %arg2[%c0_32, %c2_33, %c0_34, %c0_35] : memref<3x9x8x1xf32, #tpu.memory_space<vmem>>, vector<1x1x8x1xf32>
    %49 = vector.shape_cast %48 : vector<1x1x8x1xf32> to vector<8x1xf32>
    %50 = vector.broadcast %49 : vector<8x1xf32> to vector<8x72xf32>
    %51 = arith.mulf %26, %50 : vector<8x72xf32>
    %52 = arith.addf %47, %51 : vector<8x72xf32>
    %c0_36 = arith.constant 0 : index
    %c3_37 = arith.constant 3 : index
    %c0_38 = arith.constant 0 : index
    %c0_39 = arith.constant 0 : index
    %53 = vector.load %arg2[%c0_36, %c3_37, %c0_38, %c0_39] : memref<3x9x8x1xf32, #tpu.memory_space<vmem>>, vector<1x1x8x1xf32>
    %54 = vector.shape_cast %53 : vector<1x1x8x1xf32> to vector<8x1xf32>
    %55 = vector.broadcast %54 : vector<8x1xf32> to vector<8x72xf32>
    %56 = arith.mulf %28, %55 : vector<8x72xf32>
    %57 = arith.addf %52, %56 : vector<8x72xf32>
    %c0_40 = arith.constant 0 : index
    %c4 = arith.constant 4 : index
    %c0_41 = arith.constant 0 : index
    %c0_42 = arith.constant 0 : index
    %58 = vector.load %arg2[%c0_40, %c4, %c0_41, %c0_42] : memref<3x9x8x1xf32, #tpu.memory_space<vmem>>, vector<1x1x8x1xf32>
    %59 = vector.shape_cast %58 : vector<1x1x8x1xf32> to vector<8x1xf32>
    %60 = vector.broadcast %59 : vector<8x1xf32> to vector<8x72xf32>
    %61 = arith.mulf %30, %60 : vector<8x72xf32>
    %62 = arith.addf %57, %61 : vector<8x72xf32>
    %c0_43 = arith.constant 0 : index
    %c5 = arith.constant 5 : index
    %c0_44 = arith.constant 0 : index
    %c0_45 = arith.constant 0 : index
    %63 = vector.load %arg2[%c0_43, %c5, %c0_44, %c0_45] : memref<3x9x8x1xf32, #tpu.memory_space<vmem>>, vector<1x1x8x1xf32>
    %64 = vector.shape_cast %63 : vector<1x1x8x1xf32> to vector<8x1xf32>
    %65 = vector.broadcast %64 : vector<8x1xf32> to vector<8x72xf32>
    %66 = arith.mulf %32, %65 : vector<8x72xf32>
    %67 = arith.addf %62, %66 : vector<8x72xf32>
    %c0_46 = arith.constant 0 : index
    %c6 = arith.constant 6 : index
    %c0_47 = arith.constant 0 : index
    %c0_48 = arith.constant 0 : index
    %68 = vector.load %arg2[%c0_46, %c6, %c0_47, %c0_48] : memref<3x9x8x1xf32, #tpu.memory_space<vmem>>, vector<1x1x8x1xf32>
    %69 = vector.shape_cast %68 : vector<1x1x8x1xf32> to vector<8x1xf32>
    %70 = vector.broadcast %69 : vector<8x1xf32> to vector<8x72xf32>
    %71 = arith.mulf %34, %70 : vector<8x72xf32>
    %72 = arith.addf %67, %71 : vector<8x72xf32>
    %c0_49 = arith.constant 0 : index
    %c7 = arith.constant 7 : index
    %c0_50 = arith.constant 0 : index
    %c0_51 = arith.constant 0 : index
    %73 = vector.load %arg2[%c0_49, %c7, %c0_50, %c0_51] : memref<3x9x8x1xf32, #tpu.memory_space<vmem>>, vector<1x1x8x1xf32>
    %74 = vector.shape_cast %73 : vector<1x1x8x1xf32> to vector<8x1xf32>
    %75 = vector.broadcast %74 : vector<8x1xf32> to vector<8x72xf32>
    %76 = arith.mulf %36, %75 : vector<8x72xf32>
    %77 = arith.addf %72, %76 : vector<8x72xf32>
    %c0_52 = arith.constant 0 : index
    %c8 = arith.constant 8 : index
    %c0_53 = arith.constant 0 : index
    %c0_54 = arith.constant 0 : index
    %78 = vector.load %arg2[%c0_52, %c8, %c0_53, %c0_54] : memref<3x9x8x1xf32, #tpu.memory_space<vmem>>, vector<1x1x8x1xf32>
    %79 = vector.shape_cast %78 : vector<1x1x8x1xf32> to vector<8x1xf32>
    %80 = vector.broadcast %79 : vector<8x1xf32> to vector<8x72xf32>
    %81 = arith.mulf %38, %80 : vector<8x72xf32>
    %82 = arith.addf %77, %81 : vector<8x72xf32>
    %c0_55 = arith.constant 0 : index
    %c0_56 = arith.constant 0 : index
    %c0_57 = arith.constant 0 : index
    %83 = vector.load %arg3[%c0_55, %c0_56, %c0_57] : memref<3x8x1xf32, #tpu.memory_space<vmem>>, vector<1x8x1xf32>
    %84 = vector.shape_cast %83 : vector<1x8x1xf32> to vector<8x1xf32>
    %85 = vector.broadcast %84 : vector<8x1xf32> to vector<8x72xf32>
    %86 = arith.addf %82, %85 : vector<8x72xf32>
    %c0_58 = arith.constant 0 : index
    %c0_59 = arith.constant 0 : index
    %87 = vector.load %arg4[%c0_58, %c0_59] : memref<24x1xf32, #tpu.memory_space<vmem>>, vector<8x1xf32>
    %88 = vector.broadcast %87 : vector<8x1xf32> to vector<8x72xf32>
    %89 = arith.mulf %86, %88 : vector<8x72xf32>
    %c0_60 = arith.constant 0 : index
    %c0_61 = arith.constant 0 : index
    %90 = vector.load %arg5[%c0_60, %c0_61] : memref<24x1xf32, #tpu.memory_space<vmem>>, vector<8x1xf32>
    %91 = vector.broadcast %90 : vector<8x1xf32> to vector<8x72xf32>
    %92 = arith.addf %89, %91 : vector<8x72xf32>
    %cst = arith.constant 0.000000e+00 : f32
    %93 = vector.broadcast %cst : f32 to vector<8x72xf32>
    %94 = arith.maximumf %92, %93 : vector<8x72xf32>
    %c0_62 = arith.constant 0 : index
    %c0_63 = arith.constant 0 : index
    %95 = vector.load %arg6[%c0_62, %c0_63] : memref<32x8xf32, #tpu.memory_space<vmem>>, vector<8x8xf32>
    %cst_64 = arith.constant dense<0.000000e+00> : vector<8x72xf32>
    %96 = tpu.matmul %95, %94, %cst_64 {dimension_numbers = #tpu.dot_dimension_numbers<[1], [0], [0], [1], [0, 0, 1, 1], [], []>} : vector<8x8xf32>, vector<8x72xf32>, vector<8x72xf32> -> vector<8x72xf32>
    %c0_65 = arith.constant 0 : index
    %c0_66 = arith.constant 0 : index
    %97 = vector.load %arg7[%c0_65, %c0_66] : memref<32x1xf32, #tpu.memory_space<vmem>>, vector<8x1xf32>
    %98 = vector.broadcast %97 : vector<8x1xf32> to vector<8x72xf32>
    %99 = arith.addf %96, %98 : vector<8x72xf32>
    %100 = vector.broadcast %20 : vector<1x72xf32> to vector<8x72xf32>
    %101 = arith.mulf %99, %100 : vector<8x72xf32>
    %cst_67 = arith.constant dense<0.000000e+00> : vector<8xf32>
    %102 = vector.multi_reduction <add>, %101, %cst_67 [1] : vector<8x72xf32> to vector<8xf32>
    %103 = vector.shape_cast %102 : vector<8xf32> to vector<8x1xf32>
    %cst_68 = arith.constant 1.562500e-02 : f32
    %104 = vector.broadcast %cst_68 : f32 to vector<8x1xf32>
    %105 = arith.mulf %103, %104 : vector<8x1xf32>
    %106 = vector.broadcast %105 : vector<8x1xf32> to vector<8x72xf32>
    %107 = arith.subf %99, %106 : vector<8x72xf32>
    %108 = vector.broadcast %20 : vector<1x72xf32> to vector<8x72xf32>
    %109 = arith.mulf %107, %108 : vector<8x72xf32>
    %110 = arith.mulf %109, %109 : vector<8x72xf32>
    %cst_69 = arith.constant dense<0.000000e+00> : vector<8xf32>
    %111 = vector.multi_reduction <add>, %110, %cst_69 [1] : vector<8x72xf32> to vector<8xf32>
    %112 = vector.shape_cast %111 : vector<8xf32> to vector<8x1xf32>
    %113 = tpu.concatenate %103, %112 in 1 : vector<8x1xf32>, vector<8x1xf32> -> vector<8x2xf32>
    %c0_70 = arith.constant 0 : index
    %c0_71 = arith.constant 0 : index
    %c0_72 = arith.constant 0 : index
    %114 = vector.load %arg8[%c0_70, %c0_71, %c0_72] : memref<1x32x2xf32, #tpu.memory_space<vmem>>, vector<1x8x2xf32>
    %115 = vector.shape_cast %114 : vector<1x8x2xf32> to vector<8x2xf32>
    %116 = vector.shape_cast %113 : vector<8x2xf32> to vector<1x8x2xf32>
    tpu.vector_store %arg8[%c0_70, %c0_71, %c0_72], %116 {strides = array<i32>} : memref<1x32x2xf32, #tpu.memory_space<vmem>>, vector<1x8x2xf32>,
    %c1_73 = arith.constant 1 : index
    %c0_74 = arith.constant 0 : index
    %c0_75 = arith.constant 0 : index
    %c0_76 = arith.constant 0 : index
    %117 = vector.load %arg2[%c1_73, %c0_74, %c0_75, %c0_76] : memref<3x9x8x1xf32, #tpu.memory_space<vmem>>, vector<1x1x8x1xf32>
    %118 = vector.shape_cast %117 : vector<1x1x8x1xf32> to vector<8x1xf32>
    %119 = vector.broadcast %118 : vector<8x1xf32> to vector<8x72xf32>
    %120 = arith.mulf %22, %119 : vector<8x72xf32>
    %c1_77 = arith.constant 1 : index
    %c1_78 = arith.constant 1 : index
    %c0_79 = arith.constant 0 : index
    %c0_80 = arith.constant 0 : index
    %121 = vector.load %arg2[%c1_77, %c1_78, %c0_79, %c0_80] : memref<3x9x8x1xf32, #tpu.memory_space<vmem>>, vector<1x1x8x1xf32>
    %122 = vector.shape_cast %121 : vector<1x1x8x1xf32> to vector<8x1xf32>
    %123 = vector.broadcast %122 : vector<8x1xf32> to vector<8x72xf32>
    %124 = arith.mulf %24, %123 : vector<8x72xf32>
    %125 = arith.addf %120, %124 : vector<8x72xf32>
    %c1_81 = arith.constant 1 : index
    %c2_82 = arith.constant 2 : index
    %c0_83 = arith.constant 0 : index
    %c0_84 = arith.constant 0 : index
    %126 = vector.load %arg2[%c1_81, %c2_82, %c0_83, %c0_84] : memref<3x9x8x1xf32, #tpu.memory_space<vmem>>, vector<1x1x8x1xf32>
    %127 = vector.shape_cast %126 : vector<1x1x8x1xf32> to vector<8x1xf32>
    %128 = vector.broadcast %127 : vector<8x1xf32> to vector<8x72xf32>
    %129 = arith.mulf %26, %128 : vector<8x72xf32>
    %130 = arith.addf %125, %129 : vector<8x72xf32>
    %c1_85 = arith.constant 1 : index
    %c3_86 = arith.constant 3 : index
    %c0_87 = arith.constant 0 : index
    %c0_88 = arith.constant 0 : index
    %131 = vector.load %arg2[%c1_85, %c3_86, %c0_87, %c0_88] : memref<3x9x8x1xf32, #tpu.memory_space<vmem>>, vector<1x1x8x1xf32>
    %132 = vector.shape_cast %131 : vector<1x1x8x1xf32> to vector<8x1xf32>
    %133 = vector.broadcast %132 : vector<8x1xf32> to vector<8x72xf32>
    %134 = arith.mulf %28, %133 : vector<8x72xf32>
    %135 = arith.addf %130, %134 : vector<8x72xf32>
    %c1_89 = arith.constant 1 : index
    %c4_90 = arith.constant 4 : index
    %c0_91 = arith.constant 0 : index
    %c0_92 = arith.constant 0 : index
    %136 = vector.load %arg2[%c1_89, %c4_90, %c0_91, %c0_92] : memref<3x9x8x1xf32, #tpu.memory_space<vmem>>, vector<1x1x8x1xf32>
    %137 = vector.shape_cast %136 : vector<1x1x8x1xf32> to vector<8x1xf32>
    %138 = vector.broadcast %137 : vector<8x1xf32> to vector<8x72xf32>
    %139 = arith.mulf %30, %138 : vector<8x72xf32>
    %140 = arith.addf %135, %139 : vector<8x72xf32>
    %c1_93 = arith.constant 1 : index
    %c5_94 = arith.constant 5 : index
    %c0_95 = arith.constant 0 : index
    %c0_96 = arith.constant 0 : index
    %141 = vector.load %arg2[%c1_93, %c5_94, %c0_95, %c0_96] : memref<3x9x8x1xf32, #tpu.memory_space<vmem>>, vector<1x1x8x1xf32>
    %142 = vector.shape_cast %141 : vector<1x1x8x1xf32> to vector<8x1xf32>
    %143 = vector.broadcast %142 : vector<8x1xf32> to vector<8x72xf32>
    %144 = arith.mulf %32, %143 : vector<8x72xf32>
    %145 = arith.addf %140, %144 : vector<8x72xf32>
    %c1_97 = arith.constant 1 : index
    %c6_98 = arith.constant 6 : index
    %c0_99 = arith.constant 0 : index
    %c0_100 = arith.constant 0 : index
    %146 = vector.load %arg2[%c1_97, %c6_98, %c0_99, %c0_100] : memref<3x9x8x1xf32, #tpu.memory_space<vmem>>, vector<1x1x8x1xf32>
    %147 = vector.shape_cast %146 : vector<1x1x8x1xf32> to vector<8x1xf32>
    %148 = vector.broadcast %147 : vector<8x1xf32> to vector<8x72xf32>
    %149 = arith.mulf %34, %148 : vector<8x72xf32>
    %150 = arith.addf %145, %149 : vector<8x72xf32>
    %c1_101 = arith.constant 1 : index
    %c7_102 = arith.constant 7 : index
    %c0_103 = arith.constant 0 : index
    %c0_104 = arith.constant 0 : index
    %151 = vector.load %arg2[%c1_101, %c7_102, %c0_103, %c0_104] : memref<3x9x8x1xf32, #tpu.memory_space<vmem>>, vector<1x1x8x1xf32>
    %152 = vector.shape_cast %151 : vector<1x1x8x1xf32> to vector<8x1xf32>
    %153 = vector.broadcast %152 : vector<8x1xf32> to vector<8x72xf32>
    %154 = arith.mulf %36, %153 : vector<8x72xf32>
    %155 = arith.addf %150, %154 : vector<8x72xf32>
    %c1_105 = arith.constant 1 : index
    %c8_106 = arith.constant 8 : index
    %c0_107 = arith.constant 0 : index
    %c0_108 = arith.constant 0 : index
    %156 = vector.load %arg2[%c1_105, %c8_106, %c0_107, %c0_108] : memref<3x9x8x1xf32, #tpu.memory_space<vmem>>, vector<1x1x8x1xf32>
    %157 = vector.shape_cast %156 : vector<1x1x8x1xf32> to vector<8x1xf32>
    %158 = vector.broadcast %157 : vector<8x1xf32> to vector<8x72xf32>
    %159 = arith.mulf %38, %158 : vector<8x72xf32>
    %160 = arith.addf %155, %159 : vector<8x72xf32>
    %c1_109 = arith.constant 1 : index
    %c0_110 = arith.constant 0 : index
    %c0_111 = arith.constant 0 : index
    %161 = vector.load %arg3[%c1_109, %c0_110, %c0_111] : memref<3x8x1xf32, #tpu.memory_space<vmem>>, vector<1x8x1xf32>
    %162 = vector.shape_cast %161 : vector<1x8x1xf32> to vector<8x1xf32>
    %163 = vector.broadcast %162 : vector<8x1xf32> to vector<8x72xf32>
    %164 = arith.addf %160, %163 : vector<8x72xf32>
    %c8_112 = arith.constant 8 : index
    %c0_113 = arith.constant 0 : index
    %165 = vector.load %arg4[%c8_112, %c0_113] : memref<24x1xf32, #tpu.memory_space<vmem>>, vector<8x1xf32>
    %166 = vector.broadcast %165 : vector<8x1xf32> to vector<8x72xf32>
    %167 = arith.mulf %164, %166 : vector<8x72xf32>
    %c8_114 = arith.constant 8 : index
    %c0_115 = arith.constant 0 : index
    %168 = vector.load %arg5[%c8_114, %c0_115] : memref<24x1xf32, #tpu.memory_space<vmem>>, vector<8x1xf32>
    %169 = vector.broadcast %168 : vector<8x1xf32> to vector<8x72xf32>
    %170 = arith.addf %167, %169 : vector<8x72xf32>
    %cst_116 = arith.constant 0.000000e+00 : f32
    %171 = vector.broadcast %cst_116 : f32 to vector<8x72xf32>
    %172 = arith.maximumf %170, %171 : vector<8x72xf32>
    %c8_117 = arith.constant 8 : index
    %c0_118 = arith.constant 0 : index
    %173 = vector.load %arg6[%c8_117, %c0_118] : memref<32x8xf32, #tpu.memory_space<vmem>>, vector<16x8xf32>
    %cst_119 = arith.constant dense<0.000000e+00> : vector<16x72xf32>
    %174 = tpu.matmul %173, %172, %cst_119 {dimension_numbers = #tpu.dot_dimension_numbers<[1], [0], [0], [1], [0, 0, 1, 1], [], []>} : vector<16x8xf32>, vector<8x72xf32>, vector<16x72xf32> -> vector<16x72xf32>
    %c8_120 = arith.constant 8 : index
    %c0_121 = arith.constant 0 : index
    %175 = vector.load %arg7[%c8_120, %c0_121] : memref<32x1xf32, #tpu.memory_space<vmem>>, vector<16x1xf32>
    %176 = vector.broadcast %175 : vector<16x1xf32> to vector<16x72xf32>
    %177 = arith.addf %174, %176 : vector<16x72xf32>
    %178 = vector.broadcast %20 : vector<1x72xf32> to vector<16x72xf32>
    %179 = arith.mulf %177, %178 : vector<16x72xf32>
    %cst_122 = arith.constant dense<0.000000e+00> : vector<16xf32>
    %180 = vector.multi_reduction <add>, %179, %cst_122 [1] : vector<16x72xf32> to vector<16xf32>
    %181 = vector.shape_cast %180 : vector<16xf32> to vector<16x1xf32>
    %cst_123 = arith.constant 1.562500e-02 : f32
    %182 = vector.broadcast %cst_123 : f32 to vector<16x1xf32>
    %183 = arith.mulf %181, %182 : vector<16x1xf32>
    %184 = vector.broadcast %183 : vector<16x1xf32> to vector<16x72xf32>
    %185 = arith.subf %177, %184 : vector<16x72xf32>
    %186 = vector.broadcast %20 : vector<1x72xf32> to vector<16x72xf32>
    %187 = arith.mulf %185, %186 : vector<16x72xf32>
    %188 = arith.mulf %187, %187 : vector<16x72xf32>
    %cst_124 = arith.constant dense<0.000000e+00> : vector<16xf32>
    %189 = vector.multi_reduction <add>, %188, %cst_124 [1] : vector<16x72xf32> to vector<16xf32>
    %190 = vector.shape_cast %189 : vector<16xf32> to vector<16x1xf32>
    %191 = tpu.concatenate %181, %190 in 1 : vector<16x1xf32>, vector<16x1xf32> -> vector<16x2xf32>
    %c0_125 = arith.constant 0 : index
    %c8_126 = arith.constant 8 : index
    %c0_127 = arith.constant 0 : index
    %192 = vector.load %arg8[%c0_125, %c8_126, %c0_127] : memref<1x32x2xf32, #tpu.memory_space<vmem>>, vector<1x16x2xf32>
    %193 = vector.shape_cast %192 : vector<1x16x2xf32> to vector<16x2xf32>
    %194 = vector.shape_cast %191 : vector<16x2xf32> to vector<1x16x2xf32>
    tpu.vector_store %arg8[%c0_125, %c8_126, %c0_127], %194 {strides = array<i32>} : memref<1x32x2xf32, #tpu.memory_space<vmem>>, vector<1x16x2xf32>,
    %c2_128 = arith.constant 2 : index
    %c0_129 = arith.constant 0 : index
    %c0_130 = arith.constant 0 : index
    %c0_131 = arith.constant 0 : index
    %195 = vector.load %arg2[%c2_128, %c0_129, %c0_130, %c0_131] : memref<3x9x8x1xf32, #tpu.memory_space<vmem>>, vector<1x1x8x1xf32>
    %196 = vector.shape_cast %195 : vector<1x1x8x1xf32> to vector<8x1xf32>
    %197 = vector.broadcast %196 : vector<8x1xf32> to vector<8x72xf32>
    %198 = arith.mulf %22, %197 : vector<8x72xf32>
    %c2_132 = arith.constant 2 : index
    %c1_133 = arith.constant 1 : index
    %c0_134 = arith.constant 0 : index
    %c0_135 = arith.constant 0 : index
    %199 = vector.load %arg2[%c2_132, %c1_133, %c0_134, %c0_135] : memref<3x9x8x1xf32, #tpu.memory_space<vmem>>, vector<1x1x8x1xf32>
    %200 = vector.shape_cast %199 : vector<1x1x8x1xf32> to vector<8x1xf32>
    %201 = vector.broadcast %200 : vector<8x1xf32> to vector<8x72xf32>
    %202 = arith.mulf %24, %201 : vector<8x72xf32>
    %203 = arith.addf %198, %202 : vector<8x72xf32>
    %c2_136 = arith.constant 2 : index
    %c2_137 = arith.constant 2 : index
    %c0_138 = arith.constant 0 : index
    %c0_139 = arith.constant 0 : index
    %204 = vector.load %arg2[%c2_136, %c2_137, %c0_138, %c0_139] : memref<3x9x8x1xf32, #tpu.memory_space<vmem>>, vector<1x1x8x1xf32>
    %205 = vector.shape_cast %204 : vector<1x1x8x1xf32> to vector<8x1xf32>
    %206 = vector.broadcast %205 : vector<8x1xf32> to vector<8x72xf32>
    %207 = arith.mulf %26, %206 : vector<8x72xf32>
    %208 = arith.addf %203, %207 : vector<8x72xf32>
    %c2_140 = arith.constant 2 : index
    %c3_141 = arith.constant 3 : index
    %c0_142 = arith.constant 0 : index
    %c0_143 = arith.constant 0 : index
    %209 = vector.load %arg2[%c2_140, %c3_141, %c0_142, %c0_143] : memref<3x9x8x1xf32, #tpu.memory_space<vmem>>, vector<1x1x8x1xf32>
    %210 = vector.shape_cast %209 : vector<1x1x8x1xf32> to vector<8x1xf32>
    %211 = vector.broadcast %210 : vector<8x1xf32> to vector<8x72xf32>
    %212 = arith.mulf %28, %211 : vector<8x72xf32>
    %213 = arith.addf %208, %212 : vector<8x72xf32>
    %c2_144 = arith.constant 2 : index
    %c4_145 = arith.constant 4 : index
    %c0_146 = arith.constant 0 : index
    %c0_147 = arith.constant 0 : index
    %214 = vector.load %arg2[%c2_144, %c4_145, %c0_146, %c0_147] : memref<3x9x8x1xf32, #tpu.memory_space<vmem>>, vector<1x1x8x1xf32>
    %215 = vector.shape_cast %214 : vector<1x1x8x1xf32> to vector<8x1xf32>
    %216 = vector.broadcast %215 : vector<8x1xf32> to vector<8x72xf32>
    %217 = arith.mulf %30, %216 : vector<8x72xf32>
    %218 = arith.addf %213, %217 : vector<8x72xf32>
    %c2_148 = arith.constant 2 : index
    %c5_149 = arith.constant 5 : index
    %c0_150 = arith.constant 0 : index
    %c0_151 = arith.constant 0 : index
    %219 = vector.load %arg2[%c2_148, %c5_149, %c0_150, %c0_151] : memref<3x9x8x1xf32, #tpu.memory_space<vmem>>, vector<1x1x8x1xf32>
    %220 = vector.shape_cast %219 : vector<1x1x8x1xf32> to vector<8x1xf32>
    %221 = vector.broadcast %220 : vector<8x1xf32> to vector<8x72xf32>
    %222 = arith.mulf %32, %221 : vector<8x72xf32>
    %223 = arith.addf %218, %222 : vector<8x72xf32>
    %c2_152 = arith.constant 2 : index
    %c6_153 = arith.constant 6 : index
    %c0_154 = arith.constant 0 : index
    %c0_155 = arith.constant 0 : index
    %224 = vector.load %arg2[%c2_152, %c6_153, %c0_154, %c0_155] : memref<3x9x8x1xf32, #tpu.memory_space<vmem>>, vector<1x1x8x1xf32>
    %225 = vector.shape_cast %224 : vector<1x1x8x1xf32> to vector<8x1xf32>
    %226 = vector.broadcast %225 : vector<8x1xf32> to vector<8x72xf32>
    %227 = arith.mulf %34, %226 : vector<8x72xf32>
    %228 = arith.addf %223, %227 : vector<8x72xf32>
    %c2_156 = arith.constant 2 : index
    %c7_157 = arith.constant 7 : index
    %c0_158 = arith.constant 0 : index
    %c0_159 = arith.constant 0 : index
    %229 = vector.load %arg2[%c2_156, %c7_157, %c0_158, %c0_159] : memref<3x9x8x1xf32, #tpu.memory_space<vmem>>, vector<1x1x8x1xf32>
    %230 = vector.shape_cast %229 : vector<1x1x8x1xf32> to vector<8x1xf32>
    %231 = vector.broadcast %230 : vector<8x1xf32> to vector<8x72xf32>
    %232 = arith.mulf %36, %231 : vector<8x72xf32>
    %233 = arith.addf %228, %232 : vector<8x72xf32>
    %c2_160 = arith.constant 2 : index
    %c8_161 = arith.constant 8 : index
    %c0_162 = arith.constant 0 : index
    %c0_163 = arith.constant 0 : index
    %234 = vector.load %arg2[%c2_160, %c8_161, %c0_162, %c0_163] : memref<3x9x8x1xf32, #tpu.memory_space<vmem>>, vector<1x1x8x1xf32>
    %235 = vector.shape_cast %234 : vector<1x1x8x1xf32> to vector<8x1xf32>
    %236 = vector.broadcast %235 : vector<8x1xf32> to vector<8x72xf32>
    %237 = arith.mulf %38, %236 : vector<8x72xf32>
    %238 = arith.addf %233, %237 : vector<8x72xf32>
    %c2_164 = arith.constant 2 : index
    %c0_165 = arith.constant 0 : index
    %c0_166 = arith.constant 0 : index
    %239 = vector.load %arg3[%c2_164, %c0_165, %c0_166] : memref<3x8x1xf32, #tpu.memory_space<vmem>>, vector<1x8x1xf32>
    %240 = vector.shape_cast %239 : vector<1x8x1xf32> to vector<8x1xf32>
    %241 = vector.broadcast %240 : vector<8x1xf32> to vector<8x72xf32>
    %242 = arith.addf %238, %241 : vector<8x72xf32>
    %c16 = arith.constant 16 : index
    %c0_167 = arith.constant 0 : index
    %243 = vector.load %arg4[%c16, %c0_167] : memref<24x1xf32, #tpu.memory_space<vmem>>, vector<8x1xf32>
    %244 = vector.broadcast %243 : vector<8x1xf32> to vector<8x72xf32>
    %245 = arith.mulf %242, %244 : vector<8x72xf32>
    %c16_168 = arith.constant 16 : index
    %c0_169 = arith.constant 0 : index
    %246 = vector.load %arg5[%c16_168, %c0_169] : memref<24x1xf32, #tpu.memory_space<vmem>>, vector<8x1xf32>
    %247 = vector.broadcast %246 : vector<8x1xf32> to vector<8x72xf32>
    %248 = arith.addf %245, %247 : vector<8x72xf32>
    %cst_170 = arith.constant 0.000000e+00 : f32
    %249 = vector.broadcast %cst_170 : f32 to vector<8x72xf32>
    %250 = arith.maximumf %248, %249 : vector<8x72xf32>
    %c24 = arith.constant 24 : index
    %c0_171 = arith.constant 0 : index
    %251 = vector.load %arg6[%c24, %c0_171] : memref<32x8xf32, #tpu.memory_space<vmem>>, vector<8x8xf32>
    %cst_172 = arith.constant dense<0.000000e+00> : vector<8x72xf32>
    %252 = tpu.matmul %251, %250, %cst_172 {dimension_numbers = #tpu.dot_dimension_numbers<[1], [0], [0], [1], [0, 0, 1, 1], [], []>} : vector<8x8xf32>, vector<8x72xf32>, vector<8x72xf32> -> vector<8x72xf32>
    %c24_173 = arith.constant 24 : index
    %c0_174 = arith.constant 0 : index
    %253 = vector.load %arg7[%c24_173, %c0_174] : memref<32x1xf32, #tpu.memory_space<vmem>>, vector<8x1xf32>
    %254 = vector.broadcast %253 : vector<8x1xf32> to vector<8x72xf32>
    %255 = arith.addf %252, %254 : vector<8x72xf32>
    %256 = vector.broadcast %20 : vector<1x72xf32> to vector<8x72xf32>
    %257 = arith.mulf %255, %256 : vector<8x72xf32>
    %cst_175 = arith.constant dense<0.000000e+00> : vector<8xf32>
    %258 = vector.multi_reduction <add>, %257, %cst_175 [1] : vector<8x72xf32> to vector<8xf32>
    %259 = vector.shape_cast %258 : vector<8xf32> to vector<8x1xf32>
    %cst_176 = arith.constant 1.562500e-02 : f32
    %260 = vector.broadcast %cst_176 : f32 to vector<8x1xf32>
    %261 = arith.mulf %259, %260 : vector<8x1xf32>
    %262 = vector.broadcast %261 : vector<8x1xf32> to vector<8x72xf32>
    %263 = arith.subf %255, %262 : vector<8x72xf32>
    %264 = vector.broadcast %20 : vector<1x72xf32> to vector<8x72xf32>
    %265 = arith.mulf %263, %264 : vector<8x72xf32>
    %266 = arith.mulf %265, %265 : vector<8x72xf32>
    %cst_177 = arith.constant dense<0.000000e+00> : vector<8xf32>
    %267 = vector.multi_reduction <add>, %266, %cst_177 [1] : vector<8x72xf32> to vector<8xf32>
    %268 = vector.shape_cast %267 : vector<8xf32> to vector<8x1xf32>
    %269 = tpu.concatenate %259, %268 in 1 : vector<8x1xf32>, vector<8x1xf32> -> vector<8x2xf32>
    %c0_178 = arith.constant 0 : index
    %c24_179 = arith.constant 24 : index
    %c0_180 = arith.constant 0 : index
    %270 = vector.load %arg8[%c0_178, %c24_179, %c0_180] : memref<1x32x2xf32, #tpu.memory_space<vmem>>, vector<1x8x2xf32>
    %271 = vector.shape_cast %270 : vector<1x8x2xf32> to vector<8x2xf32>
    %272 = vector.shape_cast %269 : vector<8x2xf32> to vector<1x8x2xf32>
    tpu.vector_store %arg8[%c0_178, %c24_179, %c0_180], %272 {strides = array<i32>} : memref<1x32x2xf32, #tpu.memory_space<vmem>>, vector<1x8x2xf32>,
    return
  }
  func.func @transform_0(%arg0: i32) -> (i32, i32, i32) {
    %c0_i32 = arith.constant 0 : i32
    %c0_i32_0 = arith.constant 0 : i32
    %c0_i32_1 = arith.constant 0 : i32
    return %arg0, %c0_i32, %c0_i32_0 : i32, i32, i32
  }
  func.func @transform_1(%arg0: i32) -> (i32, i32, i32, i32) {
    %c0_i32 = arith.constant 0 : i32
    %c0_i32_0 = arith.constant 0 : i32
    %c0_i32_1 = arith.constant 0 : i32
    %c0_i32_2 = arith.constant 0 : i32
    %c0_i32_3 = arith.constant 0 : i32
    return %c0_i32, %c0_i32_0, %c0_i32_1, %c0_i32_2 : i32, i32, i32, i32
  }
  func.func @transform_2(%arg0: i32) -> (i32, i32, i32) {
    %c0_i32 = arith.constant 0 : i32
    %c0_i32_0 = arith.constant 0 : i32
    %c0_i32_1 = arith.constant 0 : i32
    %c0_i32_2 = arith.constant 0 : i32
    return %c0_i32, %c0_i32_0, %c0_i32_1 : i32, i32, i32
  }
  func.func @transform_3(%arg0: i32) -> (i32, i32) {
    %c0_i32 = arith.constant 0 : i32
    %c0_i32_0 = arith.constant 0 : i32
    %c0_i32_1 = arith.constant 0 : i32
    return %c0_i32, %c0_i32_0 : i32, i32
  }
  func.func @transform_4(%arg0: i32) -> (i32, i32) {
    %c0_i32 = arith.constant 0 : i32
    %c0_i32_0 = arith.constant 0 : i32
    %c0_i32_1 = arith.constant 0 : i32
    return %c0_i32, %c0_i32_0 : i32, i32
  }
  func.func @transform_5(%arg0: i32) -> (i32, i32) {
    %c0_i32 = arith.constant 0 : i32
    %c0_i32_0 = arith.constant 0 : i32
    %c0_i32_1 = arith.constant 0 : i32
    return %c0_i32, %c0_i32_0 : i32, i32
  }
  func.func @transform_6(%arg0: i32) -> (i32, i32) {
    %c0_i32 = arith.constant 0 : i32
    %c0_i32_0 = arith.constant 0 : i32
    %c0_i32_1 = arith.constant 0 : i32
    return %c0_i32, %c0_i32_0 : i32, i32
  }
  func.func @transform_7(%arg0: i32) -> (i32, i32, i32) {
    %c0_i32 = arith.constant 0 : i32
    %c0_i32_0 = arith.constant 0 : i32
    %c0_i32_1 = arith.constant 0 : i32
    return %arg0, %c0_i32, %c0_i32_0 : i32, i32, i32
  }
}

module attributes {stable_mosaic.version = 11 : i64} {
  func.func @_out_kernel(%arg0: i32, %arg1: memref<4x8x90xf32, #tpu.memory_space<vmem>>, %arg2: memref<3x9x8x1xf32, #tpu.memory_space<vmem>>, %arg3: memref<3x8x1xf32, #tpu.memory_space<vmem>>, %arg4: memref<24x1xf32, #tpu.memory_space<vmem>>, %arg5: memref<24x1xf32, #tpu.memory_space<vmem>>, %arg6: memref<32x8xf32, #tpu.memory_space<vmem>>, %arg7: memref<32x1xf32, #tpu.memory_space<vmem>>, %arg8: memref<32x1xf32, #tpu.memory_space<vmem>>, %arg9: memref<32x1xf32, #tpu.memory_space<vmem>>, %arg10: memref<1x32x8x8xf32, #tpu.memory_space<vmem>>) attributes {dimension_semantics = [#tpu.dimension_semantics<parallel>], iteration_bounds = array<i64: 2>, scalar_prefetch = 0 : i64, scratch_operands = 0 : i64, tpu.core_type = #tpu.core_type<tc>, window_params = [{transform_indices = @transform_0, window_bounds = array<i64: 4, 8, 90>}, {pipeline_mode = #tpu.pipeline_mode<synchronous>, transform_indices = @transform_1, window_bounds = array<i64: 3, 9, 8, 1>}, {pipeline_mode = #tpu.pipeline_mode<synchronous>, transform_indices = @transform_2, window_bounds = array<i64: 3, 8, 1>}, {pipeline_mode = #tpu.pipeline_mode<synchronous>, transform_indices = @transform_3, window_bounds = array<i64: 24, 1>}, {pipeline_mode = #tpu.pipeline_mode<synchronous>, transform_indices = @transform_4, window_bounds = array<i64: 24, 1>}, {pipeline_mode = #tpu.pipeline_mode<synchronous>, transform_indices = @transform_5, window_bounds = array<i64: 32, 8>}, {pipeline_mode = #tpu.pipeline_mode<synchronous>, transform_indices = @transform_6, window_bounds = array<i64: 32, 1>}, {pipeline_mode = #tpu.pipeline_mode<synchronous>, transform_indices = @transform_7, window_bounds = array<i64: 32, 1>}, {pipeline_mode = #tpu.pipeline_mode<synchronous>, transform_indices = @transform_8, window_bounds = array<i64: 32, 1>}, {transform_indices = @transform_9, window_bounds = array<i64: 1, 32, 8, 8>}]} {
    %c0 = arith.constant 0 : index
    %c0_0 = arith.constant 0 : index
    %c0_1 = arith.constant 0 : index
    %0 = vector.load %arg1[%c0, %c0_0, %c0_1] : memref<4x8x90xf32, #tpu.memory_space<vmem>>, vector<1x8x72xf32>
    %1 = vector.shape_cast %0 : vector<1x8x72xf32> to vector<8x72xf32>
    %c1 = arith.constant 1 : index
    %c0_2 = arith.constant 0 : index
    %c0_3 = arith.constant 0 : index
    %2 = vector.load %arg1[%c1, %c0_2, %c0_3] : memref<4x8x90xf32, #tpu.memory_space<vmem>>, vector<1x8x72xf32>
    %3 = vector.shape_cast %2 : vector<1x8x72xf32> to vector<8x72xf32>
    %c0_4 = arith.constant 0 : index
    %c0_5 = arith.constant 0 : index
    %c1_6 = arith.constant 1 : index
    %4 = vector.load %arg1[%c0_4, %c0_5, %c1_6] : memref<4x8x90xf32, #tpu.memory_space<vmem>>, vector<1x8x72xf32>
    %5 = vector.shape_cast %4 : vector<1x8x72xf32> to vector<8x72xf32>
    %c2 = arith.constant 2 : index
    %c0_7 = arith.constant 0 : index
    %c0_8 = arith.constant 0 : index
    %6 = vector.load %arg1[%c2, %c0_7, %c0_8] : memref<4x8x90xf32, #tpu.memory_space<vmem>>, vector<1x8x72xf32>
    %7 = vector.shape_cast %6 : vector<1x8x72xf32> to vector<8x72xf32>
    %c3 = arith.constant 3 : index
    %c0_9 = arith.constant 0 : index
    %c0_10 = arith.constant 0 : index
    %8 = vector.load %arg1[%c3, %c0_9, %c0_10] : memref<4x8x90xf32, #tpu.memory_space<vmem>>, vector<1x8x72xf32>
    %9 = vector.shape_cast %8 : vector<1x8x72xf32> to vector<8x72xf32>
    %c2_11 = arith.constant 2 : index
    %c0_12 = arith.constant 0 : index
    %c1_13 = arith.constant 1 : index
    %10 = vector.load %arg1[%c2_11, %c0_12, %c1_13] : memref<4x8x90xf32, #tpu.memory_space<vmem>>, vector<1x8x72xf32>
    %11 = vector.shape_cast %10 : vector<1x8x72xf32> to vector<8x72xf32>
    %c0_14 = arith.constant 0 : index
    %c0_15 = arith.constant 0 : index
    %c9 = arith.constant 9 : index
    %12 = vector.load %arg1[%c0_14, %c0_15, %c9] : memref<4x8x90xf32, #tpu.memory_space<vmem>>, vector<1x8x72xf32>
    %13 = vector.shape_cast %12 : vector<1x8x72xf32> to vector<8x72xf32>
    %c1_16 = arith.constant 1 : index
    %c0_17 = arith.constant 0 : index
    %c9_18 = arith.constant 9 : index
    %14 = vector.load %arg1[%c1_16, %c0_17, %c9_18] : memref<4x8x90xf32, #tpu.memory_space<vmem>>, vector<1x8x72xf32>
    %15 = vector.shape_cast %14 : vector<1x8x72xf32> to vector<8x72xf32>
    %c0_19 = arith.constant 0 : index
    %c0_20 = arith.constant 0 : index
    %c10 = arith.constant 10 : index
    %16 = vector.load %arg1[%c0_19, %c0_20, %c10] : memref<4x8x90xf32, #tpu.memory_space<vmem>>, vector<1x8x72xf32>
    %17 = vector.shape_cast %16 : vector<1x8x72xf32> to vector<8x72xf32>
    %c0_21 = arith.constant 0 : index
    %c0_22 = arith.constant 0 : index
    %c0_23 = arith.constant 0 : index
    %c0_24 = arith.constant 0 : index
    %18 = vector.load %arg2[%c0_21, %c0_22, %c0_23, %c0_24] : memref<3x9x8x1xf32, #tpu.memory_space<vmem>>, vector<1x1x8x1xf32>
    %19 = vector.shape_cast %18 : vector<1x1x8x1xf32> to vector<8x1xf32>
    %20 = vector.broadcast %19 : vector<8x1xf32> to vector<8x72xf32>
    %21 = arith.mulf %1, %20 : vector<8x72xf32>
    %c0_25 = arith.constant 0 : index
    %c1_26 = arith.constant 1 : index
    %c0_27 = arith.constant 0 : index
    %c0_28 = arith.constant 0 : index
    %22 = vector.load %arg2[%c0_25, %c1_26, %c0_27, %c0_28] : memref<3x9x8x1xf32, #tpu.memory_space<vmem>>, vector<1x1x8x1xf32>
    %23 = vector.shape_cast %22 : vector<1x1x8x1xf32> to vector<8x1xf32>
    %24 = vector.broadcast %23 : vector<8x1xf32> to vector<8x72xf32>
    %25 = arith.mulf %3, %24 : vector<8x72xf32>
    %26 = arith.addf %21, %25 : vector<8x72xf32>
    %c0_29 = arith.constant 0 : index
    %c2_30 = arith.constant 2 : index
    %c0_31 = arith.constant 0 : index
    %c0_32 = arith.constant 0 : index
    %27 = vector.load %arg2[%c0_29, %c2_30, %c0_31, %c0_32] : memref<3x9x8x1xf32, #tpu.memory_space<vmem>>, vector<1x1x8x1xf32>
    %28 = vector.shape_cast %27 : vector<1x1x8x1xf32> to vector<8x1xf32>
    %29 = vector.broadcast %28 : vector<8x1xf32> to vector<8x72xf32>
    %30 = arith.mulf %5, %29 : vector<8x72xf32>
    %31 = arith.addf %26, %30 : vector<8x72xf32>
    %c0_33 = arith.constant 0 : index
    %c3_34 = arith.constant 3 : index
    %c0_35 = arith.constant 0 : index
    %c0_36 = arith.constant 0 : index
    %32 = vector.load %arg2[%c0_33, %c3_34, %c0_35, %c0_36] : memref<3x9x8x1xf32, #tpu.memory_space<vmem>>, vector<1x1x8x1xf32>
    %33 = vector.shape_cast %32 : vector<1x1x8x1xf32> to vector<8x1xf32>
    %34 = vector.broadcast %33 : vector<8x1xf32> to vector<8x72xf32>
    %35 = arith.mulf %7, %34 : vector<8x72xf32>
    %36 = arith.addf %31, %35 : vector<8x72xf32>
    %c0_37 = arith.constant 0 : index
    %c4 = arith.constant 4 : index
    %c0_38 = arith.constant 0 : index
    %c0_39 = arith.constant 0 : index
    %37 = vector.load %arg2[%c0_37, %c4, %c0_38, %c0_39] : memref<3x9x8x1xf32, #tpu.memory_space<vmem>>, vector<1x1x8x1xf32>
    %38 = vector.shape_cast %37 : vector<1x1x8x1xf32> to vector<8x1xf32>
    %39 = vector.broadcast %38 : vector<8x1xf32> to vector<8x72xf32>
    %40 = arith.mulf %9, %39 : vector<8x72xf32>
    %41 = arith.addf %36, %40 : vector<8x72xf32>
    %c0_40 = arith.constant 0 : index
    %c5 = arith.constant 5 : index
    %c0_41 = arith.constant 0 : index
    %c0_42 = arith.constant 0 : index
    %42 = vector.load %arg2[%c0_40, %c5, %c0_41, %c0_42] : memref<3x9x8x1xf32, #tpu.memory_space<vmem>>, vector<1x1x8x1xf32>
    %43 = vector.shape_cast %42 : vector<1x1x8x1xf32> to vector<8x1xf32>
    %44 = vector.broadcast %43 : vector<8x1xf32> to vector<8x72xf32>
    %45 = arith.mulf %11, %44 : vector<8x72xf32>
    %46 = arith.addf %41, %45 : vector<8x72xf32>
    %c0_43 = arith.constant 0 : index
    %c6 = arith.constant 6 : index
    %c0_44 = arith.constant 0 : index
    %c0_45 = arith.constant 0 : index
    %47 = vector.load %arg2[%c0_43, %c6, %c0_44, %c0_45] : memref<3x9x8x1xf32, #tpu.memory_space<vmem>>, vector<1x1x8x1xf32>
    %48 = vector.shape_cast %47 : vector<1x1x8x1xf32> to vector<8x1xf32>
    %49 = vector.broadcast %48 : vector<8x1xf32> to vector<8x72xf32>
    %50 = arith.mulf %13, %49 : vector<8x72xf32>
    %51 = arith.addf %46, %50 : vector<8x72xf32>
    %c0_46 = arith.constant 0 : index
    %c7 = arith.constant 7 : index
    %c0_47 = arith.constant 0 : index
    %c0_48 = arith.constant 0 : index
    %52 = vector.load %arg2[%c0_46, %c7, %c0_47, %c0_48] : memref<3x9x8x1xf32, #tpu.memory_space<vmem>>, vector<1x1x8x1xf32>
    %53 = vector.shape_cast %52 : vector<1x1x8x1xf32> to vector<8x1xf32>
    %54 = vector.broadcast %53 : vector<8x1xf32> to vector<8x72xf32>
    %55 = arith.mulf %15, %54 : vector<8x72xf32>
    %56 = arith.addf %51, %55 : vector<8x72xf32>
    %c0_49 = arith.constant 0 : index
    %c8 = arith.constant 8 : index
    %c0_50 = arith.constant 0 : index
    %c0_51 = arith.constant 0 : index
    %57 = vector.load %arg2[%c0_49, %c8, %c0_50, %c0_51] : memref<3x9x8x1xf32, #tpu.memory_space<vmem>>, vector<1x1x8x1xf32>
    %58 = vector.shape_cast %57 : vector<1x1x8x1xf32> to vector<8x1xf32>
    %59 = vector.broadcast %58 : vector<8x1xf32> to vector<8x72xf32>
    %60 = arith.mulf %17, %59 : vector<8x72xf32>
    %61 = arith.addf %56, %60 : vector<8x72xf32>
    %c0_52 = arith.constant 0 : index
    %c0_53 = arith.constant 0 : index
    %c0_54 = arith.constant 0 : index
    %62 = vector.load %arg3[%c0_52, %c0_53, %c0_54] : memref<3x8x1xf32, #tpu.memory_space<vmem>>, vector<1x8x1xf32>
    %63 = vector.shape_cast %62 : vector<1x8x1xf32> to vector<8x1xf32>
    %64 = vector.broadcast %63 : vector<8x1xf32> to vector<8x72xf32>
    %65 = arith.addf %61, %64 : vector<8x72xf32>
    %c0_55 = arith.constant 0 : index
    %c0_56 = arith.constant 0 : index
    %66 = vector.load %arg4[%c0_55, %c0_56] : memref<24x1xf32, #tpu.memory_space<vmem>>, vector<8x1xf32>
    %67 = vector.broadcast %66 : vector<8x1xf32> to vector<8x72xf32>
    %68 = arith.mulf %65, %67 : vector<8x72xf32>
    %c0_57 = arith.constant 0 : index
    %c0_58 = arith.constant 0 : index
    %69 = vector.load %arg5[%c0_57, %c0_58] : memref<24x1xf32, #tpu.memory_space<vmem>>, vector<8x1xf32>
    %70 = vector.broadcast %69 : vector<8x1xf32> to vector<8x72xf32>
    %71 = arith.addf %68, %70 : vector<8x72xf32>
    %cst = arith.constant 0.000000e+00 : f32
    %72 = vector.broadcast %cst : f32 to vector<8x72xf32>
    %73 = arith.maximumf %71, %72 : vector<8x72xf32>
    %c0_59 = arith.constant 0 : index
    %c0_60 = arith.constant 0 : index
    %74 = vector.load %arg6[%c0_59, %c0_60] : memref<32x8xf32, #tpu.memory_space<vmem>>, vector<8x8xf32>
    %cst_61 = arith.constant dense<0.000000e+00> : vector<8x72xf32>
    %75 = tpu.matmul %74, %73, %cst_61 {dimension_numbers = #tpu.dot_dimension_numbers<[1], [0], [0], [1], [0, 0, 1, 1], [], []>} : vector<8x8xf32>, vector<8x72xf32>, vector<8x72xf32> -> vector<8x72xf32>
    %c0_62 = arith.constant 0 : index
    %c0_63 = arith.constant 0 : index
    %76 = vector.load %arg7[%c0_62, %c0_63] : memref<32x1xf32, #tpu.memory_space<vmem>>, vector<8x1xf32>
    %77 = vector.broadcast %76 : vector<8x1xf32> to vector<8x72xf32>
    %78 = arith.addf %75, %77 : vector<8x72xf32>
    %c0_64 = arith.constant 0 : index
    %c0_65 = arith.constant 0 : index
    %79 = vector.load %arg8[%c0_64, %c0_65] : memref<32x1xf32, #tpu.memory_space<vmem>>, vector<8x1xf32>
    %80 = vector.broadcast %79 : vector<8x1xf32> to vector<8x72xf32>
    %81 = arith.mulf %78, %80 : vector<8x72xf32>
    %c0_66 = arith.constant 0 : index
    %c0_67 = arith.constant 0 : index
    %82 = vector.load %arg9[%c0_66, %c0_67] : memref<32x1xf32, #tpu.memory_space<vmem>>, vector<8x1xf32>
    %83 = vector.broadcast %82 : vector<8x1xf32> to vector<8x72xf32>
    %84 = arith.addf %81, %83 : vector<8x72xf32>
    %cst_68 = arith.constant 0.000000e+00 : f32
    %85 = vector.broadcast %cst_68 : f32 to vector<8x72xf32>
    %86 = arith.maximumf %84, %85 : vector<8x72xf32>
    %87 = vector.extract_strided_slice %86 {offsets = [0, 0], sizes = [8, 8], strides = [1, 1]} : vector<8x72xf32> to vector<8x8xf32>
    %c0_69 = arith.constant 0 : index
    %c0_70 = arith.constant 0 : index
    %c0_71 = arith.constant 0 : index
    %c0_72 = arith.constant 0 : index
    %88 = vector.load %arg10[%c0_69, %c0_70, %c0_71, %c0_72] : memref<1x32x8x8xf32, #tpu.memory_space<vmem>>, vector<1x8x1x8xf32>
    %89 = vector.shape_cast %88 : vector<1x8x1x8xf32> to vector<8x8xf32>
    %90 = vector.shape_cast %87 : vector<8x8xf32> to vector<1x8x1x8xf32>
    tpu.vector_store %arg10[%c0_69, %c0_70, %c0_71, %c0_72], %90 {strides = array<i32>} : memref<1x32x8x8xf32, #tpu.memory_space<vmem>>, vector<1x8x1x8xf32>,
    %91 = vector.extract_strided_slice %86 {offsets = [0, 9], sizes = [8, 8], strides = [1, 1]} : vector<8x72xf32> to vector<8x8xf32>
    %c0_73 = arith.constant 0 : index
    %c0_74 = arith.constant 0 : index
    %c1_75 = arith.constant 1 : index
    %c0_76 = arith.constant 0 : index
    %92 = vector.load %arg10[%c0_73, %c0_74, %c1_75, %c0_76] : memref<1x32x8x8xf32, #tpu.memory_space<vmem>>, vector<1x8x1x8xf32>
    %93 = vector.shape_cast %92 : vector<1x8x1x8xf32> to vector<8x8xf32>
    %94 = vector.shape_cast %91 : vector<8x8xf32> to vector<1x8x1x8xf32>
    tpu.vector_store %arg10[%c0_73, %c0_74, %c1_75, %c0_76], %94 {strides = array<i32>} : memref<1x32x8x8xf32, #tpu.memory_space<vmem>>, vector<1x8x1x8xf32>,
    %95 = vector.extract_strided_slice %86 {offsets = [0, 18], sizes = [8, 8], strides = [1, 1]} : vector<8x72xf32> to vector<8x8xf32>
    %c0_77 = arith.constant 0 : index
    %c0_78 = arith.constant 0 : index
    %c2_79 = arith.constant 2 : index
    %c0_80 = arith.constant 0 : index
    %96 = vector.load %arg10[%c0_77, %c0_78, %c2_79, %c0_80] : memref<1x32x8x8xf32, #tpu.memory_space<vmem>>, vector<1x8x1x8xf32>
    %97 = vector.shape_cast %96 : vector<1x8x1x8xf32> to vector<8x8xf32>
    %98 = vector.shape_cast %95 : vector<8x8xf32> to vector<1x8x1x8xf32>
    tpu.vector_store %arg10[%c0_77, %c0_78, %c2_79, %c0_80], %98 {strides = array<i32>} : memref<1x32x8x8xf32, #tpu.memory_space<vmem>>, vector<1x8x1x8xf32>,
    %99 = vector.extract_strided_slice %86 {offsets = [0, 27], sizes = [8, 8], strides = [1, 1]} : vector<8x72xf32> to vector<8x8xf32>
    %c0_81 = arith.constant 0 : index
    %c0_82 = arith.constant 0 : index
    %c3_83 = arith.constant 3 : index
    %c0_84 = arith.constant 0 : index
    %100 = vector.load %arg10[%c0_81, %c0_82, %c3_83, %c0_84] : memref<1x32x8x8xf32, #tpu.memory_space<vmem>>, vector<1x8x1x8xf32>
    %101 = vector.shape_cast %100 : vector<1x8x1x8xf32> to vector<8x8xf32>
    %102 = vector.shape_cast %99 : vector<8x8xf32> to vector<1x8x1x8xf32>
    tpu.vector_store %arg10[%c0_81, %c0_82, %c3_83, %c0_84], %102 {strides = array<i32>} : memref<1x32x8x8xf32, #tpu.memory_space<vmem>>, vector<1x8x1x8xf32>,
    %103 = vector.extract_strided_slice %86 {offsets = [0, 36], sizes = [8, 8], strides = [1, 1]} : vector<8x72xf32> to vector<8x8xf32>
    %c0_85 = arith.constant 0 : index
    %c0_86 = arith.constant 0 : index
    %c4_87 = arith.constant 4 : index
    %c0_88 = arith.constant 0 : index
    %104 = vector.load %arg10[%c0_85, %c0_86, %c4_87, %c0_88] : memref<1x32x8x8xf32, #tpu.memory_space<vmem>>, vector<1x8x1x8xf32>
    %105 = vector.shape_cast %104 : vector<1x8x1x8xf32> to vector<8x8xf32>
    %106 = vector.shape_cast %103 : vector<8x8xf32> to vector<1x8x1x8xf32>
    tpu.vector_store %arg10[%c0_85, %c0_86, %c4_87, %c0_88], %106 {strides = array<i32>} : memref<1x32x8x8xf32, #tpu.memory_space<vmem>>, vector<1x8x1x8xf32>,
    %107 = vector.extract_strided_slice %86 {offsets = [0, 45], sizes = [8, 8], strides = [1, 1]} : vector<8x72xf32> to vector<8x8xf32>
    %c0_89 = arith.constant 0 : index
    %c0_90 = arith.constant 0 : index
    %c5_91 = arith.constant 5 : index
    %c0_92 = arith.constant 0 : index
    %108 = vector.load %arg10[%c0_89, %c0_90, %c5_91, %c0_92] : memref<1x32x8x8xf32, #tpu.memory_space<vmem>>, vector<1x8x1x8xf32>
    %109 = vector.shape_cast %108 : vector<1x8x1x8xf32> to vector<8x8xf32>
    %110 = vector.shape_cast %107 : vector<8x8xf32> to vector<1x8x1x8xf32>
    tpu.vector_store %arg10[%c0_89, %c0_90, %c5_91, %c0_92], %110 {strides = array<i32>} : memref<1x32x8x8xf32, #tpu.memory_space<vmem>>, vector<1x8x1x8xf32>,
    %111 = vector.extract_strided_slice %86 {offsets = [0, 54], sizes = [8, 8], strides = [1, 1]} : vector<8x72xf32> to vector<8x8xf32>
    %c0_93 = arith.constant 0 : index
    %c0_94 = arith.constant 0 : index
    %c6_95 = arith.constant 6 : index
    %c0_96 = arith.constant 0 : index
    %112 = vector.load %arg10[%c0_93, %c0_94, %c6_95, %c0_96] : memref<1x32x8x8xf32, #tpu.memory_space<vmem>>, vector<1x8x1x8xf32>
    %113 = vector.shape_cast %112 : vector<1x8x1x8xf32> to vector<8x8xf32>
    %114 = vector.shape_cast %111 : vector<8x8xf32> to vector<1x8x1x8xf32>
    tpu.vector_store %arg10[%c0_93, %c0_94, %c6_95, %c0_96], %114 {strides = array<i32>} : memref<1x32x8x8xf32, #tpu.memory_space<vmem>>, vector<1x8x1x8xf32>,
    %115 = vector.extract_strided_slice %86 {offsets = [0, 63], sizes = [8, 8], strides = [1, 1]} : vector<8x72xf32> to vector<8x8xf32>
    %c0_97 = arith.constant 0 : index
    %c0_98 = arith.constant 0 : index
    %c7_99 = arith.constant 7 : index
    %c0_100 = arith.constant 0 : index
    %116 = vector.load %arg10[%c0_97, %c0_98, %c7_99, %c0_100] : memref<1x32x8x8xf32, #tpu.memory_space<vmem>>, vector<1x8x1x8xf32>
    %117 = vector.shape_cast %116 : vector<1x8x1x8xf32> to vector<8x8xf32>
    %118 = vector.shape_cast %115 : vector<8x8xf32> to vector<1x8x1x8xf32>
    tpu.vector_store %arg10[%c0_97, %c0_98, %c7_99, %c0_100], %118 {strides = array<i32>} : memref<1x32x8x8xf32, #tpu.memory_space<vmem>>, vector<1x8x1x8xf32>,
    %c1_101 = arith.constant 1 : index
    %c0_102 = arith.constant 0 : index
    %c0_103 = arith.constant 0 : index
    %c0_104 = arith.constant 0 : index
    %119 = vector.load %arg2[%c1_101, %c0_102, %c0_103, %c0_104] : memref<3x9x8x1xf32, #tpu.memory_space<vmem>>, vector<1x1x8x1xf32>
    %120 = vector.shape_cast %119 : vector<1x1x8x1xf32> to vector<8x1xf32>
    %121 = vector.broadcast %120 : vector<8x1xf32> to vector<8x72xf32>
    %122 = arith.mulf %1, %121 : vector<8x72xf32>
    %c1_105 = arith.constant 1 : index
    %c1_106 = arith.constant 1 : index
    %c0_107 = arith.constant 0 : index
    %c0_108 = arith.constant 0 : index
    %123 = vector.load %arg2[%c1_105, %c1_106, %c0_107, %c0_108] : memref<3x9x8x1xf32, #tpu.memory_space<vmem>>, vector<1x1x8x1xf32>
    %124 = vector.shape_cast %123 : vector<1x1x8x1xf32> to vector<8x1xf32>
    %125 = vector.broadcast %124 : vector<8x1xf32> to vector<8x72xf32>
    %126 = arith.mulf %3, %125 : vector<8x72xf32>
    %127 = arith.addf %122, %126 : vector<8x72xf32>
    %c1_109 = arith.constant 1 : index
    %c2_110 = arith.constant 2 : index
    %c0_111 = arith.constant 0 : index
    %c0_112 = arith.constant 0 : index
    %128 = vector.load %arg2[%c1_109, %c2_110, %c0_111, %c0_112] : memref<3x9x8x1xf32, #tpu.memory_space<vmem>>, vector<1x1x8x1xf32>
    %129 = vector.shape_cast %128 : vector<1x1x8x1xf32> to vector<8x1xf32>
    %130 = vector.broadcast %129 : vector<8x1xf32> to vector<8x72xf32>
    %131 = arith.mulf %5, %130 : vector<8x72xf32>
    %132 = arith.addf %127, %131 : vector<8x72xf32>
    %c1_113 = arith.constant 1 : index
    %c3_114 = arith.constant 3 : index
    %c0_115 = arith.constant 0 : index
    %c0_116 = arith.constant 0 : index
    %133 = vector.load %arg2[%c1_113, %c3_114, %c0_115, %c0_116] : memref<3x9x8x1xf32, #tpu.memory_space<vmem>>, vector<1x1x8x1xf32>
    %134 = vector.shape_cast %133 : vector<1x1x8x1xf32> to vector<8x1xf32>
    %135 = vector.broadcast %134 : vector<8x1xf32> to vector<8x72xf32>
    %136 = arith.mulf %7, %135 : vector<8x72xf32>
    %137 = arith.addf %132, %136 : vector<8x72xf32>
    %c1_117 = arith.constant 1 : index
    %c4_118 = arith.constant 4 : index
    %c0_119 = arith.constant 0 : index
    %c0_120 = arith.constant 0 : index
    %138 = vector.load %arg2[%c1_117, %c4_118, %c0_119, %c0_120] : memref<3x9x8x1xf32, #tpu.memory_space<vmem>>, vector<1x1x8x1xf32>
    %139 = vector.shape_cast %138 : vector<1x1x8x1xf32> to vector<8x1xf32>
    %140 = vector.broadcast %139 : vector<8x1xf32> to vector<8x72xf32>
    %141 = arith.mulf %9, %140 : vector<8x72xf32>
    %142 = arith.addf %137, %141 : vector<8x72xf32>
    %c1_121 = arith.constant 1 : index
    %c5_122 = arith.constant 5 : index
    %c0_123 = arith.constant 0 : index
    %c0_124 = arith.constant 0 : index
    %143 = vector.load %arg2[%c1_121, %c5_122, %c0_123, %c0_124] : memref<3x9x8x1xf32, #tpu.memory_space<vmem>>, vector<1x1x8x1xf32>
    %144 = vector.shape_cast %143 : vector<1x1x8x1xf32> to vector<8x1xf32>
    %145 = vector.broadcast %144 : vector<8x1xf32> to vector<8x72xf32>
    %146 = arith.mulf %11, %145 : vector<8x72xf32>
    %147 = arith.addf %142, %146 : vector<8x72xf32>
    %c1_125 = arith.constant 1 : index
    %c6_126 = arith.constant 6 : index
    %c0_127 = arith.constant 0 : index
    %c0_128 = arith.constant 0 : index
    %148 = vector.load %arg2[%c1_125, %c6_126, %c0_127, %c0_128] : memref<3x9x8x1xf32, #tpu.memory_space<vmem>>, vector<1x1x8x1xf32>
    %149 = vector.shape_cast %148 : vector<1x1x8x1xf32> to vector<8x1xf32>
    %150 = vector.broadcast %149 : vector<8x1xf32> to vector<8x72xf32>
    %151 = arith.mulf %13, %150 : vector<8x72xf32>
    %152 = arith.addf %147, %151 : vector<8x72xf32>
    %c1_129 = arith.constant 1 : index
    %c7_130 = arith.constant 7 : index
    %c0_131 = arith.constant 0 : index
    %c0_132 = arith.constant 0 : index
    %153 = vector.load %arg2[%c1_129, %c7_130, %c0_131, %c0_132] : memref<3x9x8x1xf32, #tpu.memory_space<vmem>>, vector<1x1x8x1xf32>
    %154 = vector.shape_cast %153 : vector<1x1x8x1xf32> to vector<8x1xf32>
    %155 = vector.broadcast %154 : vector<8x1xf32> to vector<8x72xf32>
    %156 = arith.mulf %15, %155 : vector<8x72xf32>
    %157 = arith.addf %152, %156 : vector<8x72xf32>
    %c1_133 = arith.constant 1 : index
    %c8_134 = arith.constant 8 : index
    %c0_135 = arith.constant 0 : index
    %c0_136 = arith.constant 0 : index
    %158 = vector.load %arg2[%c1_133, %c8_134, %c0_135, %c0_136] : memref<3x9x8x1xf32, #tpu.memory_space<vmem>>, vector<1x1x8x1xf32>
    %159 = vector.shape_cast %158 : vector<1x1x8x1xf32> to vector<8x1xf32>
    %160 = vector.broadcast %159 : vector<8x1xf32> to vector<8x72xf32>
    %161 = arith.mulf %17, %160 : vector<8x72xf32>
    %162 = arith.addf %157, %161 : vector<8x72xf32>
    %c1_137 = arith.constant 1 : index
    %c0_138 = arith.constant 0 : index
    %c0_139 = arith.constant 0 : index
    %163 = vector.load %arg3[%c1_137, %c0_138, %c0_139] : memref<3x8x1xf32, #tpu.memory_space<vmem>>, vector<1x8x1xf32>
    %164 = vector.shape_cast %163 : vector<1x8x1xf32> to vector<8x1xf32>
    %165 = vector.broadcast %164 : vector<8x1xf32> to vector<8x72xf32>
    %166 = arith.addf %162, %165 : vector<8x72xf32>
    %c8_140 = arith.constant 8 : index
    %c0_141 = arith.constant 0 : index
    %167 = vector.load %arg4[%c8_140, %c0_141] : memref<24x1xf32, #tpu.memory_space<vmem>>, vector<8x1xf32>
    %168 = vector.broadcast %167 : vector<8x1xf32> to vector<8x72xf32>
    %169 = arith.mulf %166, %168 : vector<8x72xf32>
    %c8_142 = arith.constant 8 : index
    %c0_143 = arith.constant 0 : index
    %170 = vector.load %arg5[%c8_142, %c0_143] : memref<24x1xf32, #tpu.memory_space<vmem>>, vector<8x1xf32>
    %171 = vector.broadcast %170 : vector<8x1xf32> to vector<8x72xf32>
    %172 = arith.addf %169, %171 : vector<8x72xf32>
    %cst_144 = arith.constant 0.000000e+00 : f32
    %173 = vector.broadcast %cst_144 : f32 to vector<8x72xf32>
    %174 = arith.maximumf %172, %173 : vector<8x72xf32>
    %c8_145 = arith.constant 8 : index
    %c0_146 = arith.constant 0 : index
    %175 = vector.load %arg6[%c8_145, %c0_146] : memref<32x8xf32, #tpu.memory_space<vmem>>, vector<16x8xf32>
    %cst_147 = arith.constant dense<0.000000e+00> : vector<16x72xf32>
    %176 = tpu.matmul %175, %174, %cst_147 {dimension_numbers = #tpu.dot_dimension_numbers<[1], [0], [0], [1], [0, 0, 1, 1], [], []>} : vector<16x8xf32>, vector<8x72xf32>, vector<16x72xf32> -> vector<16x72xf32>
    %c8_148 = arith.constant 8 : index
    %c0_149 = arith.constant 0 : index
    %177 = vector.load %arg7[%c8_148, %c0_149] : memref<32x1xf32, #tpu.memory_space<vmem>>, vector<16x1xf32>
    %178 = vector.broadcast %177 : vector<16x1xf32> to vector<16x72xf32>
    %179 = arith.addf %176, %178 : vector<16x72xf32>
    %c8_150 = arith.constant 8 : index
    %c0_151 = arith.constant 0 : index
    %180 = vector.load %arg8[%c8_150, %c0_151] : memref<32x1xf32, #tpu.memory_space<vmem>>, vector<16x1xf32>
    %181 = vector.broadcast %180 : vector<16x1xf32> to vector<16x72xf32>
    %182 = arith.mulf %179, %181 : vector<16x72xf32>
    %c8_152 = arith.constant 8 : index
    %c0_153 = arith.constant 0 : index
    %183 = vector.load %arg9[%c8_152, %c0_153] : memref<32x1xf32, #tpu.memory_space<vmem>>, vector<16x1xf32>
    %184 = vector.broadcast %183 : vector<16x1xf32> to vector<16x72xf32>
    %185 = arith.addf %182, %184 : vector<16x72xf32>
    %cst_154 = arith.constant 0.000000e+00 : f32
    %186 = vector.broadcast %cst_154 : f32 to vector<16x72xf32>
    %187 = arith.maximumf %185, %186 : vector<16x72xf32>
    %188 = vector.extract_strided_slice %187 {offsets = [0, 0], sizes = [16, 8], strides = [1, 1]} : vector<16x72xf32> to vector<16x8xf32>
    %c0_155 = arith.constant 0 : index
    %c8_156 = arith.constant 8 : index
    %c0_157 = arith.constant 0 : index
    %c0_158 = arith.constant 0 : index
    %189 = vector.load %arg10[%c0_155, %c8_156, %c0_157, %c0_158] : memref<1x32x8x8xf32, #tpu.memory_space<vmem>>, vector<1x16x1x8xf32>
    %190 = vector.shape_cast %189 : vector<1x16x1x8xf32> to vector<16x8xf32>
    %191 = vector.shape_cast %188 : vector<16x8xf32> to vector<1x16x1x8xf32>
    tpu.vector_store %arg10[%c0_155, %c8_156, %c0_157, %c0_158], %191 {strides = array<i32>} : memref<1x32x8x8xf32, #tpu.memory_space<vmem>>, vector<1x16x1x8xf32>,
    %192 = vector.extract_strided_slice %187 {offsets = [0, 9], sizes = [16, 8], strides = [1, 1]} : vector<16x72xf32> to vector<16x8xf32>
    %c0_159 = arith.constant 0 : index
    %c8_160 = arith.constant 8 : index
    %c1_161 = arith.constant 1 : index
    %c0_162 = arith.constant 0 : index
    %193 = vector.load %arg10[%c0_159, %c8_160, %c1_161, %c0_162] : memref<1x32x8x8xf32, #tpu.memory_space<vmem>>, vector<1x16x1x8xf32>
    %194 = vector.shape_cast %193 : vector<1x16x1x8xf32> to vector<16x8xf32>
    %195 = vector.shape_cast %192 : vector<16x8xf32> to vector<1x16x1x8xf32>
    tpu.vector_store %arg10[%c0_159, %c8_160, %c1_161, %c0_162], %195 {strides = array<i32>} : memref<1x32x8x8xf32, #tpu.memory_space<vmem>>, vector<1x16x1x8xf32>,
    %196 = vector.extract_strided_slice %187 {offsets = [0, 18], sizes = [16, 8], strides = [1, 1]} : vector<16x72xf32> to vector<16x8xf32>
    %c0_163 = arith.constant 0 : index
    %c8_164 = arith.constant 8 : index
    %c2_165 = arith.constant 2 : index
    %c0_166 = arith.constant 0 : index
    %197 = vector.load %arg10[%c0_163, %c8_164, %c2_165, %c0_166] : memref<1x32x8x8xf32, #tpu.memory_space<vmem>>, vector<1x16x1x8xf32>
    %198 = vector.shape_cast %197 : vector<1x16x1x8xf32> to vector<16x8xf32>
    %199 = vector.shape_cast %196 : vector<16x8xf32> to vector<1x16x1x8xf32>
    tpu.vector_store %arg10[%c0_163, %c8_164, %c2_165, %c0_166], %199 {strides = array<i32>} : memref<1x32x8x8xf32, #tpu.memory_space<vmem>>, vector<1x16x1x8xf32>,
    %200 = vector.extract_strided_slice %187 {offsets = [0, 27], sizes = [16, 8], strides = [1, 1]} : vector<16x72xf32> to vector<16x8xf32>
    %c0_167 = arith.constant 0 : index
    %c8_168 = arith.constant 8 : index
    %c3_169 = arith.constant 3 : index
    %c0_170 = arith.constant 0 : index
    %201 = vector.load %arg10[%c0_167, %c8_168, %c3_169, %c0_170] : memref<1x32x8x8xf32, #tpu.memory_space<vmem>>, vector<1x16x1x8xf32>
    %202 = vector.shape_cast %201 : vector<1x16x1x8xf32> to vector<16x8xf32>
    %203 = vector.shape_cast %200 : vector<16x8xf32> to vector<1x16x1x8xf32>
    tpu.vector_store %arg10[%c0_167, %c8_168, %c3_169, %c0_170], %203 {strides = array<i32>} : memref<1x32x8x8xf32, #tpu.memory_space<vmem>>, vector<1x16x1x8xf32>,
    %204 = vector.extract_strided_slice %187 {offsets = [0, 36], sizes = [16, 8], strides = [1, 1]} : vector<16x72xf32> to vector<16x8xf32>
    %c0_171 = arith.constant 0 : index
    %c8_172 = arith.constant 8 : index
    %c4_173 = arith.constant 4 : index
    %c0_174 = arith.constant 0 : index
    %205 = vector.load %arg10[%c0_171, %c8_172, %c4_173, %c0_174] : memref<1x32x8x8xf32, #tpu.memory_space<vmem>>, vector<1x16x1x8xf32>
    %206 = vector.shape_cast %205 : vector<1x16x1x8xf32> to vector<16x8xf32>
    %207 = vector.shape_cast %204 : vector<16x8xf32> to vector<1x16x1x8xf32>
    tpu.vector_store %arg10[%c0_171, %c8_172, %c4_173, %c0_174], %207 {strides = array<i32>} : memref<1x32x8x8xf32, #tpu.memory_space<vmem>>, vector<1x16x1x8xf32>,
    %208 = vector.extract_strided_slice %187 {offsets = [0, 45], sizes = [16, 8], strides = [1, 1]} : vector<16x72xf32> to vector<16x8xf32>
    %c0_175 = arith.constant 0 : index
    %c8_176 = arith.constant 8 : index
    %c5_177 = arith.constant 5 : index
    %c0_178 = arith.constant 0 : index
    %209 = vector.load %arg10[%c0_175, %c8_176, %c5_177, %c0_178] : memref<1x32x8x8xf32, #tpu.memory_space<vmem>>, vector<1x16x1x8xf32>
    %210 = vector.shape_cast %209 : vector<1x16x1x8xf32> to vector<16x8xf32>
    %211 = vector.shape_cast %208 : vector<16x8xf32> to vector<1x16x1x8xf32>
    tpu.vector_store %arg10[%c0_175, %c8_176, %c5_177, %c0_178], %211 {strides = array<i32>} : memref<1x32x8x8xf32, #tpu.memory_space<vmem>>, vector<1x16x1x8xf32>,
    %212 = vector.extract_strided_slice %187 {offsets = [0, 54], sizes = [16, 8], strides = [1, 1]} : vector<16x72xf32> to vector<16x8xf32>
    %c0_179 = arith.constant 0 : index
    %c8_180 = arith.constant 8 : index
    %c6_181 = arith.constant 6 : index
    %c0_182 = arith.constant 0 : index
    %213 = vector.load %arg10[%c0_179, %c8_180, %c6_181, %c0_182] : memref<1x32x8x8xf32, #tpu.memory_space<vmem>>, vector<1x16x1x8xf32>
    %214 = vector.shape_cast %213 : vector<1x16x1x8xf32> to vector<16x8xf32>
    %215 = vector.shape_cast %212 : vector<16x8xf32> to vector<1x16x1x8xf32>
    tpu.vector_store %arg10[%c0_179, %c8_180, %c6_181, %c0_182], %215 {strides = array<i32>} : memref<1x32x8x8xf32, #tpu.memory_space<vmem>>, vector<1x16x1x8xf32>,
    %216 = vector.extract_strided_slice %187 {offsets = [0, 63], sizes = [16, 8], strides = [1, 1]} : vector<16x72xf32> to vector<16x8xf32>
    %c0_183 = arith.constant 0 : index
    %c8_184 = arith.constant 8 : index
    %c7_185 = arith.constant 7 : index
    %c0_186 = arith.constant 0 : index
    %217 = vector.load %arg10[%c0_183, %c8_184, %c7_185, %c0_186] : memref<1x32x8x8xf32, #tpu.memory_space<vmem>>, vector<1x16x1x8xf32>
    %218 = vector.shape_cast %217 : vector<1x16x1x8xf32> to vector<16x8xf32>
    %219 = vector.shape_cast %216 : vector<16x8xf32> to vector<1x16x1x8xf32>
    tpu.vector_store %arg10[%c0_183, %c8_184, %c7_185, %c0_186], %219 {strides = array<i32>} : memref<1x32x8x8xf32, #tpu.memory_space<vmem>>, vector<1x16x1x8xf32>,
    %c2_187 = arith.constant 2 : index
    %c0_188 = arith.constant 0 : index
    %c0_189 = arith.constant 0 : index
    %c0_190 = arith.constant 0 : index
    %220 = vector.load %arg2[%c2_187, %c0_188, %c0_189, %c0_190] : memref<3x9x8x1xf32, #tpu.memory_space<vmem>>, vector<1x1x8x1xf32>
    %221 = vector.shape_cast %220 : vector<1x1x8x1xf32> to vector<8x1xf32>
    %222 = vector.broadcast %221 : vector<8x1xf32> to vector<8x72xf32>
    %223 = arith.mulf %1, %222 : vector<8x72xf32>
    %c2_191 = arith.constant 2 : index
    %c1_192 = arith.constant 1 : index
    %c0_193 = arith.constant 0 : index
    %c0_194 = arith.constant 0 : index
    %224 = vector.load %arg2[%c2_191, %c1_192, %c0_193, %c0_194] : memref<3x9x8x1xf32, #tpu.memory_space<vmem>>, vector<1x1x8x1xf32>
    %225 = vector.shape_cast %224 : vector<1x1x8x1xf32> to vector<8x1xf32>
    %226 = vector.broadcast %225 : vector<8x1xf32> to vector<8x72xf32>
    %227 = arith.mulf %3, %226 : vector<8x72xf32>
    %228 = arith.addf %223, %227 : vector<8x72xf32>
    %c2_195 = arith.constant 2 : index
    %c2_196 = arith.constant 2 : index
    %c0_197 = arith.constant 0 : index
    %c0_198 = arith.constant 0 : index
    %229 = vector.load %arg2[%c2_195, %c2_196, %c0_197, %c0_198] : memref<3x9x8x1xf32, #tpu.memory_space<vmem>>, vector<1x1x8x1xf32>
    %230 = vector.shape_cast %229 : vector<1x1x8x1xf32> to vector<8x1xf32>
    %231 = vector.broadcast %230 : vector<8x1xf32> to vector<8x72xf32>
    %232 = arith.mulf %5, %231 : vector<8x72xf32>
    %233 = arith.addf %228, %232 : vector<8x72xf32>
    %c2_199 = arith.constant 2 : index
    %c3_200 = arith.constant 3 : index
    %c0_201 = arith.constant 0 : index
    %c0_202 = arith.constant 0 : index
    %234 = vector.load %arg2[%c2_199, %c3_200, %c0_201, %c0_202] : memref<3x9x8x1xf32, #tpu.memory_space<vmem>>, vector<1x1x8x1xf32>
    %235 = vector.shape_cast %234 : vector<1x1x8x1xf32> to vector<8x1xf32>
    %236 = vector.broadcast %235 : vector<8x1xf32> to vector<8x72xf32>
    %237 = arith.mulf %7, %236 : vector<8x72xf32>
    %238 = arith.addf %233, %237 : vector<8x72xf32>
    %c2_203 = arith.constant 2 : index
    %c4_204 = arith.constant 4 : index
    %c0_205 = arith.constant 0 : index
    %c0_206 = arith.constant 0 : index
    %239 = vector.load %arg2[%c2_203, %c4_204, %c0_205, %c0_206] : memref<3x9x8x1xf32, #tpu.memory_space<vmem>>, vector<1x1x8x1xf32>
    %240 = vector.shape_cast %239 : vector<1x1x8x1xf32> to vector<8x1xf32>
    %241 = vector.broadcast %240 : vector<8x1xf32> to vector<8x72xf32>
    %242 = arith.mulf %9, %241 : vector<8x72xf32>
    %243 = arith.addf %238, %242 : vector<8x72xf32>
    %c2_207 = arith.constant 2 : index
    %c5_208 = arith.constant 5 : index
    %c0_209 = arith.constant 0 : index
    %c0_210 = arith.constant 0 : index
    %244 = vector.load %arg2[%c2_207, %c5_208, %c0_209, %c0_210] : memref<3x9x8x1xf32, #tpu.memory_space<vmem>>, vector<1x1x8x1xf32>
    %245 = vector.shape_cast %244 : vector<1x1x8x1xf32> to vector<8x1xf32>
    %246 = vector.broadcast %245 : vector<8x1xf32> to vector<8x72xf32>
    %247 = arith.mulf %11, %246 : vector<8x72xf32>
    %248 = arith.addf %243, %247 : vector<8x72xf32>
    %c2_211 = arith.constant 2 : index
    %c6_212 = arith.constant 6 : index
    %c0_213 = arith.constant 0 : index
    %c0_214 = arith.constant 0 : index
    %249 = vector.load %arg2[%c2_211, %c6_212, %c0_213, %c0_214] : memref<3x9x8x1xf32, #tpu.memory_space<vmem>>, vector<1x1x8x1xf32>
    %250 = vector.shape_cast %249 : vector<1x1x8x1xf32> to vector<8x1xf32>
    %251 = vector.broadcast %250 : vector<8x1xf32> to vector<8x72xf32>
    %252 = arith.mulf %13, %251 : vector<8x72xf32>
    %253 = arith.addf %248, %252 : vector<8x72xf32>
    %c2_215 = arith.constant 2 : index
    %c7_216 = arith.constant 7 : index
    %c0_217 = arith.constant 0 : index
    %c0_218 = arith.constant 0 : index
    %254 = vector.load %arg2[%c2_215, %c7_216, %c0_217, %c0_218] : memref<3x9x8x1xf32, #tpu.memory_space<vmem>>, vector<1x1x8x1xf32>
    %255 = vector.shape_cast %254 : vector<1x1x8x1xf32> to vector<8x1xf32>
    %256 = vector.broadcast %255 : vector<8x1xf32> to vector<8x72xf32>
    %257 = arith.mulf %15, %256 : vector<8x72xf32>
    %258 = arith.addf %253, %257 : vector<8x72xf32>
    %c2_219 = arith.constant 2 : index
    %c8_220 = arith.constant 8 : index
    %c0_221 = arith.constant 0 : index
    %c0_222 = arith.constant 0 : index
    %259 = vector.load %arg2[%c2_219, %c8_220, %c0_221, %c0_222] : memref<3x9x8x1xf32, #tpu.memory_space<vmem>>, vector<1x1x8x1xf32>
    %260 = vector.shape_cast %259 : vector<1x1x8x1xf32> to vector<8x1xf32>
    %261 = vector.broadcast %260 : vector<8x1xf32> to vector<8x72xf32>
    %262 = arith.mulf %17, %261 : vector<8x72xf32>
    %263 = arith.addf %258, %262 : vector<8x72xf32>
    %c2_223 = arith.constant 2 : index
    %c0_224 = arith.constant 0 : index
    %c0_225 = arith.constant 0 : index
    %264 = vector.load %arg3[%c2_223, %c0_224, %c0_225] : memref<3x8x1xf32, #tpu.memory_space<vmem>>, vector<1x8x1xf32>
    %265 = vector.shape_cast %264 : vector<1x8x1xf32> to vector<8x1xf32>
    %266 = vector.broadcast %265 : vector<8x1xf32> to vector<8x72xf32>
    %267 = arith.addf %263, %266 : vector<8x72xf32>
    %c16 = arith.constant 16 : index
    %c0_226 = arith.constant 0 : index
    %268 = vector.load %arg4[%c16, %c0_226] : memref<24x1xf32, #tpu.memory_space<vmem>>, vector<8x1xf32>
    %269 = vector.broadcast %268 : vector<8x1xf32> to vector<8x72xf32>
    %270 = arith.mulf %267, %269 : vector<8x72xf32>
    %c16_227 = arith.constant 16 : index
    %c0_228 = arith.constant 0 : index
    %271 = vector.load %arg5[%c16_227, %c0_228] : memref<24x1xf32, #tpu.memory_space<vmem>>, vector<8x1xf32>
    %272 = vector.broadcast %271 : vector<8x1xf32> to vector<8x72xf32>
    %273 = arith.addf %270, %272 : vector<8x72xf32>
    %cst_229 = arith.constant 0.000000e+00 : f32
    %274 = vector.broadcast %cst_229 : f32 to vector<8x72xf32>
    %275 = arith.maximumf %273, %274 : vector<8x72xf32>
    %c24 = arith.constant 24 : index
    %c0_230 = arith.constant 0 : index
    %276 = vector.load %arg6[%c24, %c0_230] : memref<32x8xf32, #tpu.memory_space<vmem>>, vector<8x8xf32>
    %cst_231 = arith.constant dense<0.000000e+00> : vector<8x72xf32>
    %277 = tpu.matmul %276, %275, %cst_231 {dimension_numbers = #tpu.dot_dimension_numbers<[1], [0], [0], [1], [0, 0, 1, 1], [], []>} : vector<8x8xf32>, vector<8x72xf32>, vector<8x72xf32> -> vector<8x72xf32>
    %c24_232 = arith.constant 24 : index
    %c0_233 = arith.constant 0 : index
    %278 = vector.load %arg7[%c24_232, %c0_233] : memref<32x1xf32, #tpu.memory_space<vmem>>, vector<8x1xf32>
    %279 = vector.broadcast %278 : vector<8x1xf32> to vector<8x72xf32>
    %280 = arith.addf %277, %279 : vector<8x72xf32>
    %c24_234 = arith.constant 24 : index
    %c0_235 = arith.constant 0 : index
    %281 = vector.load %arg8[%c24_234, %c0_235] : memref<32x1xf32, #tpu.memory_space<vmem>>, vector<8x1xf32>
    %282 = vector.broadcast %281 : vector<8x1xf32> to vector<8x72xf32>
    %283 = arith.mulf %280, %282 : vector<8x72xf32>
    %c24_236 = arith.constant 24 : index
    %c0_237 = arith.constant 0 : index
    %284 = vector.load %arg9[%c24_236, %c0_237] : memref<32x1xf32, #tpu.memory_space<vmem>>, vector<8x1xf32>
    %285 = vector.broadcast %284 : vector<8x1xf32> to vector<8x72xf32>
    %286 = arith.addf %283, %285 : vector<8x72xf32>
    %cst_238 = arith.constant 0.000000e+00 : f32
    %287 = vector.broadcast %cst_238 : f32 to vector<8x72xf32>
    %288 = arith.maximumf %286, %287 : vector<8x72xf32>
    %289 = vector.extract_strided_slice %288 {offsets = [0, 0], sizes = [8, 8], strides = [1, 1]} : vector<8x72xf32> to vector<8x8xf32>
    %c0_239 = arith.constant 0 : index
    %c24_240 = arith.constant 24 : index
    %c0_241 = arith.constant 0 : index
    %c0_242 = arith.constant 0 : index
    %290 = vector.load %arg10[%c0_239, %c24_240, %c0_241, %c0_242] : memref<1x32x8x8xf32, #tpu.memory_space<vmem>>, vector<1x8x1x8xf32>
    %291 = vector.shape_cast %290 : vector<1x8x1x8xf32> to vector<8x8xf32>
    %292 = vector.shape_cast %289 : vector<8x8xf32> to vector<1x8x1x8xf32>
    tpu.vector_store %arg10[%c0_239, %c24_240, %c0_241, %c0_242], %292 {strides = array<i32>} : memref<1x32x8x8xf32, #tpu.memory_space<vmem>>, vector<1x8x1x8xf32>,
    %293 = vector.extract_strided_slice %288 {offsets = [0, 9], sizes = [8, 8], strides = [1, 1]} : vector<8x72xf32> to vector<8x8xf32>
    %c0_243 = arith.constant 0 : index
    %c24_244 = arith.constant 24 : index
    %c1_245 = arith.constant 1 : index
    %c0_246 = arith.constant 0 : index
    %294 = vector.load %arg10[%c0_243, %c24_244, %c1_245, %c0_246] : memref<1x32x8x8xf32, #tpu.memory_space<vmem>>, vector<1x8x1x8xf32>
    %295 = vector.shape_cast %294 : vector<1x8x1x8xf32> to vector<8x8xf32>
    %296 = vector.shape_cast %293 : vector<8x8xf32> to vector<1x8x1x8xf32>
    tpu.vector_store %arg10[%c0_243, %c24_244, %c1_245, %c0_246], %296 {strides = array<i32>} : memref<1x32x8x8xf32, #tpu.memory_space<vmem>>, vector<1x8x1x8xf32>,
    %297 = vector.extract_strided_slice %288 {offsets = [0, 18], sizes = [8, 8], strides = [1, 1]} : vector<8x72xf32> to vector<8x8xf32>
    %c0_247 = arith.constant 0 : index
    %c24_248 = arith.constant 24 : index
    %c2_249 = arith.constant 2 : index
    %c0_250 = arith.constant 0 : index
    %298 = vector.load %arg10[%c0_247, %c24_248, %c2_249, %c0_250] : memref<1x32x8x8xf32, #tpu.memory_space<vmem>>, vector<1x8x1x8xf32>
    %299 = vector.shape_cast %298 : vector<1x8x1x8xf32> to vector<8x8xf32>
    %300 = vector.shape_cast %297 : vector<8x8xf32> to vector<1x8x1x8xf32>
    tpu.vector_store %arg10[%c0_247, %c24_248, %c2_249, %c0_250], %300 {strides = array<i32>} : memref<1x32x8x8xf32, #tpu.memory_space<vmem>>, vector<1x8x1x8xf32>,
    %301 = vector.extract_strided_slice %288 {offsets = [0, 27], sizes = [8, 8], strides = [1, 1]} : vector<8x72xf32> to vector<8x8xf32>
    %c0_251 = arith.constant 0 : index
    %c24_252 = arith.constant 24 : index
    %c3_253 = arith.constant 3 : index
    %c0_254 = arith.constant 0 : index
    %302 = vector.load %arg10[%c0_251, %c24_252, %c3_253, %c0_254] : memref<1x32x8x8xf32, #tpu.memory_space<vmem>>, vector<1x8x1x8xf32>
    %303 = vector.shape_cast %302 : vector<1x8x1x8xf32> to vector<8x8xf32>
    %304 = vector.shape_cast %301 : vector<8x8xf32> to vector<1x8x1x8xf32>
    tpu.vector_store %arg10[%c0_251, %c24_252, %c3_253, %c0_254], %304 {strides = array<i32>} : memref<1x32x8x8xf32, #tpu.memory_space<vmem>>, vector<1x8x1x8xf32>,
    %305 = vector.extract_strided_slice %288 {offsets = [0, 36], sizes = [8, 8], strides = [1, 1]} : vector<8x72xf32> to vector<8x8xf32>
    %c0_255 = arith.constant 0 : index
    %c24_256 = arith.constant 24 : index
    %c4_257 = arith.constant 4 : index
    %c0_258 = arith.constant 0 : index
    %306 = vector.load %arg10[%c0_255, %c24_256, %c4_257, %c0_258] : memref<1x32x8x8xf32, #tpu.memory_space<vmem>>, vector<1x8x1x8xf32>
    %307 = vector.shape_cast %306 : vector<1x8x1x8xf32> to vector<8x8xf32>
    %308 = vector.shape_cast %305 : vector<8x8xf32> to vector<1x8x1x8xf32>
    tpu.vector_store %arg10[%c0_255, %c24_256, %c4_257, %c0_258], %308 {strides = array<i32>} : memref<1x32x8x8xf32, #tpu.memory_space<vmem>>, vector<1x8x1x8xf32>,
    %309 = vector.extract_strided_slice %288 {offsets = [0, 45], sizes = [8, 8], strides = [1, 1]} : vector<8x72xf32> to vector<8x8xf32>
    %c0_259 = arith.constant 0 : index
    %c24_260 = arith.constant 24 : index
    %c5_261 = arith.constant 5 : index
    %c0_262 = arith.constant 0 : index
    %310 = vector.load %arg10[%c0_259, %c24_260, %c5_261, %c0_262] : memref<1x32x8x8xf32, #tpu.memory_space<vmem>>, vector<1x8x1x8xf32>
    %311 = vector.shape_cast %310 : vector<1x8x1x8xf32> to vector<8x8xf32>
    %312 = vector.shape_cast %309 : vector<8x8xf32> to vector<1x8x1x8xf32>
    tpu.vector_store %arg10[%c0_259, %c24_260, %c5_261, %c0_262], %312 {strides = array<i32>} : memref<1x32x8x8xf32, #tpu.memory_space<vmem>>, vector<1x8x1x8xf32>,
    %313 = vector.extract_strided_slice %288 {offsets = [0, 54], sizes = [8, 8], strides = [1, 1]} : vector<8x72xf32> to vector<8x8xf32>
    %c0_263 = arith.constant 0 : index
    %c24_264 = arith.constant 24 : index
    %c6_265 = arith.constant 6 : index
    %c0_266 = arith.constant 0 : index
    %314 = vector.load %arg10[%c0_263, %c24_264, %c6_265, %c0_266] : memref<1x32x8x8xf32, #tpu.memory_space<vmem>>, vector<1x8x1x8xf32>
    %315 = vector.shape_cast %314 : vector<1x8x1x8xf32> to vector<8x8xf32>
    %316 = vector.shape_cast %313 : vector<8x8xf32> to vector<1x8x1x8xf32>
    tpu.vector_store %arg10[%c0_263, %c24_264, %c6_265, %c0_266], %316 {strides = array<i32>} : memref<1x32x8x8xf32, #tpu.memory_space<vmem>>, vector<1x8x1x8xf32>,
    %317 = vector.extract_strided_slice %288 {offsets = [0, 63], sizes = [8, 8], strides = [1, 1]} : vector<8x72xf32> to vector<8x8xf32>
    %c0_267 = arith.constant 0 : index
    %c24_268 = arith.constant 24 : index
    %c7_269 = arith.constant 7 : index
    %c0_270 = arith.constant 0 : index
    %318 = vector.load %arg10[%c0_267, %c24_268, %c7_269, %c0_270] : memref<1x32x8x8xf32, #tpu.memory_space<vmem>>, vector<1x8x1x8xf32>
    %319 = vector.shape_cast %318 : vector<1x8x1x8xf32> to vector<8x8xf32>
    %320 = vector.shape_cast %317 : vector<8x8xf32> to vector<1x8x1x8xf32>
    tpu.vector_store %arg10[%c0_267, %c24_268, %c7_269, %c0_270], %320 {strides = array<i32>} : memref<1x32x8x8xf32, #tpu.memory_space<vmem>>, vector<1x8x1x8xf32>,
    return
  }
  func.func @transform_0(%arg0: i32) -> (i32, i32, i32) {
    %c0_i32 = arith.constant 0 : i32
    %c0_i32_0 = arith.constant 0 : i32
    %c0_i32_1 = arith.constant 0 : i32
    return %arg0, %c0_i32, %c0_i32_0 : i32, i32, i32
  }
  func.func @transform_1(%arg0: i32) -> (i32, i32, i32, i32) {
    %c0_i32 = arith.constant 0 : i32
    %c0_i32_0 = arith.constant 0 : i32
    %c0_i32_1 = arith.constant 0 : i32
    %c0_i32_2 = arith.constant 0 : i32
    %c0_i32_3 = arith.constant 0 : i32
    return %c0_i32, %c0_i32_0, %c0_i32_1, %c0_i32_2 : i32, i32, i32, i32
  }
  func.func @transform_2(%arg0: i32) -> (i32, i32, i32) {
    %c0_i32 = arith.constant 0 : i32
    %c0_i32_0 = arith.constant 0 : i32
    %c0_i32_1 = arith.constant 0 : i32
    %c0_i32_2 = arith.constant 0 : i32
    return %c0_i32, %c0_i32_0, %c0_i32_1 : i32, i32, i32
  }
  func.func @transform_3(%arg0: i32) -> (i32, i32) {
    %c0_i32 = arith.constant 0 : i32
    %c0_i32_0 = arith.constant 0 : i32
    %c0_i32_1 = arith.constant 0 : i32
    return %c0_i32, %c0_i32_0 : i32, i32
  }
  func.func @transform_4(%arg0: i32) -> (i32, i32) {
    %c0_i32 = arith.constant 0 : i32
    %c0_i32_0 = arith.constant 0 : i32
    %c0_i32_1 = arith.constant 0 : i32
    return %c0_i32, %c0_i32_0 : i32, i32
  }
  func.func @transform_5(%arg0: i32) -> (i32, i32) {
    %c0_i32 = arith.constant 0 : i32
    %c0_i32_0 = arith.constant 0 : i32
    %c0_i32_1 = arith.constant 0 : i32
    return %c0_i32, %c0_i32_0 : i32, i32
  }
  func.func @transform_6(%arg0: i32) -> (i32, i32) {
    %c0_i32 = arith.constant 0 : i32
    %c0_i32_0 = arith.constant 0 : i32
    %c0_i32_1 = arith.constant 0 : i32
    return %c0_i32, %c0_i32_0 : i32, i32
  }
  func.func @transform_7(%arg0: i32) -> (i32, i32) {
    %c0_i32 = arith.constant 0 : i32
    %c0_i32_0 = arith.constant 0 : i32
    %c0_i32_1 = arith.constant 0 : i32
    return %c0_i32, %c0_i32_0 : i32, i32
  }
  func.func @transform_8(%arg0: i32) -> (i32, i32) {
    %c0_i32 = arith.constant 0 : i32
    %c0_i32_0 = arith.constant 0 : i32
    %c0_i32_1 = arith.constant 0 : i32
    return %c0_i32, %c0_i32_0 : i32, i32
  }
  func.func @transform_9(%arg0: i32) -> (i32, i32, i32, i32) {
    %c0_i32 = arith.constant 0 : i32
    %c0_i32_0 = arith.constant 0 : i32
    %c0_i32_1 = arith.constant 0 : i32
    %c0_i32_2 = arith.constant 0 : i32
    return %arg0, %c0_i32, %c0_i32_0, %c0_i32_1 : i32, i32, i32, i32
  }
}

</mosaic_0001>

<llo_original>
// kernel: block_forward.4
$region0: #{block_forward.4}
  #allocation0 [shape = 'u32[]', space=smem, size = 0x4, offset = 0x4, fixed_abs, tag = 'smem constant byte address 0x4 - core index']
  #allocation1 [shape = 'u32[144,128]{1,0:T(1,128)}', space=vmem, size = 0x12000, scoped, tag = 'internal scratch']
  %s0 = inlined_call_operand.vmem [shape: f32[8,8,90], index: 0, kind: input, shape index: {}]
  %s1 = inlined_call_operand.vmem [shape: f32[3,9,8,1], index: 1, kind: input, shape index: {}]
  %s2 = inlined_call_operand.vmem [shape: f32[3,8,1], index: 2, kind: input, shape index: {}]
  %s3 = inlined_call_operand.vmem [shape: f32[24,1], index: 3, kind: input, shape index: {}]
  %s4 = inlined_call_operand.vmem [shape: f32[24,1], index: 4, kind: input, shape index: {}]
  %s5 = inlined_call_operand.vmem [shape: f32[32,8], index: 5, kind: input, shape index: {}]
  %s6 = inlined_call_operand.vmem [shape: f32[32,1], index: 6, kind: input, shape index: {}]
  %s7 = inlined_call_operand.vmem [shape: f32[2,32,2], index: 7, kind: output, shape index: {}]
  %s8 = sld [smem:[#allocation0]]
  $region61: #{block_forward.4} parent=0
    _
  %s10 = ssub.s32 1, %s8
  %s11 = scalar_select 0, %s10, %s8
  loop: start=0, step=1, limit=4
  $region2: #{block_forward.4} parent=0 // loop_pre_header
    _
  $region3: #{block_forward.4} parent=0 // loop_header
    %s13 = sphi 0, %s17
    %p14 = scmp.ge.s32.totalorder %s13, 4
    %s23 = sphi 0, %s25
    %s26 = sphi 0, %s23
    %s27 = sphi 0, %s26
    %s43 = sphi 0, %s27
    %s47 = sphi 0, %s47
    %s49 = sphi 0, %s47
    %s50 = sphi 0, %s49
    %s64 = sphi 0, %s50
    %s68 = sphi 0, %s68
    %s70 = sphi 0, %s68
    %s71 = sphi 0, %s70
    %s85 = sphi 0, %s71
    %s89 = sphi 0, %s89
    %s91 = sphi 0, %s89
    %s92 = sphi 0, %s91
    %s106 = sphi 0, %s92
    %s110 = sphi 0, %s110
    %s112 = sphi 0, %s110
    %s113 = sphi 0, %s112
    %s127 = sphi 0, %s113
    %s131 = sphi 0, %s131
    %s133 = sphi 0, %s131
    %s134 = sphi 0, %s133
    %s148 = sphi 0, %s134
    %s152 = sphi 0, %s152
    %s154 = sphi 0, %s152
    %s155 = sphi 0, %s154
    %s169 = sphi 0, %s155
    %s175 = sphi 0, %s177
    %s178 = sphi 0, %s175
    %s179 = sphi 0, %s178
    %s195 = sphi 0, %s179
  $region4: #{block_forward.4} parent=0 // loop_header_branch
    %16 = sbr.rel (%p14) target = $region8
  $region5: #{block_forward.4} parent=0 // loop_body
    %s18 = ssub.s32 %s13, 1
    %s19 = ssub.s32 %s13, 2
    %s20 = sadd.s32 %s13, 1
    %s21 = ssub.s32 %s13, %s20
    %p22 = scmp.eq.s32.totalorder %s21, 0
    %s24 = sadd.s32 %s23, 1
    %s25 = scalar_select %p22, %s23, %s24
    %p28 = pneg %p22
    %p29 = scmp.eq.s32.totalorder %s13, 1
    %p30 = por %p28, %p29
    %p31 = scmp.ne.s32.totalorder %s23, %s26
    %p32 = scmp.eq.s32.totalorder %s13, 0
    %p33 = por %p31, %p32
    %p34 = scmp.ne.s32.totalorder %s23, %s26
    %p35 = scmp.eq.s32.totalorder %s18, 1
    %p36 = por %p34, %p35
    %p37 = scmp.ne.s32.totalorder %s26, %s27
    %p38 = scmp.eq.s32.totalorder %s18, 0
    %p39 = por %p37, %p38
    %p40 = scmp.ne.s32.totalorder %s26, %s27
    %p41 = scmp.eq.s32.totalorder %s19, 1
    %p42 = por %p40, %p41
    %p44 = scmp.ne.s32.totalorder %s27, %s43
    %p45 = scmp.eq.s32.totalorder %s19, 0
    %p46 = por %p44, %p45
    %s48 = sadd.s32 %s47, 1
    %p51 = scmp.eq.s32.totalorder %s13, 1
    %p52 = scmp.ne.s32.totalorder %s47, %s49
    %p53 = scmp.eq.s32.totalorder %s13, 0
    %p54 = por %p52, %p53
    %p55 = scmp.ne.s32.totalorder %s47, %s49
    %p56 = scmp.eq.s32.totalorder %s18, 1
    %p57 = por %p55, %p56
    %p58 = scmp.ne.s32.totalorder %s49, %s50
    %p59 = scmp.eq.s32.totalorder %s18, 0
    %p60 = por %p58, %p59
    %p61 = scmp.ne.s32.totalorder %s49, %s50
    %p62 = scmp.eq.s32.totalorder %s19, 1
    %p63 = por %p61, %p62
    %p65 = scmp.ne.s32.totalorder %s50, %s64
    %p66 = scmp.eq.s32.totalorder %s19, 0
    %p67 = por %p65, %p66
    %s69 = sadd.s32 %s68, 1
    %p72 = scmp.eq.s32.totalorder %s13, 1
    %p73 = scmp.ne.s32.totalorder %s68, %s70
    %p74 = scmp.eq.s32.totalorder %s13, 0
    %p75 = por %p73, %p74
    %p76 = scmp.ne.s32.totalorder %s68, %s70
    %p77 = scmp.eq.s32.totalorder %s18, 1
    %p78 = por %p76, %p77
    %p79 = scmp.ne.s32.totalorder %s70, %s71
    %p80 = scmp.eq.s32.totalorder %s18, 0
    %p81 = por %p79, %p80
    %p82 = scmp.ne.s32.totalorder %s70, %s71
    %p83 = scmp.eq.s32.totalorder %s19, 1
    %p84 = por %p82, %p83
    %p86 = scmp.ne.s32.totalorder %s71, %s85
    %p87 = scmp.eq.s32.totalorder %s19, 0
    %p88 = por %p86, %p87
    %s90 = sadd.s32 %s89, 1
    %p93 = scmp.eq.s32.totalorder %s13, 1
    %p94 = scmp.ne.s32.totalorder %s89, %s91
    %p95 = scmp.eq.s32.totalorder %s13, 0
    %p96 = por %p94, %p95
    %p97 = scmp.ne.s32.totalorder %s89, %s91
    %p98 = scmp.eq.s32.totalorder %s18, 1
    %p99 = por %p97, %p98
    %p100 = scmp.ne.s32.totalorder %s91, %s92
    %p101 = scmp.eq.s32.totalorder %s18, 0
    %p102 = por %p100, %p101
    %p103 = scmp.ne.s32.totalorder %s91, %s92
    %p104 = scmp.eq.s32.totalorder %s19, 1
    %p105 = por %p103, %p104
    %p107 = scmp.ne.s32.totalorder %s92, %s106
    %p108 = scmp.eq.s32.totalorder %s19, 0
    %p109 = por %p107, %p108
    %s111 = sadd.s32 %s110, 1
    %p114 = scmp.eq.s32.totalorder %s13, 1
    %p115 = scmp.ne.s32.totalorder %s110, %s112
    %p116 = scmp.eq.s32.totalorder %s13, 0
    %p117 = por %p115, %p116
    %p118 = scmp.ne.s32.totalorder %s110, %s112
    %p119 = scmp.eq.s32.totalorder %s18, 1
    %p120 = por %p118, %p119
    %p121 = scmp.ne.s32.totalorder %s112, %s113
    %p122 = scmp.eq.s32.totalorder %s18, 0
    %p123 = por %p121, %p122
    %p124 = scmp.ne.s32.totalorder %s112, %s113
    %p125 = scmp.eq.s32.totalorder %s19, 1
    %p126 = por %p124, %p125
    %p128 = scmp.ne.s32.totalorder %s113, %s127
    %p129 = scmp.eq.s32.totalorder %s19, 0
    %p130 = por %p128, %p129
    %s132 = sadd.s32 %s131, 1
    %p135 = scmp.eq.s32.totalorder %s13, 1
    %p136 = scmp.ne.s32.totalorder %s131, %s133
    %p137 = scmp.eq.s32.totalorder %s13, 0
    %p138 = por %p136, %p137
    %p139 = scmp.ne.s32.totalorder %s131, %s133
    %p140 = scmp.eq.s32.totalorder %s18, 1
    %p141 = por %p139, %p140
    %p142 = scmp.ne.s32.totalorder %s133, %s134
    %p143 = scmp.eq.s32.totalorder %s18, 0
    %p144 = por %p142, %p143
    %p145 = scmp.ne.s32.totalorder %s133, %s134
    %p146 = scmp.eq.s32.totalorder %s19, 1
    %p147 = por %p145, %p146
    %p149 = scmp.ne.s32.totalorder %s134, %s148
    %p150 = scmp.eq.s32.totalorder %s19, 0
    %p151 = por %p149, %p150
    %s153 = sadd.s32 %s152, 1
    %p156 = scmp.eq.s32.totalorder %s13, 1
    %p157 = scmp.ne.s32.totalorder %s152, %s154
    %p158 = scmp.eq.s32.totalorder %s13, 0
    %p159 = por %p157, %p158
    %p160 = scmp.ne.s32.totalorder %s152, %s154
    %p161 = scmp.eq.s32.totalorder %s18, 1
    %p162 = por %p160, %p161
    %p163 = scmp.ne.s32.totalorder %s154, %s155
    %p164 = scmp.eq.s32.totalorder %s18, 0
    %p165 = por %p163, %p164
    %p166 = scmp.ne.s32.totalorder %s154, %s155
    %p167 = scmp.eq.s32.totalorder %s19, 1
    %p168 = por %p166, %p167
    %p170 = scmp.ne.s32.totalorder %s155, %s169
    %p171 = scmp.eq.s32.totalorder %s19, 0
    %p172 = por %p170, %p171
    %s173 = ssub.s32 %s13, %s20
    %p174 = scmp.eq.s32.totalorder %s173, 0
    %s176 = sadd.s32 %s175, 1
    %s177 = scalar_select %p174, %s175, %s176
    %p180 = pneg %p174
    %p181 = scmp.eq.s32.totalorder %s13, 1
    %p182 = por %p180, %p181
    %p183 = scmp.ne.s32.totalorder %s175, %s178
    %p184 = scmp.eq.s32.totalorder %s13, 0
    %p185 = por %p183, %p184
    %p186 = scmp.ne.s32.totalorder %s175, %s178
    %p187 = scmp.eq.s32.totalorder %s18, 1
    %p188 = por %p186, %p187
    %p189 = scmp.ne.s32.totalorder %s178, %s179
    %p190 = scmp.eq.s32.totalorder %s18, 0
    %p191 = por %p189, %p190
    %p192 = scmp.ne.s32.totalorder %s178, %s179
    %p193 = scmp.eq.s32.totalorder %s19, 1
    %p194 = por %p192, %p193
    %p196 = scmp.ne.s32.totalorder %s179, %s195
    %p197 = scmp.eq.s32.totalorder %s19, 0
    %p198 = por %p196, %p197
    %p199 = scmp.le.s32.totalorder 1, %s13
    %p200 = scmp.lt.s32.totalorder %s13, 3
    %p201 = pnand %p199, %p200
    %p202 = pneg %p201
    // Predicated region
    $region9: #{block_forward.4} parent=5 // pred_check
      _
    $region10: #{block_forward.4} parent=5 // pred_check_branch
      %204 = sbr.rel (%p201) target = $region12
    $region11: #{block_forward.4} parent=5 // pred_region
      %s205 = ssub.s32 %s13, 1
      // Predicated region
      $region13: #{block_forward.4} parent=11 // pred_check
        %p206 = pneg %p60
      $region14: #{block_forward.4} parent=11 // pred_check_branch
        %208 = sbr.rel (%p206) target = $region16
      $region15: #{block_forward.4} parent=11 // pred_region
        _
      $region16: #{block_forward.4} parent=11 // pred_fallthru
        _
      // Predicated region
      $region17: #{block_forward.4} parent=11 // pred_check
        %p209 = pneg %p81
      $region18: #{block_forward.4} parent=11 // pred_check_branch
        %211 = sbr.rel (%p209) target = $region20
      $region19: #{block_forward.4} parent=11 // pred_region
        _
      $region20: #{block_forward.4} parent=11 // pred_fallthru
        _
      // Predicated region
      $region21: #{block_forward.4} parent=11 // pred_check
        %p212 = pneg %p102
      $region22: #{block_forward.4} parent=11 // pred_check_branch
        %214 = sbr.rel (%p212) target = $region24
      $region23: #{block_forward.4} parent=11 // pred_region
        _
      $region24: #{block_forward.4} parent=11 // pred_fallthru
        _
      // Predicated region
      $region25: #{block_forward.4} parent=11 // pred_check
        %p215 = pneg %p123
      $region26: #{block_forward.4} parent=11 // pred_check_branch
        %217 = sbr.rel (%p215) target = $region28
      $region27: #{block_forward.4} parent=11 // pred_region
        _
      $region28: #{block_forward.4} parent=11 // pred_fallthru
        _
      // Predicated region
      $region29: #{block_forward.4} parent=11 // pred_check
        %p218 = pneg %p144
      $region30: #{block_forward.4} parent=11 // pred_check_branch
        %220 = sbr.rel (%p218) target = $region32
      $region31: #{block_forward.4} parent=11 // pred_region
        _
      $region32: #{block_forward.4} parent=11 // pred_fallthru
        _
      // Predicated region
      $region33: #{block_forward.4} parent=11 // pred_check
        %p221 = pneg %p165
      $region34: #{block_forward.4} parent=11 // pred_check_branch
        %223 = sbr.rel (%p221) target = $region36
      $region35: #{block_forward.4} parent=11 // pred_region
        _
      $region36: #{block_forward.4} parent=11 // pred_fallthru
        _
    $region12: #{block_forward.4} parent=5 // pred_fallthru
      _
    %p224 = scmp.lt.s32.totalorder %s13, 2
    // Predicated region
    $region37: #{block_forward.4} parent=5 // pred_check
      %p225 = pneg %p224
    $region38: #{block_forward.4} parent=5 // pred_check_branch
      %227 = sbr.rel (%p225) target = $region40
    $region39: #{block_forward.4} parent=5 // pred_region
      // Predicated region
      $region41: #{block_forward.4} parent=39 // pred_check
        %p228 = pneg %p33
      $region42: #{block_forward.4} parent=39 // pred_check_branch
        %230 = sbr.rel (%p228) target = $region44
      $region43: #{block_forward.4} parent=39 // pred_region
        %s231 = smul.u32 4, %s13
        %p232 = scmp.lt.s32.totalorder %s231, 7
        %s233 = scalar_select %p232, %s231, 7
        %s234 = smul.addr %s233, 8
        %s235 = scalar_lea.vmem %s0, %s234
        %s236 = smul.u32 4, %s13
      $region44: #{block_forward.4} parent=39 // pred_fallthru
        _
    $region40: #{block_forward.4} parent=5 // pred_fallthru
      _
    %p237 = scmp.le.s32.totalorder 1, %s13
    %p238 = scmp.lt.s32.totalorder %s13, 3
    %p239 = pnand %p237, %p238
    %p240 = pneg %p239
    // Predicated region
    $region45: #{block_forward.4} parent=5 // pred_check
      _
    $region46: #{block_forward.4} parent=5 // pred_check_branch
      %242 = sbr.rel (%p239) target = $region48
    $region47: #{block_forward.4} parent=5 // pred_region
      %s243 = ssub.s32 %s13, 1
      %s244 = smul.u32 4, %s18
      %p245 = scmp.lt.s32.totalorder %s244, 7
      %s246 = scalar_select %p245, %s244, 7
      %s247 = smul.addr %s246, 8
      %s248 = scalar_lea.vmem %s0, %s247
      %p249 = pneg %p39
      %p250 = pneg %p36
      %p251 = pneg %p60
      %p252 = pneg %p57
      %p253 = pneg %p81
      %p254 = pneg %p78
      %p255 = pneg %p102
      %p256 = pneg %p99
      %p257 = pneg %p123
      %p258 = pneg %p120
      %p259 = pneg %p144
      %p260 = pneg %p141
      %p261 = pneg %p165
      %p262 = pneg %p162
      %p263 = pneg %p191
      %p264 = pneg %p188
      %p265 = scmp.lt.s32.totalorder %s18, 1
      %s266 = scalar_select %p265, %s18, 1
      %s267 = smul.addr %s266, 4
      %s268 = smul.addr %s267, 8
      %s269 = scalar_lea.vmem %s7, %s268
      %s270 = smul.u32 4, %s18
      %p271 = scmp.lt.s32.totalorder %s270, 7
      %s272 = scalar_select %p271, %s270, 7
      %s273 = smul.addr %s272, 8
      %s274 = scalar_lea.vmem %s0, %s273
      %s275 = smul.u32 4, %s18
      %p276 = scmp.lt.s32.totalorder %s18, 1
      %s277 = scalar_select %p276, %s18, 1
      %s278 = smul.addr %s277, 4
      %s279 = smul.addr %s278, 8
      %s280 = scalar_lea.vmem %s7, %s279
      %v281 = vlaneseq
      %v282 = vand.u32 %v281, 127
      %vm283 = vcmp.lt.s32.totalorder %v282, 0
      %v284 = vsub.s32 0, %v282
      %v285 = vsel %vm283, %v284, %v282
      %v286 = vmul.u32.u64.compose %v285, 3817748708
      %v287 = vextract.low.u32 %v286
      %v288 = vextract.high.u32 %v286
      %v289 = vshrl.u32 %v288, 3
      %v290 = vmul.u32 %v289, 9
      %v291 = vsub.s32 %v285, %v290
      %v292 = vsub.s32 0, %v291
      %v293 = vsel %vm283, %v292, %v291
      %vm294 = vcmp.ne.s32.totalorder %v293, 0
      %vm295 = vcmp.lt.s32.totalorder %v293, 0
      %vm296 = vmand %vm295, %vm294
      %v297 = vadd.s32 %v293, 9
      %v298 = vsel %vm296, %v297, %v293
      %vm299 = vcmp.lt.s32.totalorder %v298, 8
      %v300 = vsel %vm299, 1, 0
      %v301 = vcvt.s32.f32 %v300
      %v302 = vld [vmem:[%s274] sm:$0xff]
      %s303 = scalar_lea.vmem %s274, 8
      %v304 = vld [vmem:[%s303] sm:$0xff]
      %s305 = scalar_lea.vmem %s274, 16
      %v306 = vld [vmem:[%s305] sm:$0xff]
      %s307 = scalar_lea.vmem %s274, 24
      %v308 = vld [vmem:[%s307] sm:$0xff]
      %v309 = vld [vmem:[%s1] sm:$0xff]
      %311 = vset.pattern.permute.xlu0 0
      %312 = vperm.xlu0 %311, %v309
      %v313 = vpop.permute.xlu0 %312
      %v315 = vmul.f32 %v302, %v313
      %s316 = scalar_lea.vmem %s1, 8
      %v317 = vld [vmem:[%s316] sm:$0xff]
      %319 = vset.pattern.permute.xlu0 0
      %320 = vperm.xlu0 %319, %v317
      %v321 = vpop.permute.xlu0 %320
      %v323 = vmul.f32 %v304, %v321
      %v324 = vadd.f32 %v315, %v323
      %s325 = scalar_lea.vmem %s1, 16
      %v326 = vld [vmem:[%s325] sm:$0xff]
      %328 = vset.pattern.permute.xlu0 0
      %329 = vperm.xlu0 %328, %v326
      %v330 = vpop.permute.xlu0 %329
      %v332 = vmul.f32 %v302, %v330
      %334 = vrot.lane.b32.xlu0 %v332, 127
      %v335 = vpop.permute.xlu0 %334
      %v337 = vadd.f32 %v324, %v335
      %s338 = scalar_lea.vmem %s1, 24
      %v339 = vld [vmem:[%s338] sm:$0xff]
      %341 = vset.pattern.permute.xlu0 0
      %342 = vperm.xlu0 %341, %v339
      %v343 = vpop.permute.xlu0 %342
      %v345 = vmul.f32 %v306, %v343
      %v346 = vadd.f32 %v337, %v345
      %s347 = scalar_lea.vmem %s1, 32
      %v348 = vld [vmem:[%s347] sm:$0xff]
      %350 = vset.pattern.permute.xlu0 0
      %351 = vperm.xlu0 %350, %v348
      %v352 = vpop.permute.xlu0 %351
      %v354 = vmul.f32 %v308, %v352
      %v355 = vadd.f32 %v346, %v354
      %s356 = scalar_lea.vmem %s1, 40
      %v357 = vld [vmem:[%s356] sm:$0xff]
      %359 = vset.pattern.permute.xlu0 0
      %360 = vperm.xlu0 %359, %v357
      %v361 = vpop.permute.xlu0 %360
      %v363 = vmul.f32 %v306, %v361
      %365 = vrot.lane.b32.xlu0 %v363, 127
      %v366 = vpop.permute.xlu0 %365
      %v368 = vadd.f32 %v355, %v366
      %s369 = scalar_lea.vmem %s1, 48
      %v370 = vld [vmem:[%s369] sm:$0xff]
      %372 = vset.pattern.permute.xlu0 0
      %373 = vperm.xlu0 %372, %v370
      %v374 = vpop.permute.xlu0 %373
      %v376 = vmul.f32 %v302, %v374
      %378 = vrot.lane.b32.xlu0 %v376, 119
      %v379 = vpop.permute.xlu0 %378
      %v381 = vadd.f32 %v368, %v379
      %s382 = scalar_lea.vmem %s1, 56
      %v383 = vld [vmem:[%s382] sm:$0xff]
      %385 = vset.pattern.permute.xlu0 0
      %386 = vperm.xlu0 %385, %v383
      %v387 = vpop.permute.xlu0 %386
      %v389 = vmul.f32 %v304, %v387
      %391 = vrot.lane.b32.xlu0 %v389, 119
      %v392 = vpop.permute.xlu0 %391
      %v394 = vadd.f32 %v381, %v392
      %s395 = scalar_lea.vmem %s1, 64
      %v396 = vld [vmem:[%s395] sm:$0xff]
      %398 = vset.pattern.permute.xlu0 0
      %399 = vperm.xlu0 %398, %v396
      %v400 = vpop.permute.xlu0 %399
      %v402 = vmul.f32 %v302, %v400
      %404 = vrot.lane.b32.xlu0 %v402, 118
      %v405 = vpop.permute.xlu0 %404
      %v407 = vadd.f32 %v394, %v405
      %v408 = vld [vmem:[%s2] sm:$0xff]
      %410 = vset.pattern.permute.xlu0 0
      %411 = vperm.xlu0 %410, %v408
      %v412 = vpop.permute.xlu0 %411
      %v414 = vadd.f32 %v407, %v412
      %v415 = vld [vmem:[%s3] sm:$0xff]
      %417 = vset.pattern.permute.xlu0 0
      %418 = vperm.xlu0 %417, %v415
      %v419 = vpop.permute.xlu0 %418
      %v421 = vmul.f32 %v414, %v419
      %v422 = vld [vmem:[%s4] sm:$0xff]
      %424 = vset.pattern.permute.xlu0 0
      %425 = vperm.xlu0 %424, %v422
      %v426 = vpop.permute.xlu0 %425
      %v428 = vadd.f32 %v421, %v426
      %v429 = vmax.f32 %v428, 0.0
      %v430 = vld [vmem:[%s5] sm:$0xff]
      %v431 = vld [vmem:[%s6] sm:$0xff]
      %433 = vset.pattern.permute.xlu0 0
      %434 = vperm.xlu0 %433, %v431
      %v435 = vpop.permute.xlu0 %434
      %vm437 = vcmask 64512
      %v439 = vsel %vm437, %v430, 0
      %441 = vmatprep.subr.mxu0 0.0
      %442 = vmatpush1.msra.mxu0 %v429
      %443 = vmatprep.subr.mxu0 0.0
      %444 = vmatpush1.msra.mxu0 0.0
      %445 = vmatprep.subr.mxu0 0.0
      %446 = vmatpush1.msra.mxu0 0.0
      %447 = vmatprep.subr.mxu0 0.0
      %448 = vmatpush1.msra.mxu0 0.0
      %449 = vmatprep.subr.mxu0 0.0
      %450 = vmatpush1.msra.mxu0 0.0
      %451 = vmatprep.subr.mxu0 0.0
      %452 = vmatpush1.msra.mxu0 0.0
      %453 = vmatprep.subr.mxu0 0.0
      %454 = vmatpush1.msra.mxu0 0.0
      %455 = vmatprep.subr.mxu0 0.0
      %456 = vmatpush1.msra.mxu0 0.0
      %457 = vmatprep.subr.mxu0 0.0
      %458 = vmatpush1.msra.mxu0 0.0
      %459 = vmatprep.subr.mxu0 0.0
      %460 = vmatpush1.msra.mxu0 0.0
      %461 = vmatprep.subr.mxu0 0.0
      %462 = vmatpush1.msra.mxu0 0.0
      %463 = vmatprep.subr.mxu0 0.0
      %464 = vmatpush1.msra.mxu0 0.0
      %465 = vmatprep.subr.mxu0 0.0
      %466 = vmatpush1.msra.mxu0 0.0
      %467 = vmatprep.subr.mxu0 0.0
      %468 = vmatpush1.msra.mxu0 0.0
      %469 = vmatprep.subr.mxu0 0.0
      %470 = vmatpush1.msra.mxu0 0.0
      %471 = vmatprep.subr.mxu0 0.0
      %472 = vmatpush1.msra.mxu0 0.0
      %473 = vmatprep.subr.mxu0 0.0
      %474 = vmatpush1.msra.mxu0 0.0
      %475 = vmatprep.subr.mxu0 0.0
      %476 = vmatpush1.msra.mxu0 0.0
      %477 = vmatprep.subr.mxu0 0.0
      %478 = vmatpush1.msra.mxu0 0.0
      %479 = vmatprep.subr.mxu0 0.0
      %480 = vmatpush1.msra.mxu0 0.0
      %481 = vmatprep.subr.mxu0 0.0
      %482 = vmatpush1.msra.mxu0 0.0
      %483 = vmatprep.subr.mxu0 0.0
      %484 = vmatpush1.msra.mxu0 0.0
      %485 = vmatprep.subr.mxu0 0.0
      %486 = vmatpush1.msra.mxu0 0.0
      %487 = vmatprep.subr.mxu0 0.0
      %488 = vmatpush1.msra.mxu0 0.0
      %489 = vmatprep.subr.mxu0 0.0
      %490 = vmatpush1.msra.mxu0 0.0
      %491 = vmatprep.subr.mxu0 0.0
      %492 = vmatpush1.msra.mxu0 0.0
      %493 = vmatprep.subr.mxu0 0.0
      %494 = vmatpush1.msra.mxu0 0.0
      %495 = vmatprep.subr.mxu0 0.0
      %496 = vmatpush1.msra.mxu0 0.0
      %497 = vmatprep.subr.mxu0 0.0
      %498 = vmatpush1.msra.mxu0 0.0
      %499 = vmatprep.subr.mxu0 0.0
      %500 = vmatpush1.msra.mxu0 0.0
      %501 = vmatprep.subr.mxu0 0.0
      %502 = vmatpush1.msra.mxu0 0.0
      %503 = vmatprep.subr.mxu0 0.0
      %504 = vmatpush1.msra.mxu0 0.0
      %505 = vmatprep.mubr.f32.mxu0 0.0
      %506 = vmatmul.mubr.f32.gmra.mrb[0].mxu0 %v439
      %v507 = vpop.f32.mrb[0].mxu0
      %v508 = vadd.f32 %v435, %v507
      %v509 = vpop.f32.mrb[0].mxu0
      %510 = vdwg.mxu0
      %v511 = vmul.f32 %v508, %v301
      %vm512 = vcmask 588800
      %v513 = vsel %vm512, %v511, 0.0
      %514 = vadd.xlane.f32.xlu0 %v513
      %v515 = vpop.xlane.xlu0 %514
      %v516 = vmul.f32 %v515, 0.015625
      %v517 = vsub.f32 %v508, %v516
      %v518 = vmul.f32 %v517, %v301
      %v519 = vmul.f32 %v518, %v518
      %v520 = vsel %vm512, %v519, 0.0
      %521 = vadd.xlane.f32.xlu0 %v520
      %v522 = vpop.xlane.xlu0 %521
      %vm523 = vcmask 7168
      %v524 = vsel %vm523, %v515, %v522
      %vm525 = vcmask 15360
      %526 = vst.msk [vmem:[%s280] sm:$0xff] %vm525, %v524
      %s527 = scalar_lea.vmem %s1, 72
      %v528 = vld [vmem:[%s527] sm:$0xff]
      %530 = vset.pattern.permute.xlu0 0
      %531 = vperm.xlu0 %530, %v528
      %v532 = vpop.permute.xlu0 %531
      %v534 = vmul.f32 %v302, %v532
      %s535 = scalar_lea.vmem %s1, 80
      %v536 = vld [vmem:[%s535] sm:$0xff]
      %538 = vset.pattern.permute.xlu0 0
      %539 = vperm.xlu0 %538, %v536
      %v540 = vpop.permute.xlu0 %539
      %v542 = vmul.f32 %v304, %v540
      %v543 = vadd.f32 %v534, %v542
      %s544 = scalar_lea.vmem %s1, 88
      %v545 = vld [vmem:[%s544] sm:$0xff]
      %547 = vset.pattern.permute.xlu0 0
      %548 = vperm.xlu0 %547, %v545
      %v549 = vpop.permute.xlu0 %548
      %v551 = vmul.f32 %v302, %v549
      %553 = vrot.lane.b32.xlu0 %v551, 127
      %v554 = vpop.permute.xlu0 %553
      %v556 = vadd.f32 %v543, %v554
      %s557 = scalar_lea.vmem %s1, 96
      %v558 = vld [vmem:[%s557] sm:$0xff]
      %560 = vset.pattern.permute.xlu0 0
      %561 = vperm.xlu0 %560, %v558
      %v562 = vpop.permute.xlu0 %561
      %v564 = vmul.f32 %v306, %v562
      %v565 = vadd.f32 %v556, %v564
      %s566 = scalar_lea.vmem %s1, 104
      %v567 = vld [vmem:[%s566] sm:$0xff]
      %569 = vset.pattern.permute.xlu0 0
      %570 = vperm.xlu0 %569, %v567
      %v571 = vpop.permute.xlu0 %570
      %v573 = vmul.f32 %v308, %v571
      %v574 = vadd.f32 %v565, %v573
      %s575 = scalar_lea.vmem %s1, 112
      %v576 = vld [vmem:[%s575] sm:$0xff]
      %578 = vset.pattern.permute.xlu0 0
      %579 = vperm.xlu0 %578, %v576
      %v580 = vpop.permute.xlu0 %579
      %v582 = vmul.f32 %v306, %v580
      %584 = vrot.lane.b32.xlu0 %v582, 127
      %v585 = vpop.permute.xlu0 %584
      %v587 = vadd.f32 %v574, %v585
      %s588 = scalar_lea.vmem %s1, 120
      %v589 = vld [vmem:[%s588] sm:$0xff]
      %591 = vset.pattern.permute.xlu0 0
      %592 = vperm.xlu0 %591, %v589
      %v593 = vpop.permute.xlu0 %592
      %v595 = vmul.f32 %v302, %v593
      %597 = vrot.lane.b32.xlu0 %v595, 119
      %v598 = vpop.permute.xlu0 %597
      %v600 = vadd.f32 %v587, %v598
      %s601 = scalar_lea.vmem %s1, 128
      %v602 = vld [vmem:[%s601] sm:$0xff]
      %604 = vset.pattern.permute.xlu0 0
      %605 = vperm.xlu0 %604, %v602
      %v606 = vpop.permute.xlu0 %605
      %v608 = vmul.f32 %v304, %v606
      %610 = vrot.lane.b32.xlu0 %v608, 119
      %v611 = vpop.permute.xlu0 %610
      %v613 = vadd.f32 %v600, %v611
      %s614 = scalar_lea.vmem %s1, 136
      %v615 = vld [vmem:[%s614] sm:$0xff]
      %617 = vset.pattern.permute.xlu0 0
      %618 = vperm.xlu0 %617, %v615
      %v619 = vpop.permute.xlu0 %618
      %v621 = vmul.f32 %v302, %v619
      %623 = vrot.lane.b32.xlu0 %v621, 118
      %v624 = vpop.permute.xlu0 %623
      %v626 = vadd.f32 %v613, %v624
      %s627 = scalar_lea.vmem %s2, 8
      %v628 = vld [vmem:[%s627] sm:$0xff]
      %630 = vset.pattern.permute.xlu0 0
      %631 = vperm.xlu0 %630, %v628
      %v632 = vpop.permute.xlu0 %631
      %v634 = vadd.f32 %v626, %v632
      %v635 = vld [vmem:[%s3 + $0x8] sm:$0xff]
      %637 = vset.pattern.permute.xlu0 0
      %638 = vperm.xlu0 %637, %v635
      %v639 = vpop.permute.xlu0 %638
      %v641 = vmul.f32 %v634, %v639
      %v642 = vld [vmem:[%s4 + $0x8] sm:$0xff]
      %644 = vset.pattern.permute.xlu0 0
      %645 = vperm.xlu0 %644, %v642
      %v646 = vpop.permute.xlu0 %645
      %v648 = vadd.f32 %v641, %v646
      %v649 = vmax.f32 %v648, 0.0
      %v650 = vld [vmem:[%s5 + $0x8] sm:$0xff]
      %v651 = vld [vmem:[%s5 + $0x10] sm:$0xff]
      %v652 = vld [vmem:[%s6 + $0x8] sm:$0xff]
      %v653 = vld [vmem:[%s6 + $0x10] sm:$0xff]
      %655 = vset.pattern.permute.xlu0 0
      %656 = vperm.xlu0 %655, %v652
      %v657 = vpop.permute.xlu0 %656
      %660 = vset.pattern.permute.xlu0 0
      %661 = vperm.xlu0 %660, %v653
      %v662 = vpop.permute.xlu0 %661
      %v665 = vsel %vm437, %v650, 0
      %v668 = vsel %vm437, %v651, 0
      %670 = vmatprep.subr.mxu0 0.0
      %671 = vmatpush1.msra.mxu0 %v649
      %672 = vmatprep.subr.mxu0 0.0
      %673 = vmatpush1.msra.mxu0 0.0
      %674 = vmatprep.subr.mxu0 0.0
      %675 = vmatpush1.msra.mxu0 0.0
      %676 = vmatprep.subr.mxu0 0.0
      %677 = vmatpush1.msra.mxu0 0.0
      %678 = vmatprep.subr.mxu0 0.0
      %679 = vmatpush1.msra.mxu0 0.0
      %680 = vmatprep.subr.mxu0 0.0
      %681 = vmatpush1.msra.mxu0 0.0
      %682 = vmatprep.subr.mxu0 0.0
      %683 = vmatpush1.msra.mxu0 0.0
      %684 = vmatprep.subr.mxu0 0.0
      %685 = vmatpush1.msra.mxu0 0.0
      %686 = vmatprep.subr.mxu0 0.0
      %687 = vmatpush1.msra.mxu0 0.0
      %688 = vmatprep.subr.mxu0 0.0
      %689 = vmatpush1.msra.mxu0 0.0
      %690 = vmatprep.subr.mxu0 0.0
      %691 = vmatpush1.msra.mxu0 0.0
      %692 = vmatprep.subr.mxu0 0.0
      %693 = vmatpush1.msra.mxu0 0.0
      %694 = vmatprep.subr.mxu0 0.0
      %695 = vmatpush1.msra.mxu0 0.0
      %696 = vmatprep.subr.mxu0 0.0
      %697 = vmatpush1.msra.mxu0 0.0
      %698 = vmatprep.subr.mxu0 0.0
      %699 = vmatpush1.msra.mxu0 0.0
      %700 = vmatprep.subr.mxu0 0.0
      %701 = vmatpush1.msra.mxu0 0.0
      %702 = vmatprep.subr.mxu0 0.0
      %703 = vmatpush1.msra.mxu0 0.0
      %704 = vmatprep.subr.mxu0 0.0
      %705 = vmatpush1.msra.mxu0 0.0
      %706 = vmatprep.subr.mxu0 0.0
      %707 = vmatpush1.msra.mxu0 0.0
      %708 = vmatprep.subr.mxu0 0.0
      %709 = vmatpush1.msra.mxu0 0.0
      %710 = vmatprep.subr.mxu0 0.0
      %711 = vmatpush1.msra.mxu0 0.0
      %712 = vmatprep.subr.mxu0 0.0
      %713 = vmatpush1.msra.mxu0 0.0
      %714 = vmatprep.subr.mxu0 0.0
      %715 = vmatpush1.msra.mxu0 0.0
      %716 = vmatprep.subr.mxu0 0.0
      %717 = vmatpush1.msra.mxu0 0.0
      %718 = vmatprep.subr.mxu0 0.0
      %719 = vmatpush1.msra.mxu0 0.0
      %720 = vmatprep.subr.mxu0 0.0
      %721 = vmatpush1.msra.mxu0 0.0
      %722 = vmatprep.subr.mxu0 0.0
      %723 = vmatpush1.msra.mxu0 0.0
      %724 = vmatprep.subr.mxu0 0.0
      %725 = vmatpush1.msra.mxu0 0.0
      %726 = vmatprep.subr.mxu0 0.0
      %727 = vmatpush1.msra.mxu0 0.0
      %728 = vmatprep.subr.mxu0 0.0
      %729 = vmatpush1.msra.mxu0 0.0
      %730 = vmatprep.subr.mxu0 0.0
      %731 = vmatpush1.msra.mxu0 0.0
      %732 = vmatprep.subr.mxu0 0.0
      %733 = vmatpush1.msra.mxu0 0.0
      %734 = vmatprep.mubr.f32.mxu0 0.0
      %735 = vmatmul.mubr.f32.gmra.mrb[0].mxu0 %v665
      %v736 = vpop.f32.mrb[0].mxu0
      %v737 = vadd.f32 %v657, %v736
      %v738 = vpop.f32.mrb[0].mxu0
      %739 = vmatprep.mubr.f32.mxu0 0.0
      %740 = vmatmul.mubr.f32.gmra.mrb[0].mxu0 %v668
      %v741 = vpop.f32.mrb[0].mxu0
      %v742 = vadd.f32 %v662, %v741
      %v743 = vpop.f32.mrb[0].mxu0
      %744 = vdwg.mxu0
      %v745 = vmul.f32 %v737, %v301
      %v746 = vmul.f32 %v742, %v301
      %v747 = vsel %vm512, %v745, 0.0
      %748 = vadd.xlane.f32.xlu0 %v747
      %v749 = vpop.xlane.xlu0 %748
      %v750 = vsel %vm512, %v746, 0.0
      %751 = vadd.xlane.f32.xlu0 %v750
      %v752 = vpop.xlane.xlu0 %751
      %v753 = vmul.f32 %v749, 0.015625
      %v754 = vmul.f32 %v752, 0.015625
      %v755 = vsub.f32 %v737, %v753
      %v756 = vsub.f32 %v742, %v754
      %v757 = vmul.f32 %v755, %v301
      %v758 = vmul.f32 %v756, %v301
      %v759 = vmul.f32 %v757, %v757
      %v760 = vmul.f32 %v758, %v758
      %v761 = vsel %vm512, %v759, 0.0
      %762 = vadd.xlane.f32.xlu0 %v761
      %v763 = vpop.xlane.xlu0 %762
      %v764 = vsel %vm512, %v760, 0.0
      %765 = vadd.xlane.f32.xlu0 %v764
      %v766 = vpop.xlane.xlu0 %765
      %v767 = vsel %vm523, %v749, %v763
      %v768 = vsel %vm523, %v752, %v766
      %769 = vst.msk [vmem:[%s280 + $0x8] sm:$0xff] %vm525, %v767
      %770 = vst.msk [vmem:[%s280 + $0x10] sm:$0xff] %vm525, %v768
      %s771 = scalar_lea.vmem %s1, 144
      %v772 = vld [vmem:[%s771] sm:$0xff]
      %774 = vset.pattern.permute.xlu0 0
      %775 = vperm.xlu0 %774, %v772
      %v776 = vpop.permute.xlu0 %775
      %v778 = vmul.f32 %v302, %v776
      %s779 = scalar_lea.vmem %s1, 152
      %v780 = vld [vmem:[%s779] sm:$0xff]
      %782 = vset.pattern.permute.xlu0 0
      %783 = vperm.xlu0 %782, %v780
      %v784 = vpop.permute.xlu0 %783
      %v786 = vmul.f32 %v304, %v784
      %v787 = vadd.f32 %v778, %v786
      %s788 = scalar_lea.vmem %s1, 160
      %v789 = vld [vmem:[%s788] sm:$0xff]
      %791 = vset.pattern.permute.xlu0 0
      %792 = vperm.xlu0 %791, %v789
      %v793 = vpop.permute.xlu0 %792
      %v795 = vmul.f32 %v302, %v793
      %797 = vrot.lane.b32.xlu0 %v795, 127
      %v798 = vpop.permute.xlu0 %797
      %v800 = vadd.f32 %v787, %v798
      %s801 = scalar_lea.vmem %s1, 168
      %v802 = vld [vmem:[%s801] sm:$0xff]
      %804 = vset.pattern.permute.xlu0 0
      %805 = vperm.xlu0 %804, %v802
      %v806 = vpop.permute.xlu0 %805
      %v808 = vmul.f32 %v306, %v806
      %v809 = vadd.f32 %v800, %v808
      %s810 = scalar_lea.vmem %s1, 176
      %v811 = vld [vmem:[%s810] sm:$0xff]
      %813 = vset.pattern.permute.xlu0 0
      %814 = vperm.xlu0 %813, %v811
      %v815 = vpop.permute.xlu0 %814
      %v817 = vmul.f32 %v308, %v815
      %v818 = vadd.f32 %v809, %v817
      %s819 = scalar_lea.vmem %s1, 184
      %v820 = vld [vmem:[%s819] sm:$0xff]
      %822 = vset.pattern.permute.xlu0 0
      %823 = vperm.xlu0 %822, %v820
      %v824 = vpop.permute.xlu0 %823
      %v826 = vmul.f32 %v306, %v824
      %828 = vrot.lane.b32.xlu0 %v826, 127
      %v829 = vpop.permute.xlu0 %828
      %v831 = vadd.f32 %v818, %v829
      %s832 = scalar_lea.vmem %s1, 192
      %v833 = vld [vmem:[%s832] sm:$0xff]
      %835 = vset.pattern.permute.xlu0 0
      %836 = vperm.xlu0 %835, %v833
      %v837 = vpop.permute.xlu0 %836
      %v839 = vmul.f32 %v302, %v837
      %841 = vrot.lane.b32.xlu0 %v839, 119
      %v842 = vpop.permute.xlu0 %841
      %v844 = vadd.f32 %v831, %v842
      %s845 = scalar_lea.vmem %s1, 200
      %v846 = vld [vmem:[%s845] sm:$0xff]
      %848 = vset.pattern.permute.xlu0 0
      %849 = vperm.xlu0 %848, %v846
      %v850 = vpop.permute.xlu0 %849
      %v852 = vmul.f32 %v304, %v850
      %854 = vrot.lane.b32.xlu0 %v852, 119
      %v855 = vpop.permute.xlu0 %854
      %v857 = vadd.f32 %v844, %v855
      %s858 = scalar_lea.vmem %s1, 208
      %v859 = vld [vmem:[%s858] sm:$0xff]
      %861 = vset.pattern.permute.xlu0 0
      %862 = vperm.xlu0 %861, %v859
      %v863 = vpop.permute.xlu0 %862
      %v865 = vmul.f32 %v302, %v863
      %867 = vrot.lane.b32.xlu0 %v865, 118
      %v868 = vpop.permute.xlu0 %867
      %v870 = vadd.f32 %v857, %v868
      %s871 = scalar_lea.vmem %s2, 16
      %v872 = vld [vmem:[%s871] sm:$0xff]
      %874 = vset.pattern.permute.xlu0 0
      %875 = vperm.xlu0 %874, %v872
      %v876 = vpop.permute.xlu0 %875
      %v878 = vadd.f32 %v870, %v876
      %v879 = vld [vmem:[%s3 + $0x10] sm:$0xff]
      %881 = vset.pattern.permute.xlu0 0
      %882 = vperm.xlu0 %881, %v879
      %v883 = vpop.permute.xlu0 %882
      %v885 = vmul.f32 %v878, %v883
      %v886 = vld [vmem:[%s4 + $0x10] sm:$0xff]
      %888 = vset.pattern.permute.xlu0 0
      %889 = vperm.xlu0 %888, %v886
      %v890 = vpop.permute.xlu0 %889
      %v892 = vadd.f32 %v885, %v890
      %v893 = vmax.f32 %v892, 0.0
      %v894 = vld [vmem:[%s5 + $0x18] sm:$0xff]
      %v895 = vld [vmem:[%s6 + $0x18] sm:$0xff]
      %897 = vset.pattern.permute.xlu0 0
      %898 = vperm.xlu0 %897, %v895
      %v899 = vpop.permute.xlu0 %898
      %v902 = vsel %vm437, %v894, 0
      %904 = vmatprep.subr.mxu0 0.0
      %905 = vmatpush1.msra.mxu0 %v893
      %906 = vmatprep.subr.mxu0 0.0
      %907 = vmatpush1.msra.mxu0 0.0
      %908 = vmatprep.subr.mxu0 0.0
      %909 = vmatpush1.msra.mxu0 0.0
      %910 = vmatprep.subr.mxu0 0.0
      %911 = vmatpush1.msra.mxu0 0.0
      %912 = vmatprep.subr.mxu0 0.0
      %913 = vmatpush1.msra.mxu0 0.0
      %914 = vmatprep.subr.mxu0 0.0
      %915 = vmatpush1.msra.mxu0 0.0
      %916 = vmatprep.subr.mxu0 0.0
      %917 = vmatpush1.msra.mxu0 0.0
      %918 = vmatprep.subr.mxu0 0.0
      %919 = vmatpush1.msra.mxu0 0.0
      %920 = vmatprep.subr.mxu0 0.0
      %921 = vmatpush1.msra.mxu0 0.0
      %922 = vmatprep.subr.mxu0 0.0
      %923 = vmatpush1.msra.mxu0 0.0
      %924 = vmatprep.subr.mxu0 0.0
      %925 = vmatpush1.msra.mxu0 0.0
      %926 = vmatprep.subr.mxu0 0.0
      %927 = vmatpush1.msra.mxu0 0.0
      %928 = vmatprep.subr.mxu0 0.0
      %929 = vmatpush1.msra.mxu0 0.0
      %930 = vmatprep.subr.mxu0 0.0
      %931 = vmatpush1.msra.mxu0 0.0
      %932 = vmatprep.subr.mxu0 0.0
      %933 = vmatpush1.msra.mxu0 0.0
      %934 = vmatprep.subr.mxu0 0.0
      %935 = vmatpush1.msra.mxu0 0.0
      %936 = vmatprep.subr.mxu0 0.0
      %937 = vmatpush1.msra.mxu0 0.0
      %938 = vmatprep.subr.mxu0 0.0
      %939 = vmatpush1.msra.mxu0 0.0
      %940 = vmatprep.subr.mxu0 0.0
      %941 = vmatpush1.msra.mxu0 0.0
      %942 = vmatprep.subr.mxu0 0.0
      %943 = vmatpush1.msra.mxu0 0.0
      %944 = vmatprep.subr.mxu0 0.0
      %945 = vmatpush1.msra.mxu0 0.0
      %946 = vmatprep.subr.mxu0 0.0
      %947 = vmatpush1.msra.mxu0 0.0
      %948 = vmatprep.subr.mxu0 0.0
      %949 = vmatpush1.msra.mxu0 0.0
      %950 = vmatprep.subr.mxu0 0.0
      %951 = vmatpush1.msra.mxu0 0.0
      %952 = vmatprep.subr.mxu0 0.0
      %953 = vmatpush1.msra.mxu0 0.0
      %954 = vmatprep.subr.mxu0 0.0
      %955 = vmatpush1.msra.mxu0 0.0
      %956 = vmatprep.subr.mxu0 0.0
      %957 = vmatpush1.msra.mxu0 0.0
      %958 = vmatprep.subr.mxu0 0.0
      %959 = vmatpush1.msra.mxu0 0.0
      %960 = vmatprep.subr.mxu0 0.0
      %961 = vmatpush1.msra.mxu0 0.0
      %962 = vmatprep.subr.mxu0 0.0
      %963 = vmatpush1.msra.mxu0 0.0
      %964 = vmatprep.subr.mxu0 0.0
      %965 = vmatpush1.msra.mxu0 0.0
      %966 = vmatprep.subr.mxu0 0.0
      %967 = vmatpush1.msra.mxu0 0.0
      %968 = vmatprep.mubr.f32.mxu0 0.0
      %969 = vmatmul.mubr.f32.gmra.mrb[0].mxu0 %v902
      %v970 = vpop.f32.mrb[0].mxu0
      %v971 = vadd.f32 %v899, %v970
      %v972 = vpop.f32.mrb[0].mxu0
      %973 = vdwg.mxu0
      %v974 = vmul.f32 %v971, %v301
      %v975 = vsel %vm512, %v974, 0.0
      %976 = vadd.xlane.f32.xlu0 %v975
      %v977 = vpop.xlane.xlu0 %976
      %v978 = vmul.f32 %v977, 0.015625
      %v979 = vsub.f32 %v971, %v978
      %v980 = vmul.f32 %v979, %v301
      %v981 = vmul.f32 %v980, %v980
      %v982 = vsel %vm512, %v981, 0.0
      %983 = vadd.xlane.f32.xlu0 %v982
      %v984 = vpop.xlane.xlu0 %983
      %v985 = vsel %vm523, %v977, %v984
      %986 = vst.msk [vmem:[%s280 + $0x18] sm:$0xff] %vm525, %v985
      %p987 = scmp.lt.s32.totalorder %s18, 1
      %s988 = scalar_select %p987, %s18, 1
      %s989 = smul.addr %s988, 4
      %s990 = smul.addr %s989, 8
      %s991 = scalar_lea.vmem %s7, %s990
      // Predicated region
      $region49: #{block_forward.4} parent=47 // pred_check
        %p992 = pneg %p188
      $region50: #{block_forward.4} parent=47 // pred_check_branch
        %994 = sbr.rel (%p992) target = $region52
      $region51: #{block_forward.4} parent=47 // pred_region
        _
      $region52: #{block_forward.4} parent=47 // pred_fallthru
        _
    $region48: #{block_forward.4} parent=5 // pred_fallthru
      _
    %p995 = scmp.le.s32.totalorder 2, %s13
    // Predicated region
    $region53: #{block_forward.4} parent=5 // pred_check
      %p996 = pneg %p995
    $region54: #{block_forward.4} parent=5 // pred_check_branch
      %998 = sbr.rel (%p996) target = $region56
    $region55: #{block_forward.4} parent=5 // pred_region
      %s999 = ssub.s32 %s13, 2
      // Predicated region
      $region57: #{block_forward.4} parent=55 // pred_check
        %p1000 = pneg %p194
      $region58: #{block_forward.4} parent=55 // pred_check_branch
        %1002 = sbr.rel (%p1000) target = $region60
      $region59: #{block_forward.4} parent=55 // pred_region
        %p1003 = scmp.lt.s32.totalorder %s19, 1
        %s1004 = scalar_select %p1003, %s19, 1
        %s1005 = smul.addr %s1004, 4
        %s1006 = smul.addr %s1005, 8
        %s1007 = scalar_lea.vmem %s7, %s1006
      $region60: #{block_forward.4} parent=55 // pred_fallthru
        _
    $region56: #{block_forward.4} parent=5 // pred_fallthru
      _
  $region6: #{block_forward.4} parent=0 // loop_footer
    %s17 = sadd.s32 1, %s13
  $region7: #{block_forward.4} parent=0 // loop_footer_branch
    %12 = sbr.rel target = $region3
  $region8: #{block_forward.4} parent=0 // loop_exit
    _

// kernel: block_forward.3
$region0: #{block_forward.3}
  #allocation0 [shape = 'u32[]', space=smem, size = 0x4, offset = 0x4, fixed_abs, tag = 'smem constant byte address 0x4 - core index']
  #allocation1 [shape = 'u32[144,128]{1,0:T(1,128)}', space=vmem, size = 0x12000, scoped, tag = 'internal scratch']
  %s0 = inlined_call_operand.vmem [shape: f32[8,8,90], index: 0, kind: input, shape index: {}]
  %s1 = inlined_call_operand.vmem [shape: f32[3,9,8,1], index: 1, kind: input, shape index: {}]
  %s2 = inlined_call_operand.vmem [shape: f32[3,8,1], index: 2, kind: input, shape index: {}]
  %s3 = inlined_call_operand.vmem [shape: f32[2,24,2], index: 3, kind: output, shape index: {}]
  %s4 = sld [smem:[#allocation0]]
  $region45: #{block_forward.3} parent=0
    _
  %s6 = ssub.s32 1, %s4
  %s7 = scalar_select 0, %s6, %s4
  loop: start=0, step=1, limit=4
  $region2: #{block_forward.3} parent=0 // loop_pre_header
    _
  $region3: #{block_forward.3} parent=0 // loop_header
    %s9 = sphi 0, %s13
    %p10 = scmp.ge.s32.totalorder %s9, 4
    %s19 = sphi 0, %s21
    %s22 = sphi 0, %s19
    %s23 = sphi 0, %s22
    %s39 = sphi 0, %s23
    %s43 = sphi 0, %s43
    %s45 = sphi 0, %s43
    %s46 = sphi 0, %s45
    %s60 = sphi 0, %s46
    %s64 = sphi 0, %s64
    %s66 = sphi 0, %s64
    %s67 = sphi 0, %s66
    %s81 = sphi 0, %s67
    %s87 = sphi 0, %s89
    %s90 = sphi 0, %s87
    %s91 = sphi 0, %s90
    %s107 = sphi 0, %s91
  $region4: #{block_forward.3} parent=0 // loop_header_branch
    %12 = sbr.rel (%p10) target = $region8
  $region5: #{block_forward.3} parent=0 // loop_body
    %s14 = ssub.s32 %s9, 1
    %s15 = ssub.s32 %s9, 2
    %s16 = sadd.s32 %s9, 1
    %s17 = ssub.s32 %s9, %s16
    %p18 = scmp.eq.s32.totalorder %s17, 0
    %s20 = sadd.s32 %s19, 1
    %s21 = scalar_select %p18, %s19, %s20
    %p24 = pneg %p18
    %p25 = scmp.eq.s32.totalorder %s9, 1
    %p26 = por %p24, %p25
    %p27 = scmp.ne.s32.totalorder %s19, %s22
    %p28 = scmp.eq.s32.totalorder %s9, 0
    %p29 = por %p27, %p28
    %p30 = scmp.ne.s32.totalorder %s19, %s22
    %p31 = scmp.eq.s32.totalorder %s14, 1
    %p32 = por %p30, %p31
    %p33 = scmp.ne.s32.totalorder %s22, %s23
    %p34 = scmp.eq.s32.totalorder %s14, 0
    %p35 = por %p33, %p34
    %p36 = scmp.ne.s32.totalorder %s22, %s23
    %p37 = scmp.eq.s32.totalorder %s15, 1
    %p38 = por %p36, %p37
    %p40 = scmp.ne.s32.totalorder %s23, %s39
    %p41 = scmp.eq.s32.totalorder %s15, 0
    %p42 = por %p40, %p41
    %s44 = sadd.s32 %s43, 1
    %p47 = scmp.eq.s32.totalorder %s9, 1
    %p48 = scmp.ne.s32.totalorder %s43, %s45
    %p49 = scmp.eq.s32.totalorder %s9, 0
    %p50 = por %p48, %p49
    %p51 = scmp.ne.s32.totalorder %s43, %s45
    %p52 = scmp.eq.s32.totalorder %s14, 1
    %p53 = por %p51, %p52
    %p54 = scmp.ne.s32.totalorder %s45, %s46
    %p55 = scmp.eq.s32.totalorder %s14, 0
    %p56 = por %p54, %p55
    %p57 = scmp.ne.s32.totalorder %s45, %s46
    %p58 = scmp.eq.s32.totalorder %s15, 1
    %p59 = por %p57, %p58
    %p61 = scmp.ne.s32.totalorder %s46, %s60
    %p62 = scmp.eq.s32.totalorder %s15, 0
    %p63 = por %p61, %p62
    %s65 = sadd.s32 %s64, 1
    %p68 = scmp.eq.s32.totalorder %s9, 1
    %p69 = scmp.ne.s32.totalorder %s64, %s66
    %p70 = scmp.eq.s32.totalorder %s9, 0
    %p71 = por %p69, %p70
    %p72 = scmp.ne.s32.totalorder %s64, %s66
    %p73 = scmp.eq.s32.totalorder %s14, 1
    %p74 = por %p72, %p73
    %p75 = scmp.ne.s32.totalorder %s66, %s67
    %p76 = scmp.eq.s32.totalorder %s14, 0
    %p77 = por %p75, %p76
    %p78 = scmp.ne.s32.totalorder %s66, %s67
    %p79 = scmp.eq.s32.totalorder %s15, 1
    %p80 = por %p78, %p79
    %p82 = scmp.ne.s32.totalorder %s67, %s81
    %p83 = scmp.eq.s32.totalorder %s15, 0
    %p84 = por %p82, %p83
    %s85 = ssub.s32 %s9, %s16
    %p86 = scmp.eq.s32.totalorder %s85, 0
    %s88 = sadd.s32 %s87, 1
    %s89 = scalar_select %p86, %s87, %s88
    %p92 = pneg %p86
    %p93 = scmp.eq.s32.totalorder %s9, 1
    %p94 = por %p92, %p93
    %p95 = scmp.ne.s32.totalorder %s87, %s90
    %p96 = scmp.eq.s32.totalorder %s9, 0
    %p97 = por %p95, %p96
    %p98 = scmp.ne.s32.totalorder %s87, %s90
    %p99 = scmp.eq.s32.totalorder %s14, 1
    %p100 = por %p98, %p99
    %p101 = scmp.ne.s32.totalorder %s90, %s91
    %p102 = scmp.eq.s32.totalorder %s14, 0
    %p103 = por %p101, %p102
    %p104 = scmp.ne.s32.totalorder %s90, %s91
    %p105 = scmp.eq.s32.totalorder %s15, 1
    %p106 = por %p104, %p105
    %p108 = scmp.ne.s32.totalorder %s91, %s107
    %p109 = scmp.eq.s32.totalorder %s15, 0
    %p110 = por %p108, %p109
    %p111 = scmp.le.s32.totalorder 1, %s9
    %p112 = scmp.lt.s32.totalorder %s9, 3
    %p113 = pnand %p111, %p112
    %p114 = pneg %p113
    // Predicated region
    $region9: #{block_forward.3} parent=5 // pred_check
      _
    $region10: #{block_forward.3} parent=5 // pred_check_branch
      %116 = sbr.rel (%p113) target = $region12
    $region11: #{block_forward.3} parent=5 // pred_region
      %s117 = ssub.s32 %s9, 1
      // Predicated region
      $region13: #{block_forward.3} parent=11 // pred_check
        %p118 = pneg %p56
      $region14: #{block_forward.3} parent=11 // pred_check_branch
        %120 = sbr.rel (%p118) target = $region16
      $region15: #{block_forward.3} parent=11 // pred_region
        _
      $region16: #{block_forward.3} parent=11 // pred_fallthru
        _
      // Predicated region
      $region17: #{block_forward.3} parent=11 // pred_check
        %p121 = pneg %p77
      $region18: #{block_forward.3} parent=11 // pred_check_branch
        %123 = sbr.rel (%p121) target = $region20
      $region19: #{block_forward.3} parent=11 // pred_region
        _
      $region20: #{block_forward.3} parent=11 // pred_fallthru
        _
    $region12: #{block_forward.3} parent=5 // pred_fallthru
      _
    %p124 = scmp.lt.s32.totalorder %s9, 2
    // Predicated region
    $region21: #{block_forward.3} parent=5 // pred_check
      %p125 = pneg %p124
    $region22: #{block_forward.3} parent=5 // pred_check_branch
      %127 = sbr.rel (%p125) target = $region24
    $region23: #{block_forward.3} parent=5 // pred_region
      // Predicated region
      $region25: #{block_forward.3} parent=23 // pred_check
        %p128 = pneg %p29
      $region26: #{block_forward.3} parent=23 // pred_check_branch
        %130 = sbr.rel (%p128) target = $region28
      $region27: #{block_forward.3} parent=23 // pred_region
        %s131 = smul.u32 4, %s9
        %p132 = scmp.lt.s32.totalorder %s131, 7
        %s133 = scalar_select %p132, %s131, 7
        %s134 = smul.addr %s133, 8
        %s135 = scalar_lea.vmem %s0, %s134
        %s136 = smul.u32 4, %s9
      $region28: #{block_forward.3} parent=23 // pred_fallthru
        _
    $region24: #{block_forward.3} parent=5 // pred_fallthru
      _
    %p137 = scmp.le.s32.totalorder 1, %s9
    %p138 = scmp.lt.s32.totalorder %s9, 3
    %p139 = pnand %p137, %p138
    %p140 = pneg %p139
    // Predicated region
    $region29: #{block_forward.3} parent=5 // pred_check
      _
    $region30: #{block_forward.3} parent=5 // pred_check_branch
      %142 = sbr.rel (%p139) target = $region32
    $region31: #{block_forward.3} parent=5 // pred_region
      %s143 = ssub.s32 %s9, 1
      %s144 = smul.u32 4, %s14
      %p145 = scmp.lt.s32.totalorder %s144, 7
      %s146 = scalar_select %p145, %s144, 7
      %s147 = smul.addr %s146, 8
      %s148 = scalar_lea.vmem %s0, %s147
      %p149 = pneg %p35
      %p150 = pneg %p32
      %p151 = pneg %p56
      %p152 = pneg %p53
      %p153 = pneg %p77
      %p154 = pneg %p74
      %p155 = pneg %p103
      %p156 = pneg %p100
      %p157 = scmp.lt.s32.totalorder %s14, 1
      %s158 = scalar_select %p157, %s14, 1
      %s159 = smul.addr %s158, 3
      %s160 = smul.addr %s159, 8
      %s161 = scalar_lea.vmem %s3, %s160
      %s162 = smul.u32 4, %s14
      %p163 = scmp.lt.s32.totalorder %s162, 7
      %s164 = scalar_select %p163, %s162, 7
      %s165 = smul.addr %s164, 8
      %s166 = scalar_lea.vmem %s0, %s165
      %s167 = smul.u32 4, %s14
      %p168 = scmp.lt.s32.totalorder %s14, 1
      %s169 = scalar_select %p168, %s14, 1
      %s170 = smul.addr %s169, 3
      %s171 = smul.addr %s170, 8
      %s172 = scalar_lea.vmem %s3, %s171
      %v173 = vlaneseq
      %v174 = vand.u32 %v173, 127
      %vm175 = vcmp.lt.s32.totalorder %v174, 0
      %v176 = vsub.s32 0, %v174
      %v177 = vsel %vm175, %v176, %v174
      %v178 = vmul.u32.u64.compose %v177, 3817748708
      %v179 = vextract.low.u32 %v178
      %v180 = vextract.high.u32 %v178
      %v181 = vshrl.u32 %v180, 3
      %v182 = vmul.u32 %v181, 9
      %v183 = vsub.s32 %v177, %v182
      %v184 = vsub.s32 0, %v183
      %v185 = vsel %vm175, %v184, %v183
      %vm186 = vcmp.ne.s32.totalorder %v185, 0
      %vm187 = vcmp.lt.s32.totalorder %v185, 0
      %vm188 = vmand %vm187, %vm186
      %v189 = vadd.s32 %v185, 9
      %v190 = vsel %vm188, %v189, %v185
      %vm191 = vcmp.lt.s32.totalorder %v190, 8
      %v192 = vsel %vm191, 1, 0
      %v193 = vcvt.s32.f32 %v192
      %v194 = vld [vmem:[%s166] sm:$0xff]
      %s195 = scalar_lea.vmem %s166, 8
      %v196 = vld [vmem:[%s195] sm:$0xff]
      %s197 = scalar_lea.vmem %s166, 16
      %v198 = vld [vmem:[%s197] sm:$0xff]
      %s199 = scalar_lea.vmem %s166, 24
      %v200 = vld [vmem:[%s199] sm:$0xff]
      %v201 = vld [vmem:[%s1] sm:$0xff]
      %203 = vset.pattern.permute.xlu0 0
      %204 = vperm.xlu0 %203, %v201
      %v205 = vpop.permute.xlu0 %204
      %v207 = vmul.f32 %v194, %v205
      %s208 = scalar_lea.vmem %s1, 8
      %v209 = vld [vmem:[%s208] sm:$0xff]
      %211 = vset.pattern.permute.xlu0 0
      %212 = vperm.xlu0 %211, %v209
      %v213 = vpop.permute.xlu0 %212
      %v215 = vmul.f32 %v196, %v213
      %v216 = vadd.f32 %v207, %v215
      %s217 = scalar_lea.vmem %s1, 16
      %v218 = vld [vmem:[%s217] sm:$0xff]
      %220 = vset.pattern.permute.xlu0 0
      %221 = vperm.xlu0 %220, %v218
      %v222 = vpop.permute.xlu0 %221
      %v224 = vmul.f32 %v194, %v222
      %226 = vrot.lane.b32.xlu0 %v224, 127
      %v227 = vpop.permute.xlu0 %226
      %v229 = vadd.f32 %v216, %v227
      %s230 = scalar_lea.vmem %s1, 24
      %v231 = vld [vmem:[%s230] sm:$0xff]
      %233 = vset.pattern.permute.xlu0 0
      %234 = vperm.xlu0 %233, %v231
      %v235 = vpop.permute.xlu0 %234
      %v237 = vmul.f32 %v198, %v235
      %v238 = vadd.f32 %v229, %v237
      %s239 = scalar_lea.vmem %s1, 32
      %v240 = vld [vmem:[%s239] sm:$0xff]
      %242 = vset.pattern.permute.xlu0 0
      %243 = vperm.xlu0 %242, %v240
      %v244 = vpop.permute.xlu0 %243
      %v246 = vmul.f32 %v200, %v244
      %v247 = vadd.f32 %v238, %v246
      %s248 = scalar_lea.vmem %s1, 40
      %v249 = vld [vmem:[%s248] sm:$0xff]
      %251 = vset.pattern.permute.xlu0 0
      %252 = vperm.xlu0 %251, %v249
      %v253 = vpop.permute.xlu0 %252
      %v255 = vmul.f32 %v198, %v253
      %257 = vrot.lane.b32.xlu0 %v255, 127
      %v258 = vpop.permute.xlu0 %257
      %v260 = vadd.f32 %v247, %v258
      %s261 = scalar_lea.vmem %s1, 48
      %v262 = vld [vmem:[%s261] sm:$0xff]
      %264 = vset.pattern.permute.xlu0 0
      %265 = vperm.xlu0 %264, %v262
      %v266 = vpop.permute.xlu0 %265
      %v268 = vmul.f32 %v194, %v266
      %270 = vrot.lane.b32.xlu0 %v268, 119
      %v271 = vpop.permute.xlu0 %270
      %v273 = vadd.f32 %v260, %v271
      %s274 = scalar_lea.vmem %s1, 56
      %v275 = vld [vmem:[%s274] sm:$0xff]
      %277 = vset.pattern.permute.xlu0 0
      %278 = vperm.xlu0 %277, %v275
      %v279 = vpop.permute.xlu0 %278
      %v281 = vmul.f32 %v196, %v279
      %283 = vrot.lane.b32.xlu0 %v281, 119
      %v284 = vpop.permute.xlu0 %283
      %v286 = vadd.f32 %v273, %v284
      %s287 = scalar_lea.vmem %s1, 64
      %v288 = vld [vmem:[%s287] sm:$0xff]
      %290 = vset.pattern.permute.xlu0 0
      %291 = vperm.xlu0 %290, %v288
      %v292 = vpop.permute.xlu0 %291
      %v294 = vmul.f32 %v194, %v292
      %296 = vrot.lane.b32.xlu0 %v294, 118
      %v297 = vpop.permute.xlu0 %296
      %v299 = vadd.f32 %v286, %v297
      %v300 = vld [vmem:[%s2] sm:$0xff]
      %302 = vset.pattern.permute.xlu0 0
      %303 = vperm.xlu0 %302, %v300
      %v304 = vpop.permute.xlu0 %303
      %v306 = vadd.f32 %v299, %v304
      %v307 = vmul.f32 %v306, %v193
      %vm308 = vcmask 588800
      %v309 = vsel %vm308, %v307, 0.0
      %310 = vadd.xlane.f32.xlu0 %v309
      %v311 = vpop.xlane.xlu0 %310
      %v312 = vmul.f32 %v311, 0.015625
      %v313 = vsub.f32 %v306, %v312
      %v314 = vmul.f32 %v313, %v193
      %v315 = vmul.f32 %v314, %v314
      %v316 = vsel %vm308, %v315, 0.0
      %317 = vadd.xlane.f32.xlu0 %v316
      %v318 = vpop.xlane.xlu0 %317
      %vm319 = vcmask 7168
      %v320 = vsel %vm319, %v311, %v318
      %vm321 = vcmask 15360
      %322 = vst.msk [vmem:[%s172] sm:$0xff] %vm321, %v320
      %s323 = scalar_lea.vmem %s1, 72
      %v324 = vld [vmem:[%s323] sm:$0xff]
      %326 = vset.pattern.permute.xlu0 0
      %327 = vperm.xlu0 %326, %v324
      %v328 = vpop.permute.xlu0 %327
      %v330 = vmul.f32 %v194, %v328
      %s331 = scalar_lea.vmem %s1, 80
      %v332 = vld [vmem:[%s331] sm:$0xff]
      %334 = vset.pattern.permute.xlu0 0
      %335 = vperm.xlu0 %334, %v332
      %v336 = vpop.permute.xlu0 %335
      %v338 = vmul.f32 %v196, %v336
      %v339 = vadd.f32 %v330, %v338
      %s340 = scalar_lea.vmem %s1, 88
      %v341 = vld [vmem:[%s340] sm:$0xff]
      %343 = vset.pattern.permute.xlu0 0
      %344 = vperm.xlu0 %343, %v341
      %v345 = vpop.permute.xlu0 %344
      %v347 = vmul.f32 %v194, %v345
      %349 = vrot.lane.b32.xlu0 %v347, 127
      %v350 = vpop.permute.xlu0 %349
      %v352 = vadd.f32 %v339, %v350
      %s353 = scalar_lea.vmem %s1, 96
      %v354 = vld [vmem:[%s353] sm:$0xff]
      %356 = vset.pattern.permute.xlu0 0
      %357 = vperm.xlu0 %356, %v354
      %v358 = vpop.permute.xlu0 %357
      %v360 = vmul.f32 %v198, %v358
      %v361 = vadd.f32 %v352, %v360
      %s362 = scalar_lea.vmem %s1, 104
      %v363 = vld [vmem:[%s362] sm:$0xff]
      %365 = vset.pattern.permute.xlu0 0
      %366 = vperm.xlu0 %365, %v363
      %v367 = vpop.permute.xlu0 %366
      %v369 = vmul.f32 %v200, %v367
      %v370 = vadd.f32 %v361, %v369
      %s371 = scalar_lea.vmem %s1, 112
      %v372 = vld [vmem:[%s371] sm:$0xff]
      %374 = vset.pattern.permute.xlu0 0
      %375 = vperm.xlu0 %374, %v372
      %v376 = vpop.permute.xlu0 %375
      %v378 = vmul.f32 %v198, %v376
      %380 = vrot.lane.b32.xlu0 %v378, 127
      %v381 = vpop.permute.xlu0 %380
      %v383 = vadd.f32 %v370, %v381
      %s384 = scalar_lea.vmem %s1, 120
      %v385 = vld [vmem:[%s384] sm:$0xff]
      %387 = vset.pattern.permute.xlu0 0
      %388 = vperm.xlu0 %387, %v385
      %v389 = vpop.permute.xlu0 %388
      %v391 = vmul.f32 %v194, %v389
      %393 = vrot.lane.b32.xlu0 %v391, 119
      %v394 = vpop.permute.xlu0 %393
      %v396 = vadd.f32 %v383, %v394
      %s397 = scalar_lea.vmem %s1, 128
      %v398 = vld [vmem:[%s397] sm:$0xff]
      %400 = vset.pattern.permute.xlu0 0
      %401 = vperm.xlu0 %400, %v398
      %v402 = vpop.permute.xlu0 %401
      %v404 = vmul.f32 %v196, %v402
      %406 = vrot.lane.b32.xlu0 %v404, 119
      %v407 = vpop.permute.xlu0 %406
      %v409 = vadd.f32 %v396, %v407
      %s410 = scalar_lea.vmem %s1, 136
      %v411 = vld [vmem:[%s410] sm:$0xff]
      %413 = vset.pattern.permute.xlu0 0
      %414 = vperm.xlu0 %413, %v411
      %v415 = vpop.permute.xlu0 %414
      %v417 = vmul.f32 %v194, %v415
      %419 = vrot.lane.b32.xlu0 %v417, 118
      %v420 = vpop.permute.xlu0 %419
      %v422 = vadd.f32 %v409, %v420
      %s423 = scalar_lea.vmem %s2, 8
      %v424 = vld [vmem:[%s423] sm:$0xff]
      %426 = vset.pattern.permute.xlu0 0
      %427 = vperm.xlu0 %426, %v424
      %v428 = vpop.permute.xlu0 %427
      %v430 = vadd.f32 %v422, %v428
      %v431 = vmul.f32 %v430, %v193
      %v432 = vsel %vm308, %v431, 0.0
      %433 = vadd.xlane.f32.xlu0 %v432
      %v434 = vpop.xlane.xlu0 %433
      %v435 = vmul.f32 %v434, 0.015625
      %v436 = vsub.f32 %v430, %v435
      %v437 = vmul.f32 %v436, %v193
      %v438 = vmul.f32 %v437, %v437
      %v439 = vsel %vm308, %v438, 0.0
      %440 = vadd.xlane.f32.xlu0 %v439
      %v441 = vpop.xlane.xlu0 %440
      %v442 = vsel %vm319, %v434, %v441
      %443 = vst.msk [vmem:[%s172 + $0x8] sm:$0xff] %vm321, %v442
      %s444 = scalar_lea.vmem %s1, 144
      %v445 = vld [vmem:[%s444] sm:$0xff]
      %447 = vset.pattern.permute.xlu0 0
      %448 = vperm.xlu0 %447, %v445
      %v449 = vpop.permute.xlu0 %448
      %v451 = vmul.f32 %v194, %v449
      %s452 = scalar_lea.vmem %s1, 152
      %v453 = vld [vmem:[%s452] sm:$0xff]
      %455 = vset.pattern.permute.xlu0 0
      %456 = vperm.xlu0 %455, %v453
      %v457 = vpop.permute.xlu0 %456
      %v459 = vmul.f32 %v196, %v457
      %v460 = vadd.f32 %v451, %v459
      %s461 = scalar_lea.vmem %s1, 160
      %v462 = vld [vmem:[%s461] sm:$0xff]
      %464 = vset.pattern.permute.xlu0 0
      %465 = vperm.xlu0 %464, %v462
      %v466 = vpop.permute.xlu0 %465
      %v468 = vmul.f32 %v194, %v466
      %470 = vrot.lane.b32.xlu0 %v468, 127
      %v471 = vpop.permute.xlu0 %470
      %v473 = vadd.f32 %v460, %v471
      %s474 = scalar_lea.vmem %s1, 168
      %v475 = vld [vmem:[%s474] sm:$0xff]
      %477 = vset.pattern.permute.xlu0 0
      %478 = vperm.xlu0 %477, %v475
      %v479 = vpop.permute.xlu0 %478
      %v481 = vmul.f32 %v198, %v479
      %v482 = vadd.f32 %v473, %v481
      %s483 = scalar_lea.vmem %s1, 176
      %v484 = vld [vmem:[%s483] sm:$0xff]
      %486 = vset.pattern.permute.xlu0 0
      %487 = vperm.xlu0 %486, %v484
      %v488 = vpop.permute.xlu0 %487
      %v490 = vmul.f32 %v200, %v488
      %v491 = vadd.f32 %v482, %v490
      %s492 = scalar_lea.vmem %s1, 184
      %v493 = vld [vmem:[%s492] sm:$0xff]
      %495 = vset.pattern.permute.xlu0 0
      %496 = vperm.xlu0 %495, %v493
      %v497 = vpop.permute.xlu0 %496
      %v499 = vmul.f32 %v198, %v497
      %501 = vrot.lane.b32.xlu0 %v499, 127
      %v502 = vpop.permute.xlu0 %501
      %v504 = vadd.f32 %v491, %v502
      %s505 = scalar_lea.vmem %s1, 192
      %v506 = vld [vmem:[%s505] sm:$0xff]
      %508 = vset.pattern.permute.xlu0 0
      %509 = vperm.xlu0 %508, %v506
      %v510 = vpop.permute.xlu0 %509
      %v512 = vmul.f32 %v194, %v510
      %514 = vrot.lane.b32.xlu0 %v512, 119
      %v515 = vpop.permute.xlu0 %514
      %v517 = vadd.f32 %v504, %v515
      %s518 = scalar_lea.vmem %s1, 200
      %v519 = vld [vmem:[%s518] sm:$0xff]
      %521 = vset.pattern.permute.xlu0 0
      %522 = vperm.xlu0 %521, %v519
      %v523 = vpop.permute.xlu0 %522
      %v525 = vmul.f32 %v196, %v523
      %527 = vrot.lane.b32.xlu0 %v525, 119
      %v528 = vpop.permute.xlu0 %527
      %v530 = vadd.f32 %v517, %v528
      %s531 = scalar_lea.vmem %s1, 208
      %v532 = vld [vmem:[%s531] sm:$0xff]
      %534 = vset.pattern.permute.xlu0 0
      %535 = vperm.xlu0 %534, %v532
      %v536 = vpop.permute.xlu0 %535
      %v538 = vmul.f32 %v194, %v536
      %540 = vrot.lane.b32.xlu0 %v538, 118
      %v541 = vpop.permute.xlu0 %540
      %v543 = vadd.f32 %v530, %v541
      %s544 = scalar_lea.vmem %s2, 16
      %v545 = vld [vmem:[%s544] sm:$0xff]
      %547 = vset.pattern.permute.xlu0 0
      %548 = vperm.xlu0 %547, %v545
      %v549 = vpop.permute.xlu0 %548
      %v551 = vadd.f32 %v543, %v549
      %v552 = vmul.f32 %v551, %v193
      %v553 = vsel %vm308, %v552, 0.0
      %554 = vadd.xlane.f32.xlu0 %v553
      %v555 = vpop.xlane.xlu0 %554
      %v556 = vmul.f32 %v555, 0.015625
      %v557 = vsub.f32 %v551, %v556
      %v558 = vmul.f32 %v557, %v193
      %v559 = vmul.f32 %v558, %v558
      %v560 = vsel %vm308, %v559, 0.0
      %561 = vadd.xlane.f32.xlu0 %v560
      %v562 = vpop.xlane.xlu0 %561
      %v563 = vsel %vm319, %v555, %v562
      %564 = vst.msk [vmem:[%s172 + $0x10] sm:$0xff] %vm321, %v563
      %p565 = scmp.lt.s32.totalorder %s14, 1
      %s566 = scalar_select %p565, %s14, 1
      %s567 = smul.addr %s566, 3
      %s568 = smul.addr %s567, 8
      %s569 = scalar_lea.vmem %s3, %s568
      // Predicated region
      $region33: #{block_forward.3} parent=31 // pred_check
        %p570 = pneg %p100
      $region34: #{block_forward.3} parent=31 // pred_check_branch
        %572 = sbr.rel (%p570) target = $region36
      $region35: #{block_forward.3} parent=31 // pred_region
        _
      $region36: #{block_forward.3} parent=31 // pred_fallthru
        _
    $region32: #{block_forward.3} parent=5 // pred_fallthru
      _
    %p573 = scmp.le.s32.totalorder 2, %s9
    // Predicated region
    $region37: #{block_forward.3} parent=5 // pred_check
      %p574 = pneg %p573
    $region38: #{block_forward.3} parent=5 // pred_check_branch
      %576 = sbr.rel (%p574) target = $region40
    $region39: #{block_forward.3} parent=5 // pred_region
      %s577 = ssub.s32 %s9, 2
      // Predicated region
      $region41: #{block_forward.3} parent=39 // pred_check
        %p578 = pneg %p106
      $region42: #{block_forward.3} parent=39 // pred_check_branch
        %580 = sbr.rel (%p578) target = $region44
      $region43: #{block_forward.3} parent=39 // pred_region
        %p581 = scmp.lt.s32.totalorder %s15, 1
        %s582 = scalar_select %p581, %s15, 1
        %s583 = smul.addr %s582, 3
        %s584 = smul.addr %s583, 8
        %s585 = scalar_lea.vmem %s3, %s584
      $region44: #{block_forward.3} parent=39 // pred_fallthru
        _
    $region40: #{block_forward.3} parent=5 // pred_fallthru
      _
  $region6: #{block_forward.3} parent=0 // loop_footer
    %s13 = sadd.s32 1, %s9
  $region7: #{block_forward.3} parent=0 // loop_footer_branch
    %8 = sbr.rel target = $region3
  $region8: #{block_forward.3} parent=0 // loop_exit
    _

// kernel: block_forward.5
$region0: #{block_forward.5}
  #allocation0 [shape = 'u32[]', space=smem, size = 0x4, offset = 0x4, fixed_abs, tag = 'smem constant byte address 0x4 - core index']
  #allocation1 [shape = 'u32[144,128]{1,0:T(1,128)}', space=vmem, size = 0x12000, scoped, tag = 'internal scratch']
  %s0 = inlined_call_operand.vmem [shape: f32[8,8,90], index: 0, kind: input, shape index: {}]
  %s1 = inlined_call_operand.vmem [shape: f32[3,9,8,1], index: 1, kind: input, shape index: {}]
  %s2 = inlined_call_operand.vmem [shape: f32[3,8,1], index: 2, kind: input, shape index: {}]
  %s3 = inlined_call_operand.vmem [shape: f32[24,1], index: 3, kind: input, shape index: {}]
  %s4 = inlined_call_operand.vmem [shape: f32[24,1], index: 4, kind: input, shape index: {}]
  %s5 = inlined_call_operand.vmem [shape: f32[32,8], index: 5, kind: input, shape index: {}]
  %s6 = inlined_call_operand.vmem [shape: f32[32,1], index: 6, kind: input, shape index: {}]
  %s7 = inlined_call_operand.vmem [shape: f32[32,1], index: 7, kind: input, shape index: {}]
  %s8 = inlined_call_operand.vmem [shape: f32[32,1], index: 8, kind: input, shape index: {}]
  %s9 = inlined_call_operand.vmem [shape: f32[2,32,8,8], index: 9, kind: output, shape index: {}]
  %s10 = sld [smem:[#allocation0]]
  $region69: #{block_forward.5} parent=0
    _
  %s12 = ssub.s32 1, %s10
  %s13 = scalar_select 0, %s12, %s10
  loop: start=0, step=1, limit=4
  $region2: #{block_forward.5} parent=0 // loop_pre_header
    _
  $region3: #{block_forward.5} parent=0 // loop_header
    %s15 = sphi 0, %s19
    %p16 = scmp.ge.s32.totalorder %s15, 4
    %s25 = sphi 0, %s27
    %s28 = sphi 0, %s25
    %s29 = sphi 0, %s28
    %s45 = sphi 0, %s29
    %s49 = sphi 0, %s49
    %s51 = sphi 0, %s49
    %s52 = sphi 0, %s51
    %s66 = sphi 0, %s52
    %s70 = sphi 0, %s70
    %s72 = sphi 0, %s70
    %s73 = sphi 0, %s72
    %s87 = sphi 0, %s73
    %s91 = sphi 0, %s91
    %s93 = sphi 0, %s91
    %s94 = sphi 0, %s93
    %s108 = sphi 0, %s94
    %s112 = sphi 0, %s112
    %s114 = sphi 0, %s112
    %s115 = sphi 0, %s114
    %s129 = sphi 0, %s115
    %s133 = sphi 0, %s133
    %s135 = sphi 0, %s133
    %s136 = sphi 0, %s135
    %s150 = sphi 0, %s136
    %s154 = sphi 0, %s154
    %s156 = sphi 0, %s154
    %s157 = sphi 0, %s156
    %s171 = sphi 0, %s157
    %s175 = sphi 0, %s175
    %s177 = sphi 0, %s175
    %s178 = sphi 0, %s177
    %s192 = sphi 0, %s178
    %s196 = sphi 0, %s196
    %s198 = sphi 0, %s196
    %s199 = sphi 0, %s198
    %s213 = sphi 0, %s199
    %s219 = sphi 0, %s221
    %s222 = sphi 0, %s219
    %s223 = sphi 0, %s222
    %s239 = sphi 0, %s223
  $region4: #{block_forward.5} parent=0 // loop_header_branch
    %18 = sbr.rel (%p16) target = $region8
  $region5: #{block_forward.5} parent=0 // loop_body
    %s20 = ssub.s32 %s15, 1
    %s21 = ssub.s32 %s15, 2
    %s22 = sadd.s32 %s15, 1
    %s23 = ssub.s32 %s15, %s22
    %p24 = scmp.eq.s32.totalorder %s23, 0
    %s26 = sadd.s32 %s25, 1
    %s27 = scalar_select %p24, %s25, %s26
    %p30 = pneg %p24
    %p31 = scmp.eq.s32.totalorder %s15, 1
    %p32 = por %p30, %p31
    %p33 = scmp.ne.s32.totalorder %s25, %s28
    %p34 = scmp.eq.s32.totalorder %s15, 0
    %p35 = por %p33, %p34
    %p36 = scmp.ne.s32.totalorder %s25, %s28
    %p37 = scmp.eq.s32.totalorder %s20, 1
    %p38 = por %p36, %p37
    %p39 = scmp.ne.s32.totalorder %s28, %s29
    %p40 = scmp.eq.s32.totalorder %s20, 0
    %p41 = por %p39, %p40
    %p42 = scmp.ne.s32.totalorder %s28, %s29
    %p43 = scmp.eq.s32.totalorder %s21, 1
    %p44 = por %p42, %p43
    %p46 = scmp.ne.s32.totalorder %s29, %s45
    %p47 = scmp.eq.s32.totalorder %s21, 0
    %p48 = por %p46, %p47
    %s50 = sadd.s32 %s49, 1
    %p53 = scmp.eq.s32.totalorder %s15, 1
    %p54 = scmp.ne.s32.totalorder %s49, %s51
    %p55 = scmp.eq.s32.totalorder %s15, 0
    %p56 = por %p54, %p55
    %p57 = scmp.ne.s32.totalorder %s49, %s51
    %p58 = scmp.eq.s32.totalorder %s20, 1
    %p59 = por %p57, %p58
    %p60 = scmp.ne.s32.totalorder %s51, %s52
    %p61 = scmp.eq.s32.totalorder %s20, 0
    %p62 = por %p60, %p61
    %p63 = scmp.ne.s32.totalorder %s51, %s52
    %p64 = scmp.eq.s32.totalorder %s21, 1
    %p65 = por %p63, %p64
    %p67 = scmp.ne.s32.totalorder %s52, %s66
    %p68 = scmp.eq.s32.totalorder %s21, 0
    %p69 = por %p67, %p68
    %s71 = sadd.s32 %s70, 1
    %p74 = scmp.eq.s32.totalorder %s15, 1
    %p75 = scmp.ne.s32.totalorder %s70, %s72
    %p76 = scmp.eq.s32.totalorder %s15, 0
    %p77 = por %p75, %p76
    %p78 = scmp.ne.s32.totalorder %s70, %s72
    %p79 = scmp.eq.s32.totalorder %s20, 1
    %p80 = por %p78, %p79
    %p81 = scmp.ne.s32.totalorder %s72, %s73
    %p82 = scmp.eq.s32.totalorder %s20, 0
    %p83 = por %p81, %p82
    %p84 = scmp.ne.s32.totalorder %s72, %s73
    %p85 = scmp.eq.s32.totalorder %s21, 1
    %p86 = por %p84, %p85
    %p88 = scmp.ne.s32.totalorder %s73, %s87
    %p89 = scmp.eq.s32.totalorder %s21, 0
    %p90 = por %p88, %p89
    %s92 = sadd.s32 %s91, 1
    %p95 = scmp.eq.s32.totalorder %s15, 1
    %p96 = scmp.ne.s32.totalorder %s91, %s93
    %p97 = scmp.eq.s32.totalorder %s15, 0
    %p98 = por %p96, %p97
    %p99 = scmp.ne.s32.totalorder %s91, %s93
    %p100 = scmp.eq.s32.totalorder %s20, 1
    %p101 = por %p99, %p100
    %p102 = scmp.ne.s32.totalorder %s93, %s94
    %p103 = scmp.eq.s32.totalorder %s20, 0
    %p104 = por %p102, %p103
    %p105 = scmp.ne.s32.totalorder %s93, %s94
    %p106 = scmp.eq.s32.totalorder %s21, 1
    %p107 = por %p105, %p106
    %p109 = scmp.ne.s32.totalorder %s94, %s108
    %p110 = scmp.eq.s32.totalorder %s21, 0
    %p111 = por %p109, %p110
    %s113 = sadd.s32 %s112, 1
    %p116 = scmp.eq.s32.totalorder %s15, 1
    %p117 = scmp.ne.s32.totalorder %s112, %s114
    %p118 = scmp.eq.s32.totalorder %s15, 0
    %p119 = por %p117, %p118
    %p120 = scmp.ne.s32.totalorder %s112, %s114
    %p121 = scmp.eq.s32.totalorder %s20, 1
    %p122 = por %p120, %p121
    %p123 = scmp.ne.s32.totalorder %s114, %s115
    %p124 = scmp.eq.s32.totalorder %s20, 0
    %p125 = por %p123, %p124
    %p126 = scmp.ne.s32.totalorder %s114, %s115
    %p127 = scmp.eq.s32.totalorder %s21, 1
    %p128 = por %p126, %p127
    %p130 = scmp.ne.s32.totalorder %s115, %s129
    %p131 = scmp.eq.s32.totalorder %s21, 0
    %p132 = por %p130, %p131
    %s134 = sadd.s32 %s133, 1
    %p137 = scmp.eq.s32.totalorder %s15, 1
    %p138 = scmp.ne.s32.totalorder %s133, %s135
    %p139 = scmp.eq.s32.totalorder %s15, 0
    %p140 = por %p138, %p139
    %p141 = scmp.ne.s32.totalorder %s133, %s135
    %p142 = scmp.eq.s32.totalorder %s20, 1
    %p143 = por %p141, %p142
    %p144 = scmp.ne.s32.totalorder %s135, %s136
    %p145 = scmp.eq.s32.totalorder %s20, 0
    %p146 = por %p144, %p145
    %p147 = scmp.ne.s32.totalorder %s135, %s136
    %p148 = scmp.eq.s32.totalorder %s21, 1
    %p149 = por %p147, %p148
    %p151 = scmp.ne.s32.totalorder %s136, %s150
    %p152 = scmp.eq.s32.totalorder %s21, 0
    %p153 = por %p151, %p152
    %s155 = sadd.s32 %s154, 1
    %p158 = scmp.eq.s32.totalorder %s15, 1
    %p159 = scmp.ne.s32.totalorder %s154, %s156
    %p160 = scmp.eq.s32.totalorder %s15, 0
    %p161 = por %p159, %p160
    %p162 = scmp.ne.s32.totalorder %s154, %s156
    %p163 = scmp.eq.s32.totalorder %s20, 1
    %p164 = por %p162, %p163
    %p165 = scmp.ne.s32.totalorder %s156, %s157
    %p166 = scmp.eq.s32.totalorder %s20, 0
    %p167 = por %p165, %p166
    %p168 = scmp.ne.s32.totalorder %s156, %s157
    %p169 = scmp.eq.s32.totalorder %s21, 1
    %p170 = por %p168, %p169
    %p172 = scmp.ne.s32.totalorder %s157, %s171
    %p173 = scmp.eq.s32.totalorder %s21, 0
    %p174 = por %p172, %p173
    %s176 = sadd.s32 %s175, 1
    %p179 = scmp.eq.s32.totalorder %s15, 1
    %p180 = scmp.ne.s32.totalorder %s175, %s177
    %p181 = scmp.eq.s32.totalorder %s15, 0
    %p182 = por %p180, %p181
    %p183 = scmp.ne.s32.totalorder %s175, %s177
    %p184 = scmp.eq.s32.totalorder %s20, 1
    %p185 = por %p183, %p184
    %p186 = scmp.ne.s32.totalorder %s177, %s178
    %p187 = scmp.eq.s32.totalorder %s20, 0
    %p188 = por %p186, %p187
    %p189 = scmp.ne.s32.totalorder %s177, %s178
    %p190 = scmp.eq.s32.totalorder %s21, 1
    %p191 = por %p189, %p190
    %p193 = scmp.ne.s32.totalorder %s178, %s192
    %p194 = scmp.eq.s32.totalorder %s21, 0
    %p195 = por %p193, %p194
    %s197 = sadd.s32 %s196, 1
    %p200 = scmp.eq.s32.totalorder %s15, 1
    %p201 = scmp.ne.s32.totalorder %s196, %s198
    %p202 = scmp.eq.s32.totalorder %s15, 0
    %p203 = por %p201, %p202
    %p204 = scmp.ne.s32.totalorder %s196, %s198
    %p205 = scmp.eq.s32.totalorder %s20, 1
    %p206 = por %p204, %p205
    %p207 = scmp.ne.s32.totalorder %s198, %s199
    %p208 = scmp.eq.s32.totalorder %s20, 0
    %p209 = por %p207, %p208
    %p210 = scmp.ne.s32.totalorder %s198, %s199
    %p211 = scmp.eq.s32.totalorder %s21, 1
    %p212 = por %p210, %p211
    %p214 = scmp.ne.s32.totalorder %s199, %s213
    %p215 = scmp.eq.s32.totalorder %s21, 0
    %p216 = por %p214, %p215
    %s217 = ssub.s32 %s15, %s22
    %p218 = scmp.eq.s32.totalorder %s217, 0
    %s220 = sadd.s32 %s219, 1
    %s221 = scalar_select %p218, %s219, %s220
    %p224 = pneg %p218
    %p225 = scmp.eq.s32.totalorder %s15, 1
    %p226 = por %p224, %p225
    %p227 = scmp.ne.s32.totalorder %s219, %s222
    %p228 = scmp.eq.s32.totalorder %s15, 0
    %p229 = por %p227, %p228
    %p230 = scmp.ne.s32.totalorder %s219, %s222
    %p231 = scmp.eq.s32.totalorder %s20, 1
    %p232 = por %p230, %p231
    %p233 = scmp.ne.s32.totalorder %s222, %s223
    %p234 = scmp.eq.s32.totalorder %s20, 0
    %p235 = por %p233, %p234
    %p236 = scmp.ne.s32.totalorder %s222, %s223
    %p237 = scmp.eq.s32.totalorder %s21, 1
    %p238 = por %p236, %p237
    %p240 = scmp.ne.s32.totalorder %s223, %s239
    %p241 = scmp.eq.s32.totalorder %s21, 0
    %p242 = por %p240, %p241
    %p243 = scmp.le.s32.totalorder 1, %s15
    %p244 = scmp.lt.s32.totalorder %s15, 3
    %p245 = pnand %p243, %p244
    %p246 = pneg %p245
    // Predicated region
    $region9: #{block_forward.5} parent=5 // pred_check
      _
    $region10: #{block_forward.5} parent=5 // pred_check_branch
      %248 = sbr.rel (%p245) target = $region12
    $region11: #{block_forward.5} parent=5 // pred_region
      %s249 = ssub.s32 %s15, 1
      // Predicated region
      $region13: #{block_forward.5} parent=11 // pred_check
        %p250 = pneg %p62
      $region14: #{block_forward.5} parent=11 // pred_check_branch
        %252 = sbr.rel (%p250) target = $region16
      $region15: #{block_forward.5} parent=11 // pred_region
        _
      $region16: #{block_forward.5} parent=11 // pred_fallthru
        _
      // Predicated region
      $region17: #{block_forward.5} parent=11 // pred_check
        %p253 = pneg %p83
      $region18: #{block_forward.5} parent=11 // pred_check_branch
        %255 = sbr.rel (%p253) target = $region20
      $region19: #{block_forward.5} parent=11 // pred_region
        _
      $region20: #{block_forward.5} parent=11 // pred_fallthru
        _
      // Predicated region
      $region21: #{block_forward.5} parent=11 // pred_check
        %p256 = pneg %p104
      $region22: #{block_forward.5} parent=11 // pred_check_branch
        %258 = sbr.rel (%p256) target = $region24
      $region23: #{block_forward.5} parent=11 // pred_region
        _
      $region24: #{block_forward.5} parent=11 // pred_fallthru
        _
      // Predicated region
      $region25: #{block_forward.5} parent=11 // pred_check
        %p259 = pneg %p125
      $region26: #{block_forward.5} parent=11 // pred_check_branch
        %261 = sbr.rel (%p259) target = $region28
      $region27: #{block_forward.5} parent=11 // pred_region
        _
      $region28: #{block_forward.5} parent=11 // pred_fallthru
        _
      // Predicated region
      $region29: #{block_forward.5} parent=11 // pred_check
        %p262 = pneg %p146
      $region30: #{block_forward.5} parent=11 // pred_check_branch
        %264 = sbr.rel (%p262) target = $region32
      $region31: #{block_forward.5} parent=11 // pred_region
        _
      $region32: #{block_forward.5} parent=11 // pred_fallthru
        _
      // Predicated region
      $region33: #{block_forward.5} parent=11 // pred_check
        %p265 = pneg %p167
      $region34: #{block_forward.5} parent=11 // pred_check_branch
        %267 = sbr.rel (%p265) target = $region36
      $region35: #{block_forward.5} parent=11 // pred_region
        _
      $region36: #{block_forward.5} parent=11 // pred_fallthru
        _
      // Predicated region
      $region37: #{block_forward.5} parent=11 // pred_check
        %p268 = pneg %p188
      $region38: #{block_forward.5} parent=11 // pred_check_branch
        %270 = sbr.rel (%p268) target = $region40
      $region39: #{block_forward.5} parent=11 // pred_region
        _
      $region40: #{block_forward.5} parent=11 // pred_fallthru
        _
      // Predicated region
      $region41: #{block_forward.5} parent=11 // pred_check
        %p271 = pneg %p209
      $region42: #{block_forward.5} parent=11 // pred_check_branch
        %273 = sbr.rel (%p271) target = $region44
      $region43: #{block_forward.5} parent=11 // pred_region
        _
      $region44: #{block_forward.5} parent=11 // pred_fallthru
        _
    $region12: #{block_forward.5} parent=5 // pred_fallthru
      _
    %p274 = scmp.lt.s32.totalorder %s15, 2
    // Predicated region
    $region45: #{block_forward.5} parent=5 // pred_check
      %p275 = pneg %p274
    $region46: #{block_forward.5} parent=5 // pred_check_branch
      %277 = sbr.rel (%p275) target = $region48
    $region47: #{block_forward.5} parent=5 // pred_region
      // Predicated region
      $region49: #{block_forward.5} parent=47 // pred_check
        %p278 = pneg %p35
      $region50: #{block_forward.5} parent=47 // pred_check_branch
        %280 = sbr.rel (%p278) target = $region52
      $region51: #{block_forward.5} parent=47 // pred_region
        %s281 = smul.u32 4, %s15
        %p282 = scmp.lt.s32.totalorder %s281, 7
        %s283 = scalar_select %p282, %s281, 7
        %s284 = smul.addr %s283, 8
        %s285 = scalar_lea.vmem %s0, %s284
        %s286 = smul.u32 4, %s15
      $region52: #{block_forward.5} parent=47 // pred_fallthru
        _
    $region48: #{block_forward.5} parent=5 // pred_fallthru
      _
    %p287 = scmp.le.s32.totalorder 1, %s15
    %p288 = scmp.lt.s32.totalorder %s15, 3
    %p289 = pnand %p287, %p288
    %p290 = pneg %p289
    // Predicated region
    $region53: #{block_forward.5} parent=5 // pred_check
      _
    $region54: #{block_forward.5} parent=5 // pred_check_branch
      %292 = sbr.rel (%p289) target = $region56
    $region55: #{block_forward.5} parent=5 // pred_region
      %s293 = ssub.s32 %s15, 1
      %s294 = smul.u32 4, %s20
      %p295 = scmp.lt.s32.totalorder %s294, 7
      %s296 = scalar_select %p295, %s294, 7
      %s297 = smul.addr %s296, 8
      %s298 = scalar_lea.vmem %s0, %s297
      %p299 = pneg %p41
      %p300 = pneg %p38
      %p301 = pneg %p62
      %p302 = pneg %p59
      %p303 = pneg %p83
      %p304 = pneg %p80
      %p305 = pneg %p104
      %p306 = pneg %p101
      %p307 = pneg %p125
      %p308 = pneg %p122
      %p309 = pneg %p146
      %p310 = pneg %p143
      %p311 = pneg %p167
      %p312 = pneg %p164
      %p313 = pneg %p188
      %p314 = pneg %p185
      %p315 = pneg %p209
      %p316 = pneg %p206
      %p317 = pneg %p235
      %p318 = pneg %p232
      %p319 = scmp.lt.s32.totalorder %s20, 1
      %s320 = scalar_select %p319, %s20, 1
      %s321 = smul.addr %s320, 32
      %s322 = smul.addr %s321, 8
      %s323 = scalar_lea.vmem %s9, %s322
      %s324 = smul.u32 4, %s20
      %p325 = scmp.lt.s32.totalorder %s324, 7
      %s326 = scalar_select %p325, %s324, 7
      %s327 = smul.addr %s326, 8
      %s328 = scalar_lea.vmem %s0, %s327
      %s329 = smul.u32 4, %s20
      %p330 = scmp.lt.s32.totalorder %s20, 1
      %s331 = scalar_select %p330, %s20, 1
      %s332 = smul.addr %s331, 32
      %s333 = smul.addr %s332, 8
      %s334 = scalar_lea.vmem %s9, %s333
      %v335 = vld [vmem:[%s328] sm:$0xff]
      %s336 = scalar_lea.vmem %s328, 8
      %v337 = vld [vmem:[%s336] sm:$0xff]
      %s338 = scalar_lea.vmem %s328, 16
      %v339 = vld [vmem:[%s338] sm:$0xff]
      %s340 = scalar_lea.vmem %s328, 24
      %v341 = vld [vmem:[%s340] sm:$0xff]
      %v342 = vld [vmem:[%s1] sm:$0xff]
      %344 = vset.pattern.permute.xlu0 0
      %345 = vperm.xlu0 %344, %v342
      %v346 = vpop.permute.xlu0 %345
      %v348 = vmul.f32 %v335, %v346
      %s349 = scalar_lea.vmem %s1, 8
      %v350 = vld [vmem:[%s349] sm:$0xff]
      %352 = vset.pattern.permute.xlu0 0
      %353 = vperm.xlu0 %352, %v350
      %v354 = vpop.permute.xlu0 %353
      %v356 = vmul.f32 %v337, %v354
      %v357 = vadd.f32 %v348, %v356
      %s358 = scalar_lea.vmem %s1, 16
      %v359 = vld [vmem:[%s358] sm:$0xff]
      %361 = vset.pattern.permute.xlu0 0
      %362 = vperm.xlu0 %361, %v359
      %v363 = vpop.permute.xlu0 %362
      %v365 = vmul.f32 %v335, %v363
      %367 = vrot.lane.b32.xlu0 %v365, 127
      %v368 = vpop.permute.xlu0 %367
      %v370 = vadd.f32 %v357, %v368
      %s371 = scalar_lea.vmem %s1, 24
      %v372 = vld [vmem:[%s371] sm:$0xff]
      %374 = vset.pattern.permute.xlu0 0
      %375 = vperm.xlu0 %374, %v372
      %v376 = vpop.permute.xlu0 %375
      %v378 = vmul.f32 %v339, %v376
      %v379 = vadd.f32 %v370, %v378
      %s380 = scalar_lea.vmem %s1, 32
      %v381 = vld [vmem:[%s380] sm:$0xff]
      %383 = vset.pattern.permute.xlu0 0
      %384 = vperm.xlu0 %383, %v381
      %v385 = vpop.permute.xlu0 %384
      %v387 = vmul.f32 %v341, %v385
      %v388 = vadd.f32 %v379, %v387
      %s389 = scalar_lea.vmem %s1, 40
      %v390 = vld [vmem:[%s389] sm:$0xff]
      %392 = vset.pattern.permute.xlu0 0
      %393 = vperm.xlu0 %392, %v390
      %v394 = vpop.permute.xlu0 %393
      %v396 = vmul.f32 %v339, %v394
      %398 = vrot.lane.b32.xlu0 %v396, 127
      %v399 = vpop.permute.xlu0 %398
      %v401 = vadd.f32 %v388, %v399
      %s402 = scalar_lea.vmem %s1, 48
      %v403 = vld [vmem:[%s402] sm:$0xff]
      %405 = vset.pattern.permute.xlu0 0
      %406 = vperm.xlu0 %405, %v403
      %v407 = vpop.permute.xlu0 %406
      %v409 = vmul.f32 %v335, %v407
      %411 = vrot.lane.b32.xlu0 %v409, 119
      %v412 = vpop.permute.xlu0 %411
      %v414 = vadd.f32 %v401, %v412
      %s415 = scalar_lea.vmem %s1, 56
      %v416 = vld [vmem:[%s415] sm:$0xff]
      %418 = vset.pattern.permute.xlu0 0
      %419 = vperm.xlu0 %418, %v416
      %v420 = vpop.permute.xlu0 %419
      %v422 = vmul.f32 %v337, %v420
      %424 = vrot.lane.b32.xlu0 %v422, 119
      %v425 = vpop.permute.xlu0 %424
      %v427 = vadd.f32 %v414, %v425
      %s428 = scalar_lea.vmem %s1, 64
      %v429 = vld [vmem:[%s428] sm:$0xff]
      %431 = vset.pattern.permute.xlu0 0
      %432 = vperm.xlu0 %431, %v429
      %v433 = vpop.permute.xlu0 %432
      %v435 = vmul.f32 %v335, %v433
      %437 = vrot.lane.b32.xlu0 %v435, 118
      %v438 = vpop.permute.xlu0 %437
      %v440 = vadd.f32 %v427, %v438
      %v441 = vld [vmem:[%s2] sm:$0xff]
      %443 = vset.pattern.permute.xlu0 0
      %444 = vperm.xlu0 %443, %v441
      %v445 = vpop.permute.xlu0 %444
      %v447 = vadd.f32 %v440, %v445
      %v448 = vld [vmem:[%s3] sm:$0xff]
      %450 = vset.pattern.permute.xlu0 0
      %451 = vperm.xlu0 %450, %v448
      %v452 = vpop.permute.xlu0 %451
      %v454 = vmul.f32 %v447, %v452
      %v455 = vld [vmem:[%s4] sm:$0xff]
      %457 = vset.pattern.permute.xlu0 0
      %458 = vperm.xlu0 %457, %v455
      %v459 = vpop.permute.xlu0 %458
      %v461 = vadd.f32 %v454, %v459
      %v462 = vmax.f32 %v461, 0.0
      %v463 = vld [vmem:[%s5] sm:$0xff]
      %v464 = vld [vmem:[%s6] sm:$0xff]
      %466 = vset.pattern.permute.xlu0 0
      %467 = vperm.xlu0 %466, %v464
      %v468 = vpop.permute.xlu0 %467
      %vm470 = vcmask 64512
      %v472 = vsel %vm470, %v463, 0
      %474 = vmatprep.subr.mxu0 0.0
      %475 = vmatpush1.msra.mxu0 %v462
      %476 = vmatprep.subr.mxu0 0.0
      %477 = vmatpush1.msra.mxu0 0.0
      %478 = vmatprep.subr.mxu0 0.0
      %479 = vmatpush1.msra.mxu0 0.0
      %480 = vmatprep.subr.mxu0 0.0
      %481 = vmatpush1.msra.mxu0 0.0
      %482 = vmatprep.subr.mxu0 0.0
      %483 = vmatpush1.msra.mxu0 0.0
      %484 = vmatprep.subr.mxu0 0.0
      %485 = vmatpush1.msra.mxu0 0.0
      %486 = vmatprep.subr.mxu0 0.0
      %487 = vmatpush1.msra.mxu0 0.0
      %488 = vmatprep.subr.mxu0 0.0
      %489 = vmatpush1.msra.mxu0 0.0
      %490 = vmatprep.subr.mxu0 0.0
      %491 = vmatpush1.msra.mxu0 0.0
      %492 = vmatprep.subr.mxu0 0.0
      %493 = vmatpush1.msra.mxu0 0.0
      %494 = vmatprep.subr.mxu0 0.0
      %495 = vmatpush1.msra.mxu0 0.0
      %496 = vmatprep.subr.mxu0 0.0
      %497 = vmatpush1.msra.mxu0 0.0
      %498 = vmatprep.subr.mxu0 0.0
      %499 = vmatpush1.msra.mxu0 0.0
      %500 = vmatprep.subr.mxu0 0.0
      %501 = vmatpush1.msra.mxu0 0.0
      %502 = vmatprep.subr.mxu0 0.0
      %503 = vmatpush1.msra.mxu0 0.0
      %504 = vmatprep.subr.mxu0 0.0
      %505 = vmatpush1.msra.mxu0 0.0
      %506 = vmatprep.subr.mxu0 0.0
      %507 = vmatpush1.msra.mxu0 0.0
      %508 = vmatprep.subr.mxu0 0.0
      %509 = vmatpush1.msra.mxu0 0.0
      %510 = vmatprep.subr.mxu0 0.0
      %511 = vmatpush1.msra.mxu0 0.0
      %512 = vmatprep.subr.mxu0 0.0
      %513 = vmatpush1.msra.mxu0 0.0
      %514 = vmatprep.subr.mxu0 0.0
      %515 = vmatpush1.msra.mxu0 0.0
      %516 = vmatprep.subr.mxu0 0.0
      %517 = vmatpush1.msra.mxu0 0.0
      %518 = vmatprep.subr.mxu0 0.0
      %519 = vmatpush1.msra.mxu0 0.0
      %520 = vmatprep.subr.mxu0 0.0
      %521 = vmatpush1.msra.mxu0 0.0
      %522 = vmatprep.subr.mxu0 0.0
      %523 = vmatpush1.msra.mxu0 0.0
      %524 = vmatprep.subr.mxu0 0.0
      %525 = vmatpush1.msra.mxu0 0.0
      %526 = vmatprep.subr.mxu0 0.0
      %527 = vmatpush1.msra.mxu0 0.0
      %528 = vmatprep.subr.mxu0 0.0
      %529 = vmatpush1.msra.mxu0 0.0
      %530 = vmatprep.subr.mxu0 0.0
      %531 = vmatpush1.msra.mxu0 0.0
      %532 = vmatprep.subr.mxu0 0.0
      %533 = vmatpush1.msra.mxu0 0.0
      %534 = vmatprep.subr.mxu0 0.0
      %535 = vmatpush1.msra.mxu0 0.0
      %536 = vmatprep.subr.mxu0 0.0
      %537 = vmatpush1.msra.mxu0 0.0
      %538 = vmatprep.mubr.f32.mxu0 0.0
      %539 = vmatmul.mubr.f32.gmra.mrb[0].mxu0 %v472
      %v540 = vpop.f32.mrb[0].mxu0
      %v541 = vadd.f32 %v468, %v540
      %v542 = vpop.f32.mrb[0].mxu0
      %543 = vdwg.mxu0
      %v544 = vld [vmem:[%s7] sm:$0xff]
      %546 = vset.pattern.permute.xlu0 0
      %547 = vperm.xlu0 %546, %v544
      %v548 = vpop.permute.xlu0 %547
      %v550 = vmul.f32 %v541, %v548
      %v551 = vld [vmem:[%s8] sm:$0xff]
      %553 = vset.pattern.permute.xlu0 0
      %554 = vperm.xlu0 %553, %v551
      %v555 = vpop.permute.xlu0 %554
      %v557 = vadd.f32 %v550, %v555
      %v558 = vmax.f32 %v557, 0.0
      %v560 = vcombine.high %v558, %v558
      %v562 = vunpack.c.l.s4 1966171168
      %v563 = vunpack.c.0.s8 %v562
      %v564 = vlaneseq
      %v565 = vshrl.u32 %v564, 7
      %v566 = vsub.s32 %v563, %v565
      %v567 = vrot.slane %v558, %v566
      %v569 = vunpack.c.l.s4 1966171168
      %v570 = vunpack.c.0.s8 %v569
      %v571 = vlaneseq
      %v572 = vshrl.u32 %v571, 7
      %v573 = vsub.s32 %v570, %v572
      %v574 = vrot.slane %v560, %v573
      %v575 = vcombine.high %v567, %v567
      %v576 = vcombine.high %v574, %v574
      %v578 = vunpack.c.l.s4 1966171168
      %v579 = vunpack.c.0.s8 %v578
      %v580 = vlaneseq
      %v581 = vshrl.u32 %v580, 7
      %v582 = vsub.s32 %v579, %v581
      %v583 = vrot.slane %v567, %v582
      %v585 = vunpack.c.l.s4 1966171168
      %v586 = vunpack.c.0.s8 %v585
      %v587 = vlaneseq
      %v588 = vshrl.u32 %v587, 7
      %v589 = vsub.s32 %v586, %v588
      %v590 = vrot.slane %v574, %v589
      %v592 = vunpack.c.l.s4 1966171168
      %v593 = vunpack.c.0.s8 %v592
      %v594 = vlaneseq
      %v595 = vshrl.u32 %v594, 7
      %v596 = vsub.s32 %v593, %v595
      %v597 = vrot.slane %v575, %v596
      %v599 = vunpack.c.l.s4 1966171168
      %v600 = vunpack.c.0.s8 %v599
      %v601 = vlaneseq
      %v602 = vshrl.u32 %v601, 7
      %v603 = vsub.s32 %v600, %v602
      %v604 = vrot.slane %v576, %v603
      %v605 = vcombine.high %v583, %v583
      %v606 = vcombine.high %v590, %v590
      %v607 = vcombine.high %v597, %v597
      %v608 = vcombine.high %v604, %v604
      %vm617 = vcmask 57344
      %618 = vst.msk [vmem:[%s334] sm:$0x1] %vm617, %v583
      %619 = vst.msk [vmem:[%s334 + $0x8] sm:$0x1] %vm617, %v597
      %620 = vst.msk [vmem:[%s334 + $0x10] sm:$0x1] %vm617, %v605
      %621 = vst.msk [vmem:[%s334 + $0x18] sm:$0x1] %vm617, %v607
      %622 = vst.msk [vmem:[%s334 + $0x20] sm:$0x1] %vm617, %v590
      %623 = vst.msk [vmem:[%s334 + $0x28] sm:$0x1] %vm617, %v604
      %624 = vst.msk [vmem:[%s334 + $0x30] sm:$0x1] %vm617, %v606
      %625 = vst.msk [vmem:[%s334 + $0x38] sm:$0x1] %vm617, %v608
      %v626 = vlaneseq
      %v627 = vshrl.u32 %v626, 7
      %v628 = vsub.s32 0, %v627
      %v629 = vrot.slane %v583, %v628
      %v630 = vlaneseq
      %v631 = vshrl.u32 %v630, 7
      %v632 = vsub.s32 0, %v631
      %v633 = vrot.slane %v597, %v632
      %v634 = vlaneseq
      %v635 = vshrl.u32 %v634, 7
      %v636 = vsub.s32 0, %v635
      %v637 = vrot.slane %v605, %v636
      %v638 = vlaneseq
      %v639 = vshrl.u32 %v638, 7
      %v640 = vsub.s32 0, %v639
      %v641 = vrot.slane %v607, %v640
      %v642 = vlaneseq
      %v643 = vshrl.u32 %v642, 7
      %v644 = vsub.s32 0, %v643
      %v645 = vrot.slane %v590, %v644
      %v646 = vlaneseq
      %v647 = vshrl.u32 %v646, 7
      %v648 = vsub.s32 0, %v647
      %v649 = vrot.slane %v604, %v648
      %v650 = vlaneseq
      %v651 = vshrl.u32 %v650, 7
      %v652 = vsub.s32 0, %v651
      %v653 = vrot.slane %v606, %v652
      %v654 = vlaneseq
      %v655 = vshrl.u32 %v654, 7
      %v656 = vsub.s32 0, %v655
      %v657 = vrot.slane %v608, %v656
      %658 = vrot.lane.b32.xlu0 %v629, 119
      %v659 = vpop.permute.xlu0 %658
      %660 = vrot.lane.b32.xlu0 %v633, 119
      %v661 = vpop.permute.xlu0 %660
      %662 = vrot.lane.b32.xlu0 %v637, 119
      %v663 = vpop.permute.xlu0 %662
      %664 = vrot.lane.b32.xlu0 %v641, 119
      %v665 = vpop.permute.xlu0 %664
      %666 = vrot.lane.b32.xlu0 %v645, 119
      %v667 = vpop.permute.xlu0 %666
      %668 = vrot.lane.b32.xlu0 %v649, 119
      %v669 = vpop.permute.xlu0 %668
      %670 = vrot.lane.b32.xlu0 %v653, 119
      %v671 = vpop.permute.xlu0 %670
      %672 = vrot.lane.b32.xlu0 %v657, 119
      %v673 = vpop.permute.xlu0 %672
      %682 = vst.msk [vmem:[%s334 + $0x1] sm:$0x1] %vm617, %v659
      %683 = vst.msk [vmem:[%s334 + $0x9] sm:$0x1] %vm617, %v661
      %684 = vst.msk [vmem:[%s334 + $0x11] sm:$0x1] %vm617, %v663
      %685 = vst.msk [vmem:[%s334 + $0x19] sm:$0x1] %vm617, %v665
      %686 = vst.msk [vmem:[%s334 + $0x21] sm:$0x1] %vm617, %v667
      %687 = vst.msk [vmem:[%s334 + $0x29] sm:$0x1] %vm617, %v669
      %688 = vst.msk [vmem:[%s334 + $0x31] sm:$0x1] %vm617, %v671
      %689 = vst.msk [vmem:[%s334 + $0x39] sm:$0x1] %vm617, %v673
      %690 = vrot.lane.b32.xlu0 %v629, 110
      %v691 = vpop.permute.xlu0 %690
      %692 = vrot.lane.b32.xlu0 %v633, 110
      %v693 = vpop.permute.xlu0 %692
      %694 = vrot.lane.b32.xlu0 %v637, 110
      %v695 = vpop.permute.xlu0 %694
      %696 = vrot.lane.b32.xlu0 %v641, 110
      %v697 = vpop.permute.xlu0 %696
      %698 = vrot.lane.b32.xlu0 %v645, 110
      %v699 = vpop.permute.xlu0 %698
      %700 = vrot.lane.b32.xlu0 %v649, 110
      %v701 = vpop.permute.xlu0 %700
      %702 = vrot.lane.b32.xlu0 %v653, 110
      %v703 = vpop.permute.xlu0 %702
      %704 = vrot.lane.b32.xlu0 %v657, 110
      %v705 = vpop.permute.xlu0 %704
      %714 = vst.msk [vmem:[%s334 + $0x2] sm:$0x1] %vm617, %v691
      %715 = vst.msk [vmem:[%s334 + $0xa] sm:$0x1] %vm617, %v693
      %716 = vst.msk [vmem:[%s334 + $0x12] sm:$0x1] %vm617, %v695
      %717 = vst.msk [vmem:[%s334 + $0x1a] sm:$0x1] %vm617, %v697
      %718 = vst.msk [vmem:[%s334 + $0x22] sm:$0x1] %vm617, %v699
      %719 = vst.msk [vmem:[%s334 + $0x2a] sm:$0x1] %vm617, %v701
      %720 = vst.msk [vmem:[%s334 + $0x32] sm:$0x1] %vm617, %v703
      %721 = vst.msk [vmem:[%s334 + $0x3a] sm:$0x1] %vm617, %v705
      %722 = vrot.lane.b32.xlu0 %v629, 101
      %v723 = vpop.permute.xlu0 %722
      %724 = vrot.lane.b32.xlu0 %v633, 101
      %v725 = vpop.permute.xlu0 %724
      %726 = vrot.lane.b32.xlu0 %v637, 101
      %v727 = vpop.permute.xlu0 %726
      %728 = vrot.lane.b32.xlu0 %v641, 101
      %v729 = vpop.permute.xlu0 %728
      %730 = vrot.lane.b32.xlu0 %v645, 101
      %v731 = vpop.permute.xlu0 %730
      %732 = vrot.lane.b32.xlu0 %v649, 101
      %v733 = vpop.permute.xlu0 %732
      %734 = vrot.lane.b32.xlu0 %v653, 101
      %v735 = vpop.permute.xlu0 %734
      %736 = vrot.lane.b32.xlu0 %v657, 101
      %v737 = vpop.permute.xlu0 %736
      %746 = vst.msk [vmem:[%s334 + $0x3] sm:$0x1] %vm617, %v723
      %747 = vst.msk [vmem:[%s334 + $0xb] sm:$0x1] %vm617, %v725
      %748 = vst.msk [vmem:[%s334 + $0x13] sm:$0x1] %vm617, %v727
      %749 = vst.msk [vmem:[%s334 + $0x1b] sm:$0x1] %vm617, %v729
      %750 = vst.msk [vmem:[%s334 + $0x23] sm:$0x1] %vm617, %v731
      %751 = vst.msk [vmem:[%s334 + $0x2b] sm:$0x1] %vm617, %v733
      %752 = vst.msk [vmem:[%s334 + $0x33] sm:$0x1] %vm617, %v735
      %753 = vst.msk [vmem:[%s334 + $0x3b] sm:$0x1] %vm617, %v737
      %754 = vrot.lane.b32.xlu0 %v629, 92
      %v755 = vpop.permute.xlu0 %754
      %756 = vrot.lane.b32.xlu0 %v633, 92
      %v757 = vpop.permute.xlu0 %756
      %758 = vrot.lane.b32.xlu0 %v637, 92
      %v759 = vpop.permute.xlu0 %758
      %760 = vrot.lane.b32.xlu0 %v641, 92
      %v761 = vpop.permute.xlu0 %760
      %762 = vrot.lane.b32.xlu0 %v645, 92
      %v763 = vpop.permute.xlu0 %762
      %764 = vrot.lane.b32.xlu0 %v649, 92
      %v765 = vpop.permute.xlu0 %764
      %766 = vrot.lane.b32.xlu0 %v653, 92
      %v767 = vpop.permute.xlu0 %766
      %768 = vrot.lane.b32.xlu0 %v657, 92
      %v769 = vpop.permute.xlu0 %768
      %778 = vst.msk [vmem:[%s334 + $0x4] sm:$0x1] %vm617, %v755
      %779 = vst.msk [vmem:[%s334 + $0xc] sm:$0x1] %vm617, %v757
      %780 = vst.msk [vmem:[%s334 + $0x14] sm:$0x1] %vm617, %v759
      %781 = vst.msk [vmem:[%s334 + $0x1c] sm:$0x1] %vm617, %v761
      %782 = vst.msk [vmem:[%s334 + $0x24] sm:$0x1] %vm617, %v763
      %783 = vst.msk [vmem:[%s334 + $0x2c] sm:$0x1] %vm617, %v765
      %784 = vst.msk [vmem:[%s334 + $0x34] sm:$0x1] %vm617, %v767
      %785 = vst.msk [vmem:[%s334 + $0x3c] sm:$0x1] %vm617, %v769
      %786 = vrot.lane.b32.xlu0 %v629, 83
      %v787 = vpop.permute.xlu0 %786
      %788 = vrot.lane.b32.xlu0 %v633, 83
      %v789 = vpop.permute.xlu0 %788
      %790 = vrot.lane.b32.xlu0 %v637, 83
      %v791 = vpop.permute.xlu0 %790
      %792 = vrot.lane.b32.xlu0 %v641, 83
      %v793 = vpop.permute.xlu0 %792
      %794 = vrot.lane.b32.xlu0 %v645, 83
      %v795 = vpop.permute.xlu0 %794
      %796 = vrot.lane.b32.xlu0 %v649, 83
      %v797 = vpop.permute.xlu0 %796
      %798 = vrot.lane.b32.xlu0 %v653, 83
      %v799 = vpop.permute.xlu0 %798
      %800 = vrot.lane.b32.xlu0 %v657, 83
      %v801 = vpop.permute.xlu0 %800
      %810 = vst.msk [vmem:[%s334 + $0x5] sm:$0x1] %vm617, %v787
      %811 = vst.msk [vmem:[%s334 + $0xd] sm:$0x1] %vm617, %v789
      %812 = vst.msk [vmem:[%s334 + $0x15] sm:$0x1] %vm617, %v791
      %813 = vst.msk [vmem:[%s334 + $0x1d] sm:$0x1] %vm617, %v793
      %814 = vst.msk [vmem:[%s334 + $0x25] sm:$0x1] %vm617, %v795
      %815 = vst.msk [vmem:[%s334 + $0x2d] sm:$0x1] %vm617, %v797
      %816 = vst.msk [vmem:[%s334 + $0x35] sm:$0x1] %vm617, %v799
      %817 = vst.msk [vmem:[%s334 + $0x3d] sm:$0x1] %vm617, %v801
      %818 = vrot.lane.b32.xlu0 %v629, 74
      %v819 = vpop.permute.xlu0 %818
      %820 = vrot.lane.b32.xlu0 %v633, 74
      %v821 = vpop.permute.xlu0 %820
      %822 = vrot.lane.b32.xlu0 %v637, 74
      %v823 = vpop.permute.xlu0 %822
      %824 = vrot.lane.b32.xlu0 %v641, 74
      %v825 = vpop.permute.xlu0 %824
      %826 = vrot.lane.b32.xlu0 %v645, 74
      %v827 = vpop.permute.xlu0 %826
      %828 = vrot.lane.b32.xlu0 %v649, 74
      %v829 = vpop.permute.xlu0 %828
      %830 = vrot.lane.b32.xlu0 %v653, 74
      %v831 = vpop.permute.xlu0 %830
      %832 = vrot.lane.b32.xlu0 %v657, 74
      %v833 = vpop.permute.xlu0 %832
      %842 = vst.msk [vmem:[%s334 + $0x6] sm:$0x1] %vm617, %v819
      %843 = vst.msk [vmem:[%s334 + $0xe] sm:$0x1] %vm617, %v821
      %844 = vst.msk [vmem:[%s334 + $0x16] sm:$0x1] %vm617, %v823
      %845 = vst.msk [vmem:[%s334 + $0x1e] sm:$0x1] %vm617, %v825
      %846 = vst.msk [vmem:[%s334 + $0x26] sm:$0x1] %vm617, %v827
      %847 = vst.msk [vmem:[%s334 + $0x2e] sm:$0x1] %vm617, %v829
      %848 = vst.msk [vmem:[%s334 + $0x36] sm:$0x1] %vm617, %v831
      %849 = vst.msk [vmem:[%s334 + $0x3e] sm:$0x1] %vm617, %v833
      %850 = vrot.lane.b32.xlu0 %v629, 65
      %v851 = vpop.permute.xlu0 %850
      %852 = vrot.lane.b32.xlu0 %v633, 65
      %v853 = vpop.permute.xlu0 %852
      %854 = vrot.lane.b32.xlu0 %v637, 65
      %v855 = vpop.permute.xlu0 %854
      %856 = vrot.lane.b32.xlu0 %v641, 65
      %v857 = vpop.permute.xlu0 %856
      %858 = vrot.lane.b32.xlu0 %v645, 65
      %v859 = vpop.permute.xlu0 %858
      %860 = vrot.lane.b32.xlu0 %v649, 65
      %v861 = vpop.permute.xlu0 %860
      %862 = vrot.lane.b32.xlu0 %v653, 65
      %v863 = vpop.permute.xlu0 %862
      %864 = vrot.lane.b32.xlu0 %v657, 65
      %v865 = vpop.permute.xlu0 %864
      %874 = vst.msk [vmem:[%s334 + $0x7] sm:$0x1] %vm617, %v851
      %875 = vst.msk [vmem:[%s334 + $0xf] sm:$0x1] %vm617, %v853
      %876 = vst.msk [vmem:[%s334 + $0x17] sm:$0x1] %vm617, %v855
      %877 = vst.msk [vmem:[%s334 + $0x1f] sm:$0x1] %vm617, %v857
      %878 = vst.msk [vmem:[%s334 + $0x27] sm:$0x1] %vm617, %v859
      %879 = vst.msk [vmem:[%s334 + $0x2f] sm:$0x1] %vm617, %v861
      %880 = vst.msk [vmem:[%s334 + $0x37] sm:$0x1] %vm617, %v863
      %881 = vst.msk [vmem:[%s334 + $0x3f] sm:$0x1] %vm617, %v865
      %s882 = scalar_lea.vmem %s1, 72
      %v883 = vld [vmem:[%s882] sm:$0xff]
      %885 = vset.pattern.permute.xlu0 0
      %886 = vperm.xlu0 %885, %v883
      %v887 = vpop.permute.xlu0 %886
      %v889 = vmul.f32 %v335, %v887
      %s890 = scalar_lea.vmem %s1, 80
      %v891 = vld [vmem:[%s890] sm:$0xff]
      %893 = vset.pattern.permute.xlu0 0
      %894 = vperm.xlu0 %893, %v891
      %v895 = vpop.permute.xlu0 %894
      %v897 = vmul.f32 %v337, %v895
      %v898 = vadd.f32 %v889, %v897
      %s899 = scalar_lea.vmem %s1, 88
      %v900 = vld [vmem:[%s899] sm:$0xff]
      %902 = vset.pattern.permute.xlu0 0
      %903 = vperm.xlu0 %902, %v900
      %v904 = vpop.permute.xlu0 %903
      %v906 = vmul.f32 %v335, %v904
      %908 = vrot.lane.b32.xlu0 %v906, 127
      %v909 = vpop.permute.xlu0 %908
      %v911 = vadd.f32 %v898, %v909
      %s912 = scalar_lea.vmem %s1, 96
      %v913 = vld [vmem:[%s912] sm:$0xff]
      %915 = vset.pattern.permute.xlu0 0
      %916 = vperm.xlu0 %915, %v913
      %v917 = vpop.permute.xlu0 %916
      %v919 = vmul.f32 %v339, %v917
      %v920 = vadd.f32 %v911, %v919
      %s921 = scalar_lea.vmem %s1, 104
      %v922 = vld [vmem:[%s921] sm:$0xff]
      %924 = vset.pattern.permute.xlu0 0
      %925 = vperm.xlu0 %924, %v922
      %v926 = vpop.permute.xlu0 %925
      %v928 = vmul.f32 %v341, %v926
      %v929 = vadd.f32 %v920, %v928
      %s930 = scalar_lea.vmem %s1, 112
      %v931 = vld [vmem:[%s930] sm:$0xff]
      %933 = vset.pattern.permute.xlu0 0
      %934 = vperm.xlu0 %933, %v931
      %v935 = vpop.permute.xlu0 %934
      %v937 = vmul.f32 %v339, %v935
      %939 = vrot.lane.b32.xlu0 %v937, 127
      %v940 = vpop.permute.xlu0 %939
      %v942 = vadd.f32 %v929, %v940
      %s943 = scalar_lea.vmem %s1, 120
      %v944 = vld [vmem:[%s943] sm:$0xff]
      %946 = vset.pattern.permute.xlu0 0
      %947 = vperm.xlu0 %946, %v944
      %v948 = vpop.permute.xlu0 %947
      %v950 = vmul.f32 %v335, %v948
      %952 = vrot.lane.b32.xlu0 %v950, 119
      %v953 = vpop.permute.xlu0 %952
      %v955 = vadd.f32 %v942, %v953
      %s956 = scalar_lea.vmem %s1, 128
      %v957 = vld [vmem:[%s956] sm:$0xff]
      %959 = vset.pattern.permute.xlu0 0
      %960 = vperm.xlu0 %959, %v957
      %v961 = vpop.permute.xlu0 %960
      %v963 = vmul.f32 %v337, %v961
      %965 = vrot.lane.b32.xlu0 %v963, 119
      %v966 = vpop.permute.xlu0 %965
      %v968 = vadd.f32 %v955, %v966
      %s969 = scalar_lea.vmem %s1, 136
      %v970 = vld [vmem:[%s969] sm:$0xff]
      %972 = vset.pattern.permute.xlu0 0
      %973 = vperm.xlu0 %972, %v970
      %v974 = vpop.permute.xlu0 %973
      %v976 = vmul.f32 %v335, %v974
      %978 = vrot.lane.b32.xlu0 %v976, 118
      %v979 = vpop.permute.xlu0 %978
      %v981 = vadd.f32 %v968, %v979
      %s982 = scalar_lea.vmem %s2, 8
      %v983 = vld [vmem:[%s982] sm:$0xff]
      %985 = vset.pattern.permute.xlu0 0
      %986 = vperm.xlu0 %985, %v983
      %v987 = vpop.permute.xlu0 %986
      %v989 = vadd.f32 %v981, %v987
      %v990 = vld [vmem:[%s3 + $0x8] sm:$0xff]
      %992 = vset.pattern.permute.xlu0 0
      %993 = vperm.xlu0 %992, %v990
      %v994 = vpop.permute.xlu0 %993
      %v996 = vmul.f32 %v989, %v994
      %v997 = vld [vmem:[%s4 + $0x8] sm:$0xff]
      %999 = vset.pattern.permute.xlu0 0
      %1000 = vperm.xlu0 %999, %v997
      %v1001 = vpop.permute.xlu0 %1000
      %v1003 = vadd.f32 %v996, %v1001
      %v1004 = vmax.f32 %v1003, 0.0
      %v1005 = vld [vmem:[%s5 + $0x8] sm:$0xff]
      %v1006 = vld [vmem:[%s5 + $0x10] sm:$0xff]
      %v1007 = vld [vmem:[%s6 + $0x8] sm:$0xff]
      %v1008 = vld [vmem:[%s6 + $0x10] sm:$0xff]
      %1010 = vset.pattern.permute.xlu0 0
      %1011 = vperm.xlu0 %1010, %v1007
      %v1012 = vpop.permute.xlu0 %1011
      %1015 = vset.pattern.permute.xlu0 0
      %1016 = vperm.xlu0 %1015, %v1008
      %v1017 = vpop.permute.xlu0 %1016
      %v1020 = vsel %vm470, %v1005, 0
      %v1023 = vsel %vm470, %v1006, 0
      %1025 = vmatprep.subr.mxu0 0.0
      %1026 = vmatpush1.msra.mxu0 %v1004
      %1027 = vmatprep.subr.mxu0 0.0
      %1028 = vmatpush1.msra.mxu0 0.0
      %1029 = vmatprep.subr.mxu0 0.0
      %1030 = vmatpush1.msra.mxu0 0.0
      %1031 = vmatprep.subr.mxu0 0.0
      %1032 = vmatpush1.msra.mxu0 0.0
      %1033 = vmatprep.subr.mxu0 0.0
      %1034 = vmatpush1.msra.mxu0 0.0
      %1035 = vmatprep.subr.mxu0 0.0
      %1036 = vmatpush1.msra.mxu0 0.0
      %1037 = vmatprep.subr.mxu0 0.0
      %1038 = vmatpush1.msra.mxu0 0.0
      %1039 = vmatprep.subr.mxu0 0.0
      %1040 = vmatpush1.msra.mxu0 0.0
      %1041 = vmatprep.subr.mxu0 0.0
      %1042 = vmatpush1.msra.mxu0 0.0
      %1043 = vmatprep.subr.mxu0 0.0
      %1044 = vmatpush1.msra.mxu0 0.0
      %1045 = vmatprep.subr.mxu0 0.0
      %1046 = vmatpush1.msra.mxu0 0.0
      %1047 = vmatprep.subr.mxu0 0.0
      %1048 = vmatpush1.msra.mxu0 0.0
      %1049 = vmatprep.subr.mxu0 0.0
      %1050 = vmatpush1.msra.mxu0 0.0
      %1051 = vmatprep.subr.mxu0 0.0
      %1052 = vmatpush1.msra.mxu0 0.0
      %1053 = vmatprep.subr.mxu0 0.0
      %1054 = vmatpush1.msra.mxu0 0.0
      %1055 = vmatprep.subr.mxu0 0.0
      %1056 = vmatpush1.msra.mxu0 0.0
      %1057 = vmatprep.subr.mxu0 0.0
      %1058 = vmatpush1.msra.mxu0 0.0
      %1059 = vmatprep.subr.mxu0 0.0
      %1060 = vmatpush1.msra.mxu0 0.0
      %1061 = vmatprep.subr.mxu0 0.0
      %1062 = vmatpush1.msra.mxu0 0.0
      %1063 = vmatprep.subr.mxu0 0.0
      %1064 = vmatpush1.msra.mxu0 0.0
      %1065 = vmatprep.subr.mxu0 0.0
      %1066 = vmatpush1.msra.mxu0 0.0
      %1067 = vmatprep.subr.mxu0 0.0
      %1068 = vmatpush1.msra.mxu0 0.0
      %1069 = vmatprep.subr.mxu0 0.0
      %1070 = vmatpush1.msra.mxu0 0.0
      %1071 = vmatprep.subr.mxu0 0.0
      %1072 = vmatpush1.msra.mxu0 0.0
      %1073 = vmatprep.subr.mxu0 0.0
      %1074 = vmatpush1.msra.mxu0 0.0
      %1075 = vmatprep.subr.mxu0 0.0
      %1076 = vmatpush1.msra.mxu0 0.0
      %1077 = vmatprep.subr.mxu0 0.0
      %1078 = vmatpush1.msra.mxu0 0.0
      %1079 = vmatprep.subr.mxu0 0.0
      %1080 = vmatpush1.msra.mxu0 0.0
      %1081 = vmatprep.subr.mxu0 0.0
      %1082 = vmatpush1.msra.mxu0 0.0
      %1083 = vmatprep.subr.mxu0 0.0
      %1084 = vmatpush1.msra.mxu0 0.0
      %1085 = vmatprep.subr.mxu0 0.0
      %1086 = vmatpush1.msra.mxu0 0.0
      %1087 = vmatprep.subr.mxu0 0.0
      %1088 = vmatpush1.msra.mxu0 0.0
      %1089 = vmatprep.mubr.f32.mxu0 0.0
      %1090 = vmatmul.mubr.f32.gmra.mrb[0].mxu0 %v1020
      %v1091 = vpop.f32.mrb[0].mxu0
      %v1092 = vadd.f32 %v1012, %v1091
      %v1093 = vpop.f32.mrb[0].mxu0
      %1094 = vmatprep.mubr.f32.mxu0 0.0
      %1095 = vmatmul.mubr.f32.gmra.mrb[0].mxu0 %v1023
      %v1096 = vpop.f32.mrb[0].mxu0
      %v1097 = vadd.f32 %v1017, %v1096
      %v1098 = vpop.f32.mrb[0].mxu0
      %1099 = vdwg.mxu0
      %v1100 = vld [vmem:[%s7 + $0x8] sm:$0xff]
      %v1101 = vld [vmem:[%s7 + $0x10] sm:$0xff]
      %1103 = vset.pattern.permute.xlu0 0
      %1104 = vperm.xlu0 %1103, %v1100
      %v1105 = vpop.permute.xlu0 %1104
      %1108 = vset.pattern.permute.xlu0 0
      %1109 = vperm.xlu0 %1108, %v1101
      %v1110 = vpop.permute.xlu0 %1109
      %v1112 = vmul.f32 %v1092, %v1105
      %v1113 = vmul.f32 %v1097, %v1110
      %v1114 = vld [vmem:[%s8 + $0x8] sm:$0xff]
      %v1115 = vld [vmem:[%s8 + $0x10] sm:$0xff]
      %1117 = vset.pattern.permute.xlu0 0
      %1118 = vperm.xlu0 %1117, %v1114
      %v1119 = vpop.permute.xlu0 %1118
      %1122 = vset.pattern.permute.xlu0 0
      %1123 = vperm.xlu0 %1122, %v1115
      %v1124 = vpop.permute.xlu0 %1123
      %v1126 = vadd.f32 %v1112, %v1119
      %v1127 = vadd.f32 %v1113, %v1124
      %v1128 = vmax.f32 %v1126, 0.0
      %v1129 = vmax.f32 %v1127, 0.0
      %v1132 = vcombine.high %v1128, %v1128
      %v1134 = vunpack.c.l.s4 1966171168
      %v1135 = vunpack.c.0.s8 %v1134
      %v1136 = vlaneseq
      %v1137 = vshrl.u32 %v1136, 7
      %v1138 = vsub.s32 %v1135, %v1137
      %v1139 = vrot.slane %v1128, %v1138
      %v1141 = vunpack.c.l.s4 1966171168
      %v1142 = vunpack.c.0.s8 %v1141
      %v1143 = vlaneseq
      %v1144 = vshrl.u32 %v1143, 7
      %v1145 = vsub.s32 %v1142, %v1144
      %v1146 = vrot.slane %v1132, %v1145
      %v1147 = vcombine.high %v1139, %v1139
      %v1148 = vcombine.high %v1146, %v1146
      %v1150 = vunpack.c.l.s4 1966171168
      %v1151 = vunpack.c.0.s8 %v1150
      %v1152 = vlaneseq
      %v1153 = vshrl.u32 %v1152, 7
      %v1154 = vsub.s32 %v1151, %v1153
      %v1155 = vrot.slane %v1139, %v1154
      %v1157 = vunpack.c.l.s4 1966171168
      %v1158 = vunpack.c.0.s8 %v1157
      %v1159 = vlaneseq
      %v1160 = vshrl.u32 %v1159, 7
      %v1161 = vsub.s32 %v1158, %v1160
      %v1162 = vrot.slane %v1146, %v1161
      %v1164 = vunpack.c.l.s4 1966171168
      %v1165 = vunpack.c.0.s8 %v1164
      %v1166 = vlaneseq
      %v1167 = vshrl.u32 %v1166, 7
      %v1168 = vsub.s32 %v1165, %v1167
      %v1169 = vrot.slane %v1147, %v1168
      %v1171 = vunpack.c.l.s4 1966171168
      %v1172 = vunpack.c.0.s8 %v1171
      %v1173 = vlaneseq
      %v1174 = vshrl.u32 %v1173, 7
      %v1175 = vsub.s32 %v1172, %v1174
      %v1176 = vrot.slane %v1148, %v1175
      %v1177 = vcombine.high %v1155, %v1155
      %v1178 = vcombine.high %v1162, %v1162
      %v1179 = vcombine.high %v1169, %v1169
      %v1180 = vcombine.high %v1176, %v1176
      %v1181 = vcombine.high %v1129, %v1129
      %v1183 = vunpack.c.l.s4 1966171168
      %v1184 = vunpack.c.0.s8 %v1183
      %v1185 = vlaneseq
      %v1186 = vshrl.u32 %v1185, 7
      %v1187 = vsub.s32 %v1184, %v1186
      %v1188 = vrot.slane %v1129, %v1187
      %v1190 = vunpack.c.l.s4 1966171168
      %v1191 = vunpack.c.0.s8 %v1190
      %v1192 = vlaneseq
      %v1193 = vshrl.u32 %v1192, 7
      %v1194 = vsub.s32 %v1191, %v1193
      %v1195 = vrot.slane %v1181, %v1194
      %v1196 = vcombine.high %v1188, %v1188
      %v1197 = vcombine.high %v1195, %v1195
      %v1199 = vunpack.c.l.s4 1966171168
      %v1200 = vunpack.c.0.s8 %v1199
      %v1201 = vlaneseq
      %v1202 = vshrl.u32 %v1201, 7
      %v1203 = vsub.s32 %v1200, %v1202
      %v1204 = vrot.slane %v1188, %v1203
      %v1206 = vunpack.c.l.s4 1966171168
      %v1207 = vunpack.c.0.s8 %v1206
      %v1208 = vlaneseq
      %v1209 = vshrl.u32 %v1208, 7
      %v1210 = vsub.s32 %v1207, %v1209
      %v1211 = vrot.slane %v1195, %v1210
      %v1213 = vunpack.c.l.s4 1966171168
      %v1214 = vunpack.c.0.s8 %v1213
      %v1215 = vlaneseq
      %v1216 = vshrl.u32 %v1215, 7
      %v1217 = vsub.s32 %v1214, %v1216
      %v1218 = vrot.slane %v1196, %v1217
      %v1220 = vunpack.c.l.s4 1966171168
      %v1221 = vunpack.c.0.s8 %v1220
      %v1222 = vlaneseq
      %v1223 = vshrl.u32 %v1222, 7
      %v1224 = vsub.s32 %v1221, %v1223
      %v1225 = vrot.slane %v1197, %v1224
      %v1226 = vcombine.high %v1204, %v1204
      %v1227 = vcombine.high %v1211, %v1211
      %v1228 = vcombine.high %v1218, %v1218
      %v1229 = vcombine.high %v1225, %v1225
      %s1246 = scalar_lea.vmem %s334, 64
      %1247 = vst.msk [vmem:[%s1246] sm:$0x1] %vm617, %v1155
      %1248 = vst.msk [vmem:[%s1246 + $0x8] sm:$0x1] %vm617, %v1169
      %1249 = vst.msk [vmem:[%s1246 + $0x10] sm:$0x1] %vm617, %v1177
      %1250 = vst.msk [vmem:[%s1246 + $0x18] sm:$0x1] %vm617, %v1179
      %1251 = vst.msk [vmem:[%s1246 + $0x20] sm:$0x1] %vm617, %v1162
      %1252 = vst.msk [vmem:[%s1246 + $0x28] sm:$0x1] %vm617, %v1176
      %1253 = vst.msk [vmem:[%s1246 + $0x30] sm:$0x1] %vm617, %v1178
      %1254 = vst.msk [vmem:[%s1246 + $0x38] sm:$0x1] %vm617, %v1180
      %1255 = vst.msk [vmem:[%s1246 + $0x40] sm:$0x1] %vm617, %v1204
      %1256 = vst.msk [vmem:[%s1246 + $0x48] sm:$0x1] %vm617, %v1218
      %1257 = vst.msk [vmem:[%s1246 + $0x50] sm:$0x1] %vm617, %v1226
      %1258 = vst.msk [vmem:[%s1246 + $0x58] sm:$0x1] %vm617, %v1228
      %1259 = vst.msk [vmem:[%s1246 + $0x60] sm:$0x1] %vm617, %v1211
      %1260 = vst.msk [vmem:[%s1246 + $0x68] sm:$0x1] %vm617, %v1225
      %1261 = vst.msk [vmem:[%s1246 + $0x70] sm:$0x1] %vm617, %v1227
      %1262 = vst.msk [vmem:[%s1246 + $0x78] sm:$0x1] %vm617, %v1229
      %v1263 = vlaneseq
      %v1264 = vshrl.u32 %v1263, 7
      %v1265 = vsub.s32 0, %v1264
      %v1266 = vrot.slane %v1155, %v1265
      %v1267 = vlaneseq
      %v1268 = vshrl.u32 %v1267, 7
      %v1269 = vsub.s32 0, %v1268
      %v1270 = vrot.slane %v1169, %v1269
      %v1271 = vlaneseq
      %v1272 = vshrl.u32 %v1271, 7
      %v1273 = vsub.s32 0, %v1272
      %v1274 = vrot.slane %v1177, %v1273
      %v1275 = vlaneseq
      %v1276 = vshrl.u32 %v1275, 7
      %v1277 = vsub.s32 0, %v1276
      %v1278 = vrot.slane %v1179, %v1277
      %v1279 = vlaneseq
      %v1280 = vshrl.u32 %v1279, 7
      %v1281 = vsub.s32 0, %v1280
      %v1282 = vrot.slane %v1162, %v1281
      %v1283 = vlaneseq
      %v1284 = vshrl.u32 %v1283, 7
      %v1285 = vsub.s32 0, %v1284
      %v1286 = vrot.slane %v1176, %v1285
      %v1287 = vlaneseq
      %v1288 = vshrl.u32 %v1287, 7
      %v1289 = vsub.s32 0, %v1288
      %v1290 = vrot.slane %v1178, %v1289
      %v1291 = vlaneseq
      %v1292 = vshrl.u32 %v1291, 7
      %v1293 = vsub.s32 0, %v1292
      %v1294 = vrot.slane %v1180, %v1293
      %v1295 = vlaneseq
      %v1296 = vshrl.u32 %v1295, 7
      %v1297 = vsub.s32 0, %v1296
      %v1298 = vrot.slane %v1204, %v1297
      %v1299 = vlaneseq
      %v1300 = vshrl.u32 %v1299, 7
      %v1301 = vsub.s32 0, %v1300
      %v1302 = vrot.slane %v1218, %v1301
      %v1303 = vlaneseq
      %v1304 = vshrl.u32 %v1303, 7
      %v1305 = vsub.s32 0, %v1304
      %v1306 = vrot.slane %v1226, %v1305
      %v1307 = vlaneseq
      %v1308 = vshrl.u32 %v1307, 7
      %v1309 = vsub.s32 0, %v1308
      %v1310 = vrot.slane %v1228, %v1309
      %v1311 = vlaneseq
      %v1312 = vshrl.u32 %v1311, 7
      %v1313 = vsub.s32 0, %v1312
      %v1314 = vrot.slane %v1211, %v1313
      %v1315 = vlaneseq
      %v1316 = vshrl.u32 %v1315, 7
      %v1317 = vsub.s32 0, %v1316
      %v1318 = vrot.slane %v1225, %v1317
      %v1319 = vlaneseq
      %v1320 = vshrl.u32 %v1319, 7
      %v1321 = vsub.s32 0, %v1320
      %v1322 = vrot.slane %v1227, %v1321
      %v1323 = vlaneseq
      %v1324 = vshrl.u32 %v1323, 7
      %v1325 = vsub.s32 0, %v1324
      %v1326 = vrot.slane %v1229, %v1325
      %1327 = vrot.lane.b32.xlu0 %v1266, 119
      %v1328 = vpop.permute.xlu0 %1327
      %1329 = vrot.lane.b32.xlu0 %v1270, 119
      %v1330 = vpop.permute.xlu0 %1329
      %1331 = vrot.lane.b32.xlu0 %v1274, 119
      %v1332 = vpop.permute.xlu0 %1331
      %1333 = vrot.lane.b32.xlu0 %v1278, 119
      %v1334 = vpop.permute.xlu0 %1333
      %1335 = vrot.lane.b32.xlu0 %v1282, 119
      %v1336 = vpop.permute.xlu0 %1335
      %1337 = vrot.lane.b32.xlu0 %v1286, 119
      %v1338 = vpop.permute.xlu0 %1337
      %1339 = vrot.lane.b32.xlu0 %v1290, 119
      %v1340 = vpop.permute.xlu0 %1339
      %1341 = vrot.lane.b32.xlu0 %v1294, 119
      %v1342 = vpop.permute.xlu0 %1341
      %1343 = vrot.lane.b32.xlu0 %v1298, 119
      %v1344 = vpop.permute.xlu0 %1343
      %1345 = vrot.lane.b32.xlu0 %v1302, 119
      %v1346 = vpop.permute.xlu0 %1345
      %1347 = vrot.lane.b32.xlu0 %v1306, 119
      %v1348 = vpop.permute.xlu0 %1347
      %1349 = vrot.lane.b32.xlu0 %v1310, 119
      %v1350 = vpop.permute.xlu0 %1349
      %1351 = vrot.lane.b32.xlu0 %v1314, 119
      %v1352 = vpop.permute.xlu0 %1351
      %1353 = vrot.lane.b32.xlu0 %v1318, 119
      %v1354 = vpop.permute.xlu0 %1353
      %1355 = vrot.lane.b32.xlu0 %v1322, 119
      %v1356 = vpop.permute.xlu0 %1355
      %1357 = vrot.lane.b32.xlu0 %v1326, 119
      %v1358 = vpop.permute.xlu0 %1357
      %1375 = vst.msk [vmem:[%s1246 + $0x1] sm:$0x1] %vm617, %v1328
      %1376 = vst.msk [vmem:[%s1246 + $0x9] sm:$0x1] %vm617, %v1330
      %1377 = vst.msk [vmem:[%s1246 + $0x11] sm:$0x1] %vm617, %v1332
      %1378 = vst.msk [vmem:[%s1246 + $0x19] sm:$0x1] %vm617, %v1334
      %1379 = vst.msk [vmem:[%s1246 + $0x21] sm:$0x1] %vm617, %v1336
      %1380 = vst.msk [vmem:[%s1246 + $0x29] sm:$0x1] %vm617, %v1338
      %1381 = vst.msk [vmem:[%s1246 + $0x31] sm:$0x1] %vm617, %v1340
      %1382 = vst.msk [vmem:[%s1246 + $0x39] sm:$0x1] %vm617, %v1342
      %1383 = vst.msk [vmem:[%s1246 + $0x41] sm:$0x1] %vm617, %v1344
      %1384 = vst.msk [vmem:[%s1246 + $0x49] sm:$0x1] %vm617, %v1346
      %1385 = vst.msk [vmem:[%s1246 + $0x51] sm:$0x1] %vm617, %v1348
      %1386 = vst.msk [vmem:[%s1246 + $0x59] sm:$0x1] %vm617, %v1350
      %1387 = vst.msk [vmem:[%s1246 + $0x61] sm:$0x1] %vm617, %v1352
      %1388 = vst.msk [vmem:[%s1246 + $0x69] sm:$0x1] %vm617, %v1354
      %1389 = vst.msk [vmem:[%s1246 + $0x71] sm:$0x1] %vm617, %v1356
      %1390 = vst.msk [vmem:[%s1246 + $0x79] sm:$0x1] %vm617, %v1358
      %1391 = vrot.lane.b32.xlu0 %v1266, 110
      %v1392 = vpop.permute.xlu0 %1391
      %1393 = vrot.lane.b32.xlu0 %v1270, 110
      %v1394 = vpop.permute.xlu0 %1393
      %1395 = vrot.lane.b32.xlu0 %v1274, 110
      %v1396 = vpop.permute.xlu0 %1395
      %1397 = vrot.lane.b32.xlu0 %v1278, 110
      %v1398 = vpop.permute.xlu0 %1397
      %1399 = vrot.lane.b32.xlu0 %v1282, 110
      %v1400 = vpop.permute.xlu0 %1399
      %1401 = vrot.lane.b32.xlu0 %v1286, 110
      %v1402 = vpop.permute.xlu0 %1401
      %1403 = vrot.lane.b32.xlu0 %v1290, 110
      %v1404 = vpop.permute.xlu0 %1403
      %1405 = vrot.lane.b32.xlu0 %v1294, 110
      %v1406 = vpop.permute.xlu0 %1405
      %1407 = vrot.lane.b32.xlu0 %v1298, 110
      %v1408 = vpop.permute.xlu0 %1407
      %1409 = vrot.lane.b32.xlu0 %v1302, 110
      %v1410 = vpop.permute.xlu0 %1409
      %1411 = vrot.lane.b32.xlu0 %v1306, 110
      %v1412 = vpop.permute.xlu0 %1411
      %1413 = vrot.lane.b32.xlu0 %v1310, 110
      %v1414 = vpop.permute.xlu0 %1413
      %1415 = vrot.lane.b32.xlu0 %v1314, 110
      %v1416 = vpop.permute.xlu0 %1415
      %1417 = vrot.lane.b32.xlu0 %v1318, 110
      %v1418 = vpop.permute.xlu0 %1417
      %1419 = vrot.lane.b32.xlu0 %v1322, 110
      %v1420 = vpop.permute.xlu0 %1419
      %1421 = vrot.lane.b32.xlu0 %v1326, 110
      %v1422 = vpop.permute.xlu0 %1421
      %1439 = vst.msk [vmem:[%s1246 + $0x2] sm:$0x1] %vm617, %v1392
      %1440 = vst.msk [vmem:[%s1246 + $0xa] sm:$0x1] %vm617, %v1394
      %1441 = vst.msk [vmem:[%s1246 + $0x12] sm:$0x1] %vm617, %v1396
      %1442 = vst.msk [vmem:[%s1246 + $0x1a] sm:$0x1] %vm617, %v1398
      %1443 = vst.msk [vmem:[%s1246 + $0x22] sm:$0x1] %vm617, %v1400
      %1444 = vst.msk [vmem:[%s1246 + $0x2a] sm:$0x1] %vm617, %v1402
      %1445 = vst.msk [vmem:[%s1246 + $0x32] sm:$0x1] %vm617, %v1404
      %1446 = vst.msk [vmem:[%s1246 + $0x3a] sm:$0x1] %vm617, %v1406
      %1447 = vst.msk [vmem:[%s1246 + $0x42] sm:$0x1] %vm617, %v1408
      %1448 = vst.msk [vmem:[%s1246 + $0x4a] sm:$0x1] %vm617, %v1410
      %1449 = vst.msk [vmem:[%s1246 + $0x52] sm:$0x1] %vm617, %v1412
      %1450 = vst.msk [vmem:[%s1246 + $0x5a] sm:$0x1] %vm617, %v1414
      %1451 = vst.msk [vmem:[%s1246 + $0x62] sm:$0x1] %vm617, %v1416
      %1452 = vst.msk [vmem:[%s1246 + $0x6a] sm:$0x1] %vm617, %v1418
      %1453 = vst.msk [vmem:[%s1246 + $0x72] sm:$0x1] %vm617, %v1420
      %1454 = vst.msk [vmem:[%s1246 + $0x7a] sm:$0x1] %vm617, %v1422
      %1455 = vrot.lane.b32.xlu0 %v1266, 101
      %v1456 = vpop.permute.xlu0 %1455
      %1457 = vrot.lane.b32.xlu0 %v1270, 101
      %v1458 = vpop.permute.xlu0 %1457
      %1459 = vrot.lane.b32.xlu0 %v1274, 101
      %v1460 = vpop.permute.xlu0 %1459
      %1461 = vrot.lane.b32.xlu0 %v1278, 101
      %v1462 = vpop.permute.xlu0 %1461
      %1463 = vrot.lane.b32.xlu0 %v1282, 101
      %v1464 = vpop.permute.xlu0 %1463
      %1465 = vrot.lane.b32.xlu0 %v1286, 101
      %v1466 = vpop.permute.xlu0 %1465
      %1467 = vrot.lane.b32.xlu0 %v1290, 101
      %v1468 = vpop.permute.xlu0 %1467
      %1469 = vrot.lane.b32.xlu0 %v1294, 101
      %v1470 = vpop.permute.xlu0 %1469
      %1471 = vrot.lane.b32.xlu0 %v1298, 101
      %v1472 = vpop.permute.xlu0 %1471
      %1473 = vrot.lane.b32.xlu0 %v1302, 101
      %v1474 = vpop.permute.xlu0 %1473
      %1475 = vrot.lane.b32.xlu0 %v1306, 101
      %v1476 = vpop.permute.xlu0 %1475
      %1477 = vrot.lane.b32.xlu0 %v1310, 101
      %v1478 = vpop.permute.xlu0 %1477
      %1479 = vrot.lane.b32.xlu0 %v1314, 101
      %v1480 = vpop.permute.xlu0 %1479
      %1481 = vrot.lane.b32.xlu0 %v1318, 101
      %v1482 = vpop.permute.xlu0 %1481
      %1483 = vrot.lane.b32.xlu0 %v1322, 101
      %v1484 = vpop.permute.xlu0 %1483
      %1485 = vrot.lane.b32.xlu0 %v1326, 101
      %v1486 = vpop.permute.xlu0 %1485
      %1503 = vst.msk [vmem:[%s1246 + $0x3] sm:$0x1] %vm617, %v1456
      %1504 = vst.msk [vmem:[%s1246 + $0xb] sm:$0x1] %vm617, %v1458
      %1505 = vst.msk [vmem:[%s1246 + $0x13] sm:$0x1] %vm617, %v1460
      %1506 = vst.msk [vmem:[%s1246 + $0x1b] sm:$0x1] %vm617, %v1462
      %1507 = vst.msk [vmem:[%s1246 + $0x23] sm:$0x1] %vm617, %v1464
      %1508 = vst.msk [vmem:[%s1246 + $0x2b] sm:$0x1] %vm617, %v1466
      %1509 = vst.msk [vmem:[%s1246 + $0x33] sm:$0x1] %vm617, %v1468
      %1510 = vst.msk [vmem:[%s1246 + $0x3b] sm:$0x1] %vm617, %v1470
      %1511 = vst.msk [vmem:[%s1246 + $0x43] sm:$0x1] %vm617, %v1472
      %1512 = vst.msk [vmem:[%s1246 + $0x4b] sm:$0x1] %vm617, %v1474
      %1513 = vst.msk [vmem:[%s1246 + $0x53] sm:$0x1] %vm617, %v1476
      %1514 = vst.msk [vmem:[%s1246 + $0x5b] sm:$0x1] %vm617, %v1478
      %1515 = vst.msk [vmem:[%s1246 + $0x63] sm:$0x1] %vm617, %v1480
      %1516 = vst.msk [vmem:[%s1246 + $0x6b] sm:$0x1] %vm617, %v1482
      %1517 = vst.msk [vmem:[%s1246 + $0x73] sm:$0x1] %vm617, %v1484
      %1518 = vst.msk [vmem:[%s1246 + $0x7b] sm:$0x1] %vm617, %v1486
      %1519 = vrot.lane.b32.xlu0 %v1266, 92
      %v1520 = vpop.permute.xlu0 %1519
      %1521 = vrot.lane.b32.xlu0 %v1270, 92
      %v1522 = vpop.permute.xlu0 %1521
      %1523 = vrot.lane.b32.xlu0 %v1274, 92
      %v1524 = vpop.permute.xlu0 %1523
      %1525 = vrot.lane.b32.xlu0 %v1278, 92
      %v1526 = vpop.permute.xlu0 %1525
      %1527 = vrot.lane.b32.xlu0 %v1282, 92
      %v1528 = vpop.permute.xlu0 %1527
      %1529 = vrot.lane.b32.xlu0 %v1286, 92
      %v1530 = vpop.permute.xlu0 %1529
      %1531 = vrot.lane.b32.xlu0 %v1290, 92
      %v1532 = vpop.permute.xlu0 %1531
      %1533 = vrot.lane.b32.xlu0 %v1294, 92
      %v1534 = vpop.permute.xlu0 %1533
      %1535 = vrot.lane.b32.xlu0 %v1298, 92
      %v1536 = vpop.permute.xlu0 %1535
      %1537 = vrot.lane.b32.xlu0 %v1302, 92
      %v1538 = vpop.permute.xlu0 %1537
      %1539 = vrot.lane.b32.xlu0 %v1306, 92
      %v1540 = vpop.permute.xlu0 %1539
      %1541 = vrot.lane.b32.xlu0 %v1310, 92
      %v1542 = vpop.permute.xlu0 %1541
      %1543 = vrot.lane.b32.xlu0 %v1314, 92
      %v1544 = vpop.permute.xlu0 %1543
      %1545 = vrot.lane.b32.xlu0 %v1318, 92
      %v1546 = vpop.permute.xlu0 %1545
      %1547 = vrot.lane.b32.xlu0 %v1322, 92
      %v1548 = vpop.permute.xlu0 %1547
      %1549 = vrot.lane.b32.xlu0 %v1326, 92
      %v1550 = vpop.permute.xlu0 %1549
      %1567 = vst.msk [vmem:[%s1246 + $0x4] sm:$0x1] %vm617, %v1520
      %1568 = vst.msk [vmem:[%s1246 + $0xc] sm:$0x1] %vm617, %v1522
      %1569 = vst.msk [vmem:[%s1246 + $0x14] sm:$0x1] %vm617, %v1524
      %1570 = vst.msk [vmem:[%s1246 + $0x1c] sm:$0x1] %vm617, %v1526
      %1571 = vst.msk [vmem:[%s1246 + $0x24] sm:$0x1] %vm617, %v1528
      %1572 = vst.msk [vmem:[%s1246 + $0x2c] sm:$0x1] %vm617, %v1530
      %1573 = vst.msk [vmem:[%s1246 + $0x34] sm:$0x1] %vm617, %v1532
      %1574 = vst.msk [vmem:[%s1246 + $0x3c] sm:$0x1] %vm617, %v1534
      %1575 = vst.msk [vmem:[%s1246 + $0x44] sm:$0x1] %vm617, %v1536
      %1576 = vst.msk [vmem:[%s1246 + $0x4c] sm:$0x1] %vm617, %v1538
      %1577 = vst.msk [vmem:[%s1246 + $0x54] sm:$0x1] %vm617, %v1540
      %1578 = vst.msk [vmem:[%s1246 + $0x5c] sm:$0x1] %vm617, %v1542
      %1579 = vst.msk [vmem:[%s1246 + $0x64] sm:$0x1] %vm617, %v1544
      %1580 = vst.msk [vmem:[%s1246 + $0x6c] sm:$0x1] %vm617, %v1546
      %1581 = vst.msk [vmem:[%s1246 + $0x74] sm:$0x1] %vm617, %v1548
      %1582 = vst.msk [vmem:[%s1246 + $0x7c] sm:$0x1] %vm617, %v1550
      %1583 = vrot.lane.b32.xlu0 %v1266, 83
      %v1584 = vpop.permute.xlu0 %1583
      %1585 = vrot.lane.b32.xlu0 %v1270, 83
      %v1586 = vpop.permute.xlu0 %1585
      %1587 = vrot.lane.b32.xlu0 %v1274, 83
      %v1588 = vpop.permute.xlu0 %1587
      %1589 = vrot.lane.b32.xlu0 %v1278, 83
      %v1590 = vpop.permute.xlu0 %1589
      %1591 = vrot.lane.b32.xlu0 %v1282, 83
      %v1592 = vpop.permute.xlu0 %1591
      %1593 = vrot.lane.b32.xlu0 %v1286, 83
      %v1594 = vpop.permute.xlu0 %1593
      %1595 = vrot.lane.b32.xlu0 %v1290, 83
      %v1596 = vpop.permute.xlu0 %1595
      %1597 = vrot.lane.b32.xlu0 %v1294, 83
      %v1598 = vpop.permute.xlu0 %1597
      %1599 = vrot.lane.b32.xlu0 %v1298, 83
      %v1600 = vpop.permute.xlu0 %1599
      %1601 = vrot.lane.b32.xlu0 %v1302, 83
      %v1602 = vpop.permute.xlu0 %1601
      %1603 = vrot.lane.b32.xlu0 %v1306, 83
      %v1604 = vpop.permute.xlu0 %1603
      %1605 = vrot.lane.b32.xlu0 %v1310, 83
      %v1606 = vpop.permute.xlu0 %1605
      %1607 = vrot.lane.b32.xlu0 %v1314, 83
      %v1608 = vpop.permute.xlu0 %1607
      %1609 = vrot.lane.b32.xlu0 %v1318, 83
      %v1610 = vpop.permute.xlu0 %1609
      %1611 = vrot.lane.b32.xlu0 %v1322, 83
      %v1612 = vpop.permute.xlu0 %1611
      %1613 = vrot.lane.b32.xlu0 %v1326, 83
      %v1614 = vpop.permute.xlu0 %1613
      %1631 = vst.msk [vmem:[%s1246 + $0x5] sm:$0x1] %vm617, %v1584
      %1632 = vst.msk [vmem:[%s1246 + $0xd] sm:$0x1] %vm617, %v1586
      %1633 = vst.msk [vmem:[%s1246 + $0x15] sm:$0x1] %vm617, %v1588
      %1634 = vst.msk [vmem:[%s1246 + $0x1d] sm:$0x1] %vm617, %v1590
      %1635 = vst.msk [vmem:[%s1246 + $0x25] sm:$0x1] %vm617, %v1592
      %1636 = vst.msk [vmem:[%s1246 + $0x2d] sm:$0x1] %vm617, %v1594
      %1637 = vst.msk [vmem:[%s1246 + $0x35] sm:$0x1] %vm617, %v1596
      %1638 = vst.msk [vmem:[%s1246 + $0x3d] sm:$0x1] %vm617, %v1598
      %1639 = vst.msk [vmem:[%s1246 + $0x45] sm:$0x1] %vm617, %v1600
      %1640 = vst.msk [vmem:[%s1246 + $0x4d] sm:$0x1] %vm617, %v1602
      %1641 = vst.msk [vmem:[%s1246 + $0x55] sm:$0x1] %vm617, %v1604
      %1642 = vst.msk [vmem:[%s1246 + $0x5d] sm:$0x1] %vm617, %v1606
      %1643 = vst.msk [vmem:[%s1246 + $0x65] sm:$0x1] %vm617, %v1608
      %1644 = vst.msk [vmem:[%s1246 + $0x6d] sm:$0x1] %vm617, %v1610
      %1645 = vst.msk [vmem:[%s1246 + $0x75] sm:$0x1] %vm617, %v1612
      %1646 = vst.msk [vmem:[%s1246 + $0x7d] sm:$0x1] %vm617, %v1614
      %1647 = vrot.lane.b32.xlu0 %v1266, 74
      %v1648 = vpop.permute.xlu0 %1647
      %1649 = vrot.lane.b32.xlu0 %v1270, 74
      %v1650 = vpop.permute.xlu0 %1649
      %1651 = vrot.lane.b32.xlu0 %v1274, 74
      %v1652 = vpop.permute.xlu0 %1651
      %1653 = vrot.lane.b32.xlu0 %v1278, 74
      %v1654 = vpop.permute.xlu0 %1653
      %1655 = vrot.lane.b32.xlu0 %v1282, 74
      %v1656 = vpop.permute.xlu0 %1655
      %1657 = vrot.lane.b32.xlu0 %v1286, 74
      %v1658 = vpop.permute.xlu0 %1657
      %1659 = vrot.lane.b32.xlu0 %v1290, 74
      %v1660 = vpop.permute.xlu0 %1659
      %1661 = vrot.lane.b32.xlu0 %v1294, 74
      %v1662 = vpop.permute.xlu0 %1661
      %1663 = vrot.lane.b32.xlu0 %v1298, 74
      %v1664 = vpop.permute.xlu0 %1663
      %1665 = vrot.lane.b32.xlu0 %v1302, 74
      %v1666 = vpop.permute.xlu0 %1665
      %1667 = vrot.lane.b32.xlu0 %v1306, 74
      %v1668 = vpop.permute.xlu0 %1667
      %1669 = vrot.lane.b32.xlu0 %v1310, 74
      %v1670 = vpop.permute.xlu0 %1669
      %1671 = vrot.lane.b32.xlu0 %v1314, 74
      %v1672 = vpop.permute.xlu0 %1671
      %1673 = vrot.lane.b32.xlu0 %v1318, 74
      %v1674 = vpop.permute.xlu0 %1673
      %1675 = vrot.lane.b32.xlu0 %v1322, 74
      %v1676 = vpop.permute.xlu0 %1675
      %1677 = vrot.lane.b32.xlu0 %v1326, 74
      %v1678 = vpop.permute.xlu0 %1677
      %1695 = vst.msk [vmem:[%s1246 + $0x6] sm:$0x1] %vm617, %v1648
      %1696 = vst.msk [vmem:[%s1246 + $0xe] sm:$0x1] %vm617, %v1650
      %1697 = vst.msk [vmem:[%s1246 + $0x16] sm:$0x1] %vm617, %v1652
      %1698 = vst.msk [vmem:[%s1246 + $0x1e] sm:$0x1] %vm617, %v1654
      %1699 = vst.msk [vmem:[%s1246 + $0x26] sm:$0x1] %vm617, %v1656
      %1700 = vst.msk [vmem:[%s1246 + $0x2e] sm:$0x1] %vm617, %v1658
      %1701 = vst.msk [vmem:[%s1246 + $0x36] sm:$0x1] %vm617, %v1660
      %1702 = vst.msk [vmem:[%s1246 + $0x3e] sm:$0x1] %vm617, %v1662
      %1703 = vst.msk [vmem:[%s1246 + $0x46] sm:$0x1] %vm617, %v1664
      %1704 = vst.msk [vmem:[%s1246 + $0x4e] sm:$0x1] %vm617, %v1666
      %1705 = vst.msk [vmem:[%s1246 + $0x56] sm:$0x1] %vm617, %v1668
      %1706 = vst.msk [vmem:[%s1246 + $0x5e] sm:$0x1] %vm617, %v1670
      %1707 = vst.msk [vmem:[%s1246 + $0x66] sm:$0x1] %vm617, %v1672
      %1708 = vst.msk [vmem:[%s1246 + $0x6e] sm:$0x1] %vm617, %v1674
      %1709 = vst.msk [vmem:[%s1246 + $0x76] sm:$0x1] %vm617, %v1676
      %1710 = vst.msk [vmem:[%s1246 + $0x7e] sm:$0x1] %vm617, %v1678
      %1711 = vrot.lane.b32.xlu0 %v1266, 65
      %v1712 = vpop.permute.xlu0 %1711
      %1713 = vrot.lane.b32.xlu0 %v1270, 65
      %v1714 = vpop.permute.xlu0 %1713
      %1715 = vrot.lane.b32.xlu0 %v1274, 65
      %v1716 = vpop.permute.xlu0 %1715
      %1717 = vrot.lane.b32.xlu0 %v1278, 65
      %v1718 = vpop.permute.xlu0 %1717
      %1719 = vrot.lane.b32.xlu0 %v1282, 65
      %v1720 = vpop.permute.xlu0 %1719
      %1721 = vrot.lane.b32.xlu0 %v1286, 65
      %v1722 = vpop.permute.xlu0 %1721
      %1723 = vrot.lane.b32.xlu0 %v1290, 65
      %v1724 = vpop.permute.xlu0 %1723
      %1725 = vrot.lane.b32.xlu0 %v1294, 65
      %v1726 = vpop.permute.xlu0 %1725
      %1727 = vrot.lane.b32.xlu0 %v1298, 65
      %v1728 = vpop.permute.xlu0 %1727
      %1729 = vrot.lane.b32.xlu0 %v1302, 65
      %v1730 = vpop.permute.xlu0 %1729
      %1731 = vrot.lane.b32.xlu0 %v1306, 65
      %v1732 = vpop.permute.xlu0 %1731
      %1733 = vrot.lane.b32.xlu0 %v1310, 65
      %v1734 = vpop.permute.xlu0 %1733
      %1735 = vrot.lane.b32.xlu0 %v1314, 65
      %v1736 = vpop.permute.xlu0 %1735
      %1737 = vrot.lane.b32.xlu0 %v1318, 65
      %v1738 = vpop.permute.xlu0 %1737
      %1739 = vrot.lane.b32.xlu0 %v1322, 65
      %v1740 = vpop.permute.xlu0 %1739
      %1741 = vrot.lane.b32.xlu0 %v1326, 65
      %v1742 = vpop.permute.xlu0 %1741
      %1759 = vst.msk [vmem:[%s1246 + $0x7] sm:$0x1] %vm617, %v1712
      %1760 = vst.msk [vmem:[%s1246 + $0xf] sm:$0x1] %vm617, %v1714
      %1761 = vst.msk [vmem:[%s1246 + $0x17] sm:$0x1] %vm617, %v1716
      %1762 = vst.msk [vmem:[%s1246 + $0x1f] sm:$0x1] %vm617, %v1718
      %1763 = vst.msk [vmem:[%s1246 + $0x27] sm:$0x1] %vm617, %v1720
      %1764 = vst.msk [vmem:[%s1246 + $0x2f] sm:$0x1] %vm617, %v1722
      %1765 = vst.msk [vmem:[%s1246 + $0x37] sm:$0x1] %vm617, %v1724
      %1766 = vst.msk [vmem:[%s1246 + $0x3f] sm:$0x1] %vm617, %v1726
      %1767 = vst.msk [vmem:[%s1246 + $0x47] sm:$0x1] %vm617, %v1728
      %1768 = vst.msk [vmem:[%s1246 + $0x4f] sm:$0x1] %vm617, %v1730
      %1769 = vst.msk [vmem:[%s1246 + $0x57] sm:$0x1] %vm617, %v1732
      %1770 = vst.msk [vmem:[%s1246 + $0x5f] sm:$0x1] %vm617, %v1734
      %1771 = vst.msk [vmem:[%s1246 + $0x67] sm:$0x1] %vm617, %v1736
      %1772 = vst.msk [vmem:[%s1246 + $0x6f] sm:$0x1] %vm617, %v1738
      %1773 = vst.msk [vmem:[%s1246 + $0x77] sm:$0x1] %vm617, %v1740
      %1774 = vst.msk [vmem:[%s1246 + $0x7f] sm:$0x1] %vm617, %v1742
      %s1775 = scalar_lea.vmem %s1, 144
      %v1776 = vld [vmem:[%s1775] sm:$0xff]
      %1778 = vset.pattern.permute.xlu0 0
      %1779 = vperm.xlu0 %1778, %v1776
      %v1780 = vpop.permute.xlu0 %1779
      %v1782 = vmul.f32 %v335, %v1780
      %s1783 = scalar_lea.vmem %s1, 152
      %v1784 = vld [vmem:[%s1783] sm:$0xff]
      %1786 = vset.pattern.permute.xlu0 0
      %1787 = vperm.xlu0 %1786, %v1784
      %v1788 = vpop.permute.xlu0 %1787
      %v1790 = vmul.f32 %v337, %v1788
      %v1791 = vadd.f32 %v1782, %v1790
      %s1792 = scalar_lea.vmem %s1, 160
      %v1793 = vld [vmem:[%s1792] sm:$0xff]
      %1795 = vset.pattern.permute.xlu0 0
      %1796 = vperm.xlu0 %1795, %v1793
      %v1797 = vpop.permute.xlu0 %1796
      %v1799 = vmul.f32 %v335, %v1797
      %1801 = vrot.lane.b32.xlu0 %v1799, 127
      %v1802 = vpop.permute.xlu0 %1801
      %v1804 = vadd.f32 %v1791, %v1802
      %s1805 = scalar_lea.vmem %s1, 168
      %v1806 = vld [vmem:[%s1805] sm:$0xff]
      %1808 = vset.pattern.permute.xlu0 0
      %1809 = vperm.xlu0 %1808, %v1806
      %v1810 = vpop.permute.xlu0 %1809
      %v1812 = vmul.f32 %v339, %v1810
      %v1813 = vadd.f32 %v1804, %v1812
      %s1814 = scalar_lea.vmem %s1, 176
      %v1815 = vld [vmem:[%s1814] sm:$0xff]
      %1817 = vset.pattern.permute.xlu0 0
      %1818 = vperm.xlu0 %1817, %v1815
      %v1819 = vpop.permute.xlu0 %1818
      %v1821 = vmul.f32 %v341, %v1819
      %v1822 = vadd.f32 %v1813, %v1821
      %s1823 = scalar_lea.vmem %s1, 184
      %v1824 = vld [vmem:[%s1823] sm:$0xff]
      %1826 = vset.pattern.permute.xlu0 0
      %1827 = vperm.xlu0 %1826, %v1824
      %v1828 = vpop.permute.xlu0 %1827
      %v1830 = vmul.f32 %v339, %v1828
      %1832 = vrot.lane.b32.xlu0 %v1830, 127
      %v1833 = vpop.permute.xlu0 %1832
      %v1835 = vadd.f32 %v1822, %v1833
      %s1836 = scalar_lea.vmem %s1, 192
      %v1837 = vld [vmem:[%s1836] sm:$0xff]
      %1839 = vset.pattern.permute.xlu0 0
      %1840 = vperm.xlu0 %1839, %v1837
      %v1841 = vpop.permute.xlu0 %1840
      %v1843 = vmul.f32 %v335, %v1841
      %1845 = vrot.lane.b32.xlu0 %v1843, 119
      %v1846 = vpop.permute.xlu0 %1845
      %v1848 = vadd.f32 %v1835, %v1846
      %s1849 = scalar_lea.vmem %s1, 200
      %v1850 = vld [vmem:[%s1849] sm:$0xff]
      %1852 = vset.pattern.permute.xlu0 0
      %1853 = vperm.xlu0 %1852, %v1850
      %v1854 = vpop.permute.xlu0 %1853
      %v1856 = vmul.f32 %v337, %v1854
      %1858 = vrot.lane.b32.xlu0 %v1856, 119
      %v1859 = vpop.permute.xlu0 %1858
      %v1861 = vadd.f32 %v1848, %v1859
      %s1862 = scalar_lea.vmem %s1, 208
      %v1863 = vld [vmem:[%s1862] sm:$0xff]
      %1865 = vset.pattern.permute.xlu0 0
      %1866 = vperm.xlu0 %1865, %v1863
      %v1867 = vpop.permute.xlu0 %1866
      %v1869 = vmul.f32 %v335, %v1867
      %1871 = vrot.lane.b32.xlu0 %v1869, 118
      %v1872 = vpop.permute.xlu0 %1871
      %v1874 = vadd.f32 %v1861, %v1872
      %s1875 = scalar_lea.vmem %s2, 16
      %v1876 = vld [vmem:[%s1875] sm:$0xff]
      %1878 = vset.pattern.permute.xlu0 0
      %1879 = vperm.xlu0 %1878, %v1876
      %v1880 = vpop.permute.xlu0 %1879
      %v1882 = vadd.f32 %v1874, %v1880
      %v1883 = vld [vmem:[%s3 + $0x10] sm:$0xff]
      %1885 = vset.pattern.permute.xlu0 0
      %1886 = vperm.xlu0 %1885, %v1883
      %v1887 = vpop.permute.xlu0 %1886
      %v1889 = vmul.f32 %v1882, %v1887
      %v1890 = vld [vmem:[%s4 + $0x10] sm:$0xff]
      %1892 = vset.pattern.permute.xlu0 0
      %1893 = vperm.xlu0 %1892, %v1890
      %v1894 = vpop.permute.xlu0 %1893
      %v1896 = vadd.f32 %v1889, %v1894
      %v1897 = vmax.f32 %v1896, 0.0
      %v1898 = vld [vmem:[%s5 + $0x18] sm:$0xff]
      %v1899 = vld [vmem:[%s6 + $0x18] sm:$0xff]
      %1901 = vset.pattern.permute.xlu0 0
      %1902 = vperm.xlu0 %1901, %v1899
      %v1903 = vpop.permute.xlu0 %1902
      %v1906 = vsel %vm470, %v1898, 0
      %1908 = vmatprep.subr.mxu0 0.0
      %1909 = vmatpush1.msra.mxu0 %v1897
      %1910 = vmatprep.subr.mxu0 0.0
      %1911 = vmatpush1.msra.mxu0 0.0
      %1912 = vmatprep.subr.mxu0 0.0
      %1913 = vmatpush1.msra.mxu0 0.0
      %1914 = vmatprep.subr.mxu0 0.0
      %1915 = vmatpush1.msra.mxu0 0.0
      %1916 = vmatprep.subr.mxu0 0.0
      %1917 = vmatpush1.msra.mxu0 0.0
      %1918 = vmatprep.subr.mxu0 0.0
      %1919 = vmatpush1.msra.mxu0 0.0
      %1920 = vmatprep.subr.mxu0 0.0
      %1921 = vmatpush1.msra.mxu0 0.0
      %1922 = vmatprep.subr.mxu0 0.0
      %1923 = vmatpush1.msra.mxu0 0.0
      %1924 = vmatprep.subr.mxu0 0.0
      %1925 = vmatpush1.msra.mxu0 0.0
      %1926 = vmatprep.subr.mxu0 0.0
      %1927 = vmatpush1.msra.mxu0 0.0
      %1928 = vmatprep.subr.mxu0 0.0
      %1929 = vmatpush1.msra.mxu0 0.0
      %1930 = vmatprep.subr.mxu0 0.0
      %1931 = vmatpush1.msra.mxu0 0.0
      %1932 = vmatprep.subr.mxu0 0.0
      %1933 = vmatpush1.msra.mxu0 0.0
      %1934 = vmatprep.subr.mxu0 0.0
      %1935 = vmatpush1.msra.mxu0 0.0
      %1936 = vmatprep.subr.mxu0 0.0
      %1937 = vmatpush1.msra.mxu0 0.0
      %1938 = vmatprep.subr.mxu0 0.0
      %1939 = vmatpush1.msra.mxu0 0.0
      %1940 = vmatprep.subr.mxu0 0.0
      %1941 = vmatpush1.msra.mxu0 0.0
      %1942 = vmatprep.subr.mxu0 0.0
      %1943 = vmatpush1.msra.mxu0 0.0
      %1944 = vmatprep.subr.mxu0 0.0
      %1945 = vmatpush1.msra.mxu0 0.0
      %1946 = vmatprep.subr.mxu0 0.0
      %1947 = vmatpush1.msra.mxu0 0.0
      %1948 = vmatprep.subr.mxu0 0.0
      %1949 = vmatpush1.msra.mxu0 0.0
      %1950 = vmatprep.subr.mxu0 0.0
      %1951 = vmatpush1.msra.mxu0 0.0
      %1952 = vmatprep.subr.mxu0 0.0
      %1953 = vmatpush1.msra.mxu0 0.0
      %1954 = vmatprep.subr.mxu0 0.0
      %1955 = vmatpush1.msra.mxu0 0.0
      %1956 = vmatprep.subr.mxu0 0.0
      %1957 = vmatpush1.msra.mxu0 0.0
      %1958 = vmatprep.subr.mxu0 0.0
      %1959 = vmatpush1.msra.mxu0 0.0
      %1960 = vmatprep.subr.mxu0 0.0
      %1961 = vmatpush1.msra.mxu0 0.0
      %1962 = vmatprep.subr.mxu0 0.0
      %1963 = vmatpush1.msra.mxu0 0.0
      %1964 = vmatprep.subr.mxu0 0.0
      %1965 = vmatpush1.msra.mxu0 0.0
      %1966 = vmatprep.subr.mxu0 0.0
      %1967 = vmatpush1.msra.mxu0 0.0
      %1968 = vmatprep.subr.mxu0 0.0
      %1969 = vmatpush1.msra.mxu0 0.0
      %1970 = vmatprep.subr.mxu0 0.0
      %1971 = vmatpush1.msra.mxu0 0.0
      %1972 = vmatprep.mubr.f32.mxu0 0.0
      %1973 = vmatmul.mubr.f32.gmra.mrb[0].mxu0 %v1906
      %v1974 = vpop.f32.mrb[0].mxu0
      %v1975 = vadd.f32 %v1903, %v1974
      %v1976 = vpop.f32.mrb[0].mxu0
      %1977 = vdwg.mxu0
      %v1978 = vld [vmem:[%s7 + $0x18] sm:$0xff]
      %1980 = vset.pattern.permute.xlu0 0
      %1981 = vperm.xlu0 %1980, %v1978
      %v1982 = vpop.permute.xlu0 %1981
      %v1984 = vmul.f32 %v1975, %v1982
      %v1985 = vld [vmem:[%s8 + $0x18] sm:$0xff]
      %1987 = vset.pattern.permute.xlu0 0
      %1988 = vperm.xlu0 %1987, %v1985
      %v1989 = vpop.permute.xlu0 %1988
      %v1991 = vadd.f32 %v1984, %v1989
      %v1992 = vmax.f32 %v1991, 0.0
      %v1994 = vcombine.high %v1992, %v1992
      %v1996 = vunpack.c.l.s4 1966171168
      %v1997 = vunpack.c.0.s8 %v1996
      %v1998 = vlaneseq
      %v1999 = vshrl.u32 %v1998, 7
      %v2000 = vsub.s32 %v1997, %v1999
      %v2001 = vrot.slane %v1992, %v2000
      %v2003 = vunpack.c.l.s4 1966171168
      %v2004 = vunpack.c.0.s8 %v2003
      %v2005 = vlaneseq
      %v2006 = vshrl.u32 %v2005, 7
      %v2007 = vsub.s32 %v2004, %v2006
      %v2008 = vrot.slane %v1994, %v2007
      %v2009 = vcombine.high %v2001, %v2001
      %v2010 = vcombine.high %v2008, %v2008
      %v2012 = vunpack.c.l.s4 1966171168
      %v2013 = vunpack.c.0.s8 %v2012
      %v2014 = vlaneseq
      %v2015 = vshrl.u32 %v2014, 7
      %v2016 = vsub.s32 %v2013, %v2015
      %v2017 = vrot.slane %v2001, %v2016
      %v2019 = vunpack.c.l.s4 1966171168
      %v2020 = vunpack.c.0.s8 %v2019
      %v2021 = vlaneseq
      %v2022 = vshrl.u32 %v2021, 7
      %v2023 = vsub.s32 %v2020, %v2022
      %v2024 = vrot.slane %v2008, %v2023
      %v2026 = vunpack.c.l.s4 1966171168
      %v2027 = vunpack.c.0.s8 %v2026
      %v2028 = vlaneseq
      %v2029 = vshrl.u32 %v2028, 7
      %v2030 = vsub.s32 %v2027, %v2029
      %v2031 = vrot.slane %v2009, %v2030
      %v2033 = vunpack.c.l.s4 1966171168
      %v2034 = vunpack.c.0.s8 %v2033
      %v2035 = vlaneseq
      %v2036 = vshrl.u32 %v2035, 7
      %v2037 = vsub.s32 %v2034, %v2036
      %v2038 = vrot.slane %v2010, %v2037
      %v2039 = vcombine.high %v2017, %v2017
      %v2040 = vcombine.high %v2024, %v2024
      %v2041 = vcombine.high %v2031, %v2031
      %v2042 = vcombine.high %v2038, %v2038
      %s2051 = scalar_lea.vmem %s334, 192
      %2052 = vst.msk [vmem:[%s2051] sm:$0x1] %vm617, %v2017
      %2053 = vst.msk [vmem:[%s2051 + $0x8] sm:$0x1] %vm617, %v2031
      %2054 = vst.msk [vmem:[%s2051 + $0x10] sm:$0x1] %vm617, %v2039
      %2055 = vst.msk [vmem:[%s2051 + $0x18] sm:$0x1] %vm617, %v2041
      %2056 = vst.msk [vmem:[%s2051 + $0x20] sm:$0x1] %vm617, %v2024
      %2057 = vst.msk [vmem:[%s2051 + $0x28] sm:$0x1] %vm617, %v2038
      %2058 = vst.msk [vmem:[%s2051 + $0x30] sm:$0x1] %vm617, %v2040
      %2059 = vst.msk [vmem:[%s2051 + $0x38] sm:$0x1] %vm617, %v2042
      %v2060 = vlaneseq
      %v2061 = vshrl.u32 %v2060, 7
      %v2062 = vsub.s32 0, %v2061
      %v2063 = vrot.slane %v2017, %v2062
      %v2064 = vlaneseq
      %v2065 = vshrl.u32 %v2064, 7
      %v2066 = vsub.s32 0, %v2065
      %v2067 = vrot.slane %v2031, %v2066
      %v2068 = vlaneseq
      %v2069 = vshrl.u32 %v2068, 7
      %v2070 = vsub.s32 0, %v2069
      %v2071 = vrot.slane %v2039, %v2070
      %v2072 = vlaneseq
      %v2073 = vshrl.u32 %v2072, 7
      %v2074 = vsub.s32 0, %v2073
      %v2075 = vrot.slane %v2041, %v2074
      %v2076 = vlaneseq
      %v2077 = vshrl.u32 %v2076, 7
      %v2078 = vsub.s32 0, %v2077
      %v2079 = vrot.slane %v2024, %v2078
      %v2080 = vlaneseq
      %v2081 = vshrl.u32 %v2080, 7
      %v2082 = vsub.s32 0, %v2081
      %v2083 = vrot.slane %v2038, %v2082
      %v2084 = vlaneseq
      %v2085 = vshrl.u32 %v2084, 7
      %v2086 = vsub.s32 0, %v2085
      %v2087 = vrot.slane %v2040, %v2086
      %v2088 = vlaneseq
      %v2089 = vshrl.u32 %v2088, 7
      %v2090 = vsub.s32 0, %v2089
      %v2091 = vrot.slane %v2042, %v2090
      %2092 = vrot.lane.b32.xlu0 %v2063, 119
      %v2093 = vpop.permute.xlu0 %2092
      %2094 = vrot.lane.b32.xlu0 %v2067, 119
      %v2095 = vpop.permute.xlu0 %2094
      %2096 = vrot.lane.b32.xlu0 %v2071, 119
      %v2097 = vpop.permute.xlu0 %2096
      %2098 = vrot.lane.b32.xlu0 %v2075, 119
      %v2099 = vpop.permute.xlu0 %2098
      %2100 = vrot.lane.b32.xlu0 %v2079, 119
      %v2101 = vpop.permute.xlu0 %2100
      %2102 = vrot.lane.b32.xlu0 %v2083, 119
      %v2103 = vpop.permute.xlu0 %2102
      %2104 = vrot.lane.b32.xlu0 %v2087, 119
      %v2105 = vpop.permute.xlu0 %2104
      %2106 = vrot.lane.b32.xlu0 %v2091, 119
      %v2107 = vpop.permute.xlu0 %2106
      %2116 = vst.msk [vmem:[%s2051 + $0x1] sm:$0x1] %vm617, %v2093
      %2117 = vst.msk [vmem:[%s2051 + $0x9] sm:$0x1] %vm617, %v2095
      %2118 = vst.msk [vmem:[%s2051 + $0x11] sm:$0x1] %vm617, %v2097
      %2119 = vst.msk [vmem:[%s2051 + $0x19] sm:$0x1] %vm617, %v2099
      %2120 = vst.msk [vmem:[%s2051 + $0x21] sm:$0x1] %vm617, %v2101
      %2121 = vst.msk [vmem:[%s2051 + $0x29] sm:$0x1] %vm617, %v2103
      %2122 = vst.msk [vmem:[%s2051 + $0x31] sm:$0x1] %vm617, %v2105
      %2123 = vst.msk [vmem:[%s2051 + $0x39] sm:$0x1] %vm617, %v2107
      %2124 = vrot.lane.b32.xlu0 %v2063, 110
      %v2125 = vpop.permute.xlu0 %2124
      %2126 = vrot.lane.b32.xlu0 %v2067, 110
      %v2127 = vpop.permute.xlu0 %2126
      %2128 = vrot.lane.b32.xlu0 %v2071, 110
      %v2129 = vpop.permute.xlu0 %2128
      %2130 = vrot.lane.b32.xlu0 %v2075, 110
      %v2131 = vpop.permute.xlu0 %2130
      %2132 = vrot.lane.b32.xlu0 %v2079, 110
      %v2133 = vpop.permute.xlu0 %2132
      %2134 = vrot.lane.b32.xlu0 %v2083, 110
      %v2135 = vpop.permute.xlu0 %2134
      %2136 = vrot.lane.b32.xlu0 %v2087, 110
      %v2137 = vpop.permute.xlu0 %2136
      %2138 = vrot.lane.b32.xlu0 %v2091, 110
      %v2139 = vpop.permute.xlu0 %2138
      %2148 = vst.msk [vmem:[%s2051 + $0x2] sm:$0x1] %vm617, %v2125
      %2149 = vst.msk [vmem:[%s2051 + $0xa] sm:$0x1] %vm617, %v2127
      %2150 = vst.msk [vmem:[%s2051 + $0x12] sm:$0x1] %vm617, %v2129
      %2151 = vst.msk [vmem:[%s2051 + $0x1a] sm:$0x1] %vm617, %v2131
      %2152 = vst.msk [vmem:[%s2051 + $0x22] sm:$0x1] %vm617, %v2133
      %2153 = vst.msk [vmem:[%s2051 + $0x2a] sm:$0x1] %vm617, %v2135
      %2154 = vst.msk [vmem:[%s2051 + $0x32] sm:$0x1] %vm617, %v2137
      %2155 = vst.msk [vmem:[%s2051 + $0x3a] sm:$0x1] %vm617, %v2139
      %2156 = vrot.lane.b32.xlu0 %v2063, 101
      %v2157 = vpop.permute.xlu0 %2156
      %2158 = vrot.lane.b32.xlu0 %v2067, 101
      %v2159 = vpop.permute.xlu0 %2158
      %2160 = vrot.lane.b32.xlu0 %v2071, 101
      %v2161 = vpop.permute.xlu0 %2160
      %2162 = vrot.lane.b32.xlu0 %v2075, 101
      %v2163 = vpop.permute.xlu0 %2162
      %2164 = vrot.lane.b32.xlu0 %v2079, 101
      %v2165 = vpop.permute.xlu0 %2164
      %2166 = vrot.lane.b32.xlu0 %v2083, 101
      %v2167 = vpop.permute.xlu0 %2166
      %2168 = vrot.lane.b32.xlu0 %v2087, 101
      %v2169 = vpop.permute.xlu0 %2168
      %2170 = vrot.lane.b32.xlu0 %v2091, 101
      %v2171 = vpop.permute.xlu0 %2170
      %2180 = vst.msk [vmem:[%s2051 + $0x3] sm:$0x1] %vm617, %v2157
      %2181 = vst.msk [vmem:[%s2051 + $0xb] sm:$0x1] %vm617, %v2159
      %2182 = vst.msk [vmem:[%s2051 + $0x13] sm:$0x1] %vm617, %v2161
      %2183 = vst.msk [vmem:[%s2051 + $0x1b] sm:$0x1] %vm617, %v2163
      %2184 = vst.msk [vmem:[%s2051 + $0x23] sm:$0x1] %vm617, %v2165
      %2185 = vst.msk [vmem:[%s2051 + $0x2b] sm:$0x1] %vm617, %v2167
      %2186 = vst.msk [vmem:[%s2051 + $0x33] sm:$0x1] %vm617, %v2169
      %2187 = vst.msk [vmem:[%s2051 + $0x3b] sm:$0x1] %vm617, %v2171
      %2188 = vrot.lane.b32.xlu0 %v2063, 92
      %v2189 = vpop.permute.xlu0 %2188
      %2190 = vrot.lane.b32.xlu0 %v2067, 92
      %v2191 = vpop.permute.xlu0 %2190
      %2192 = vrot.lane.b32.xlu0 %v2071, 92
      %v2193 = vpop.permute.xlu0 %2192
      %2194 = vrot.lane.b32.xlu0 %v2075, 92
      %v2195 = vpop.permute.xlu0 %2194
      %2196 = vrot.lane.b32.xlu0 %v2079, 92
      %v2197 = vpop.permute.xlu0 %2196
      %2198 = vrot.lane.b32.xlu0 %v2083, 92
      %v2199 = vpop.permute.xlu0 %2198
      %2200 = vrot.lane.b32.xlu0 %v2087, 92
      %v2201 = vpop.permute.xlu0 %2200
      %2202 = vrot.lane.b32.xlu0 %v2091, 92
      %v2203 = vpop.permute.xlu0 %2202
      %2212 = vst.msk [vmem:[%s2051 + $0x4] sm:$0x1] %vm617, %v2189
      %2213 = vst.msk [vmem:[%s2051 + $0xc] sm:$0x1] %vm617, %v2191
      %2214 = vst.msk [vmem:[%s2051 + $0x14] sm:$0x1] %vm617, %v2193
      %2215 = vst.msk [vmem:[%s2051 + $0x1c] sm:$0x1] %vm617, %v2195
      %2216 = vst.msk [vmem:[%s2051 + $0x24] sm:$0x1] %vm617, %v2197
      %2217 = vst.msk [vmem:[%s2051 + $0x2c] sm:$0x1] %vm617, %v2199
      %2218 = vst.msk [vmem:[%s2051 + $0x34] sm:$0x1] %vm617, %v2201
      %2219 = vst.msk [vmem:[%s2051 + $0x3c] sm:$0x1] %vm617, %v2203
      %2220 = vrot.lane.b32.xlu0 %v2063, 83
      %v2221 = vpop.permute.xlu0 %2220
      %2222 = vrot.lane.b32.xlu0 %v2067, 83
      %v2223 = vpop.permute.xlu0 %2222
      %2224 = vrot.lane.b32.xlu0 %v2071, 83
      %v2225 = vpop.permute.xlu0 %2224
      %2226 = vrot.lane.b32.xlu0 %v2075, 83
      %v2227 = vpop.permute.xlu0 %2226
      %2228 = vrot.lane.b32.xlu0 %v2079, 83
      %v2229 = vpop.permute.xlu0 %2228
      %2230 = vrot.lane.b32.xlu0 %v2083, 83
      %v2231 = vpop.permute.xlu0 %2230
      %2232 = vrot.lane.b32.xlu0 %v2087, 83
      %v2233 = vpop.permute.xlu0 %2232
      %2234 = vrot.lane.b32.xlu0 %v2091, 83
      %v2235 = vpop.permute.xlu0 %2234
      %2244 = vst.msk [vmem:[%s2051 + $0x5] sm:$0x1] %vm617, %v2221
      %2245 = vst.msk [vmem:[%s2051 + $0xd] sm:$0x1] %vm617, %v2223
      %2246 = vst.msk [vmem:[%s2051 + $0x15] sm:$0x1] %vm617, %v2225
      %2247 = vst.msk [vmem:[%s2051 + $0x1d] sm:$0x1] %vm617, %v2227
      %2248 = vst.msk [vmem:[%s2051 + $0x25] sm:$0x1] %vm617, %v2229
      %2249 = vst.msk [vmem:[%s2051 + $0x2d] sm:$0x1] %vm617, %v2231
      %2250 = vst.msk [vmem:[%s2051 + $0x35] sm:$0x1] %vm617, %v2233
      %2251 = vst.msk [vmem:[%s2051 + $0x3d] sm:$0x1] %vm617, %v2235
      %2252 = vrot.lane.b32.xlu0 %v2063, 74
      %v2253 = vpop.permute.xlu0 %2252
      %2254 = vrot.lane.b32.xlu0 %v2067, 74
      %v2255 = vpop.permute.xlu0 %2254
      %2256 = vrot.lane.b32.xlu0 %v2071, 74
      %v2257 = vpop.permute.xlu0 %2256
      %2258 = vrot.lane.b32.xlu0 %v2075, 74
      %v2259 = vpop.permute.xlu0 %2258
      %2260 = vrot.lane.b32.xlu0 %v2079, 74
      %v2261 = vpop.permute.xlu0 %2260
      %2262 = vrot.lane.b32.xlu0 %v2083, 74
      %v2263 = vpop.permute.xlu0 %2262
      %2264 = vrot.lane.b32.xlu0 %v2087, 74
      %v2265 = vpop.permute.xlu0 %2264
      %2266 = vrot.lane.b32.xlu0 %v2091, 74
      %v2267 = vpop.permute.xlu0 %2266
      %2276 = vst.msk [vmem:[%s2051 + $0x6] sm:$0x1] %vm617, %v2253
      %2277 = vst.msk [vmem:[%s2051 + $0xe] sm:$0x1] %vm617, %v2255
      %2278 = vst.msk [vmem:[%s2051 + $0x16] sm:$0x1] %vm617, %v2257
      %2279 = vst.msk [vmem:[%s2051 + $0x1e] sm:$0x1] %vm617, %v2259
      %2280 = vst.msk [vmem:[%s2051 + $0x26] sm:$0x1] %vm617, %v2261
      %2281 = vst.msk [vmem:[%s2051 + $0x2e] sm:$0x1] %vm617, %v2263
      %2282 = vst.msk [vmem:[%s2051 + $0x36] sm:$0x1] %vm617, %v2265
      %2283 = vst.msk [vmem:[%s2051 + $0x3e] sm:$0x1] %vm617, %v2267
      %2284 = vrot.lane.b32.xlu0 %v2063, 65
      %v2285 = vpop.permute.xlu0 %2284
      %2286 = vrot.lane.b32.xlu0 %v2067, 65
      %v2287 = vpop.permute.xlu0 %2286
      %2288 = vrot.lane.b32.xlu0 %v2071, 65
      %v2289 = vpop.permute.xlu0 %2288
      %2290 = vrot.lane.b32.xlu0 %v2075, 65
      %v2291 = vpop.permute.xlu0 %2290
      %2292 = vrot.lane.b32.xlu0 %v2079, 65
      %v2293 = vpop.permute.xlu0 %2292
      %2294 = vrot.lane.b32.xlu0 %v2083, 65
      %v2295 = vpop.permute.xlu0 %2294
      %2296 = vrot.lane.b32.xlu0 %v2087, 65
      %v2297 = vpop.permute.xlu0 %2296
      %2298 = vrot.lane.b32.xlu0 %v2091, 65
      %v2299 = vpop.permute.xlu0 %2298
      %2308 = vst.msk [vmem:[%s2051 + $0x7] sm:$0x1] %vm617, %v2285
      %2309 = vst.msk [vmem:[%s2051 + $0xf] sm:$0x1] %vm617, %v2287
      %2310 = vst.msk [vmem:[%s2051 + $0x17] sm:$0x1] %vm617, %v2289
      %2311 = vst.msk [vmem:[%s2051 + $0x1f] sm:$0x1] %vm617, %v2291
      %2312 = vst.msk [vmem:[%s2051 + $0x27] sm:$0x1] %vm617, %v2293
      %2313 = vst.msk [vmem:[%s2051 + $0x2f] sm:$0x1] %vm617, %v2295
      %2314 = vst.msk [vmem:[%s2051 + $0x37] sm:$0x1] %vm617, %v2297
      %2315 = vst.msk [vmem:[%s2051 + $0x3f] sm:$0x1] %vm617, %v2299
      %p2316 = scmp.lt.s32.totalorder %s20, 1
      %s2317 = scalar_select %p2316, %s20, 1
      %s2318 = smul.addr %s2317, 32
      %s2319 = smul.addr %s2318, 8
      %s2320 = scalar_lea.vmem %s9, %s2319
      // Predicated region
      $region57: #{block_forward.5} parent=55 // pred_check
        %p2321 = pneg %p232
      $region58: #{block_forward.5} parent=55 // pred_check_branch
        %2323 = sbr.rel (%p2321) target = $region60
      $region59: #{block_forward.5} parent=55 // pred_region
        _
      $region60: #{block_forward.5} parent=55 // pred_fallthru
        _
    $region56: #{block_forward.5} parent=5 // pred_fallthru
      _
    %p2324 = scmp.le.s32.totalorder 2, %s15
    // Predicated region
    $region61: #{block_forward.5} parent=5 // pred_check
      %p2325 = pneg %p2324
    $region62: #{block_forward.5} parent=5 // pred_check_branch
      %2327 = sbr.rel (%p2325) target = $region64
    $region63: #{block_forward.5} parent=5 // pred_region
      %s2328 = ssub.s32 %s15, 2
      // Predicated region
      $region65: #{block_forward.5} parent=63 // pred_check
        %p2329 = pneg %p238
      $region66: #{block_forward.5} parent=63 // pred_check_branch
        %2331 = sbr.rel (%p2329) target = $region68
      $region67: #{block_forward.5} parent=63 // pred_region
        %p2332 = scmp.lt.s32.totalorder %s21, 1
        %s2333 = scalar_select %p2332, %s21, 1
        %s2334 = smul.addr %s2333, 32
        %s2335 = smul.addr %s2334, 8
        %s2336 = scalar_lea.vmem %s9, %s2335
      $region68: #{block_forward.5} parent=63 // pred_fallthru
        _
    $region64: #{block_forward.5} parent=5 // pred_fallthru
      _
  $region6: #{block_forward.5} parent=0 // loop_footer
    %s19 = sadd.s32 1, %s15
  $region7: #{block_forward.5} parent=0 // loop_footer_branch
    %14 = sbr.rel target = $region3
  $region8: #{block_forward.5} parent=0 // loop_exit
    _

</llo_original>
